<compile_context>
chip_gen: v7x
topology: tpu7x:2x2x1
jax: 0.10.0
libtpu: 0.0.40
codegen_flags: <defaults>
</compile_context>

<pallas_src>
import functools

import jax
import jax.numpy as jnp
from jax.experimental import pallas as pl
from jax.experimental.pallas import tpu as pltpu

LN_EPS = 1e-6
NEG_INF = -1e9
VMEM_LIMIT = 32 * 1024 * 1024   # conservative for v7x (64 MiB physical)


# ------------------------------ small helpers -------------------------------

def _pick_row_tile(M, target=256):
    """Largest row tile <= target that evenly divides M (multiple of 8)."""
    if M <= target:
        return M
    t = target
    while t >= 8:
        if M % t == 0:
            return t
        t -= 8
    return M


def _full_spec(shape):
    """BlockSpec covering the whole (small) array, constant across the grid."""
    ndim = len(shape)
    return pl.BlockSpec(shape, lambda *_: (0,) * ndim)


def _compiler_params():
    return pltpu.CompilerParams(dimension_semantics=("parallel",),
                                vmem_limit_bytes=VMEM_LIMIT)


# ------------------------------ kernel helpers -------------------------------

def _layernorm(x, g, b):
    mean = jnp.mean(x, axis=-1, keepdims=True)
    var = jnp.mean((x - mean) ** 2, axis=-1, keepdims=True)
    return (x - mean) * jax.lax.rsqrt(var + LN_EPS) * g + b


def _mha_into_scratch(q_all, k_all, v_all, add_mask, attn_sc,
                      num_heads, head_dim):
    """Multi-head softmax attention for one batch; per-head outputs are
    written lane-packed into the (S, D) VMEM scratch so that one lane-dense
    output-projection matmul can follow."""
    scale = 1.0 / float(head_dim) ** 0.5
    for h in range(num_heads):
        lo, hi = h * head_dim, (h + 1) * head_dim
        q = q_all[:, lo:hi].astype(jnp.bfloat16)
        k = k_all[:, lo:hi].astype(jnp.bfloat16)
        v = v_all[:, lo:hi].astype(jnp.bfloat16)
        # q @ k^T without materializing a transpose (MXU consumes it).
        s = jax.lax.dot_general(q, k, (((1,), (1,)), ((), ())),
                                preferred_element_type=jnp.float32) * scale
        s = s + add_mask
        s = s - jnp.max(s, axis=-1, keepdims=True)
        p = jnp.exp(s)
        p = p * pl.reciprocal(jnp.sum(p, axis=-1, keepdims=True), approx=True)
        attn_sc[:, lo:hi] = jnp.dot(p.astype(jnp.bfloat16), v,
                                    preferred_element_type=jnp.float32)


# -------------------------------- kernels ------------------------------------

def _self_attn_block_kernel(x_ref, mask_ref, g_ref, b_ref,
                            wqkv_ref, bqkv_ref, wo_ref, bo_ref,
                            o_ref, attn_sc, *, num_heads, head_dim):
    D = num_heads * head_dim
    x = x_ref[0]                                              # (S, D) f32
    h = _layernorm(x, g_ref[...], b_ref[...])
    qkv = jnp.dot(h.astype(jnp.bfloat16), wqkv_ref[...],
                  preferred_element_type=jnp.float32) + bqkv_ref[...]
    _mha_into_scratch(qkv[:, 0:D], qkv[:, D:2 * D], qkv[:, 2 * D:3 * D],
                      mask_ref[...], attn_sc, num_heads, head_dim)
    o_ref[0] = (jnp.dot(attn_sc[...].astype(jnp.bfloat16), wo_ref[...],
                        preferred_element_type=jnp.float32)
                + bo_ref[...] + x)


def _cross_attn_block_kernel(x_ref, ek_ref, ev_ref, mask_ref, g_ref, b_ref,
                             wq_ref, bq_ref, wk_ref, bk_ref, wv_ref, bv_ref,
                             wo_ref, bo_ref, o_ref, attn_sc,
                             *, num_heads, head_dim):
    x = x_ref[0]                                              # (S, D) f32
    h = _layernorm(x, g_ref[...], b_ref[...])
    q = jnp.dot(h.astype(jnp.bfloat16), wq_ref[...],
                preferred_element_type=jnp.float32) + bq_ref[...]
    k = jnp.dot(ek_ref[0].astype(jnp.bfloat16), wk_ref[...],
                preferred_element_type=jnp.float32) + bk_ref[...]
    v = jnp.dot(ev_ref[0].astype(jnp.bfloat16), wv_ref[...],
                preferred_element_type=jnp.float32) + bv_ref[...]
    _mha_into_scratch(q, k, v, mask_ref[...], attn_sc, num_heads, head_dim)
    o_ref[0] = (jnp.dot(attn_sc[...].astype(jnp.bfloat16), wo_ref[...],
                        preferred_element_type=jnp.float32)
                + bo_ref[...] + x)


def _ffn_block_kernel(x_ref, g_ref, b_ref, w1_ref, b1_ref, w2_ref, b2_ref,
                      o_ref):
    x = x_ref[...]                                            # (TM, D) f32
    h = _layernorm(x, g_ref[...], b_ref[...])
    a = jnp.maximum(
        jnp.dot(h.astype(jnp.bfloat16), w1_ref[...],
                preferred_element_type=jnp.float32) + b1_ref[...], 0.0)
    o_ref[...] = (jnp.dot(a.astype(jnp.bfloat16), w2_ref[...],
                          preferred_element_type=jnp.float32)
                  + b2_ref[...] + x)


def _layernorm_kernel(x_ref, g_ref, b_ref, o_ref):
    o_ref[...] = _layernorm(x_ref[...], g_ref[...], b_ref[...])


# ------------------------------ thin wrappers --------------------------------

def self_attention_block(x, add_mask, p, num_heads):
    B, S, D = x.shape
    head_dim = D // num_heads
    bs_x = pl.BlockSpec((1, S, D), lambda b: (b, 0, 0))
    kern = functools.partial(_self_attn_block_kernel,
                             num_heads=num_heads, head_dim=head_dim)
    return pl.pallas_call(
        kern,
        out_shape=jax.ShapeDtypeStruct((B, S, D), jnp.float32),
        grid=(B,),
        in_specs=[bs_x, _full_spec(add_mask.shape),
                  _full_spec(p["ln1_g"].shape), _full_spec(p["ln1_b"].shape),
                  _full_spec(p["wqkv"].shape), _full_spec(p["bqkv"].shape),
                  _full_spec(p["wo_self"].shape), _full_spec(p["bo_self"].shape)],
        out_specs=bs_x,
        scratch_shapes=[pltpu.VMEM((S, D), jnp.float32)],
        input_output_aliases={0: 0},
        compiler_params=_compiler_params(),
    )(x, add_mask, p["ln1_g"], p["ln1_b"], p["wqkv"], p["bqkv"],
      p["wo_self"], p["bo_self"])


def cross_attention_block(x, enc_keys, enc_values, add_mask, p, num_heads):
    B, S, D = x.shape
    head_dim = D // num_heads
    bs_x = pl.BlockSpec((1, S, D), lambda b: (b, 0, 0))
    kern = functools.partial(_cross_attn_block_kernel,
                             num_heads=num_heads, head_dim=head_dim)
    return pl.pallas_call(
        kern,
        out_shape=jax.ShapeDtypeStruct((B, S, D), jnp.float32),
        grid=(B,),
        in_specs=[bs_x, bs_x, bs_x, _full_spec(add_mask.shape),
                  _full_spec(p["ln2_g"].shape), _full_spec(p["ln2_b"].shape),
                  _full_spec(p["wq_x"].shape), _full_spec(p["bq_x"].shape),
                  _full_spec(p["wk_x"].shape), _full_spec(p["bk_x"].shape),
                  _full_spec(p["wv_x"].shape), _full_spec(p["bv_x"].shape),
                  _full_spec(p["wo_x"].shape), _full_spec(p["bo_x"].shape)],
        out_specs=bs_x,
        scratch_shapes=[pltpu.VMEM((S, D), jnp.float32)],
        input_output_aliases={0: 0},
        compiler_params=_compiler_params(),
    )(x, enc_keys, enc_values, add_mask,
      p["ln2_g"], p["ln2_b"], p["wq_x"], p["bq_x"], p["wk_x"], p["bk_x"],
      p["wv_x"], p["bv_x"], p["wo_x"], p["bo_x"])


def ffn_block(x2d, p):
    M, D = x2d.shape
    TM = _pick_row_tile(M)
    bs_x = pl.BlockSpec((TM, D), lambda i: (i, 0))
    return pl.pallas_call(
        _ffn_block_kernel,
        out_shape=jax.ShapeDtypeStruct((M, D), jnp.float32),
        grid=(M // TM,),
        in_specs=[bs_x,
                  _full_spec(p["ln3_g"].shape), _full_spec(p["ln3_b"].shape),
                  _full_spec(p["w1"].shape), _full_spec(p["b1"].shape),
                  _full_spec(p["w2"].shape), _full_spec(p["b2"].shape)],
        out_specs=bs_x,
        input_output_aliases={0: 0},
        compiler_params=_compiler_params(),
    )(x2d, p["ln3_g"], p["ln3_b"], p["w1"], p["b1"], p["w2"], p["b2"])


def layernorm_rows(x2d, g, b):
    M, D = x2d.shape
    TM = _pick_row_tile(M)
    bs = pl.BlockSpec((TM, D), lambda i: (i, 0))
    return pl.pallas_call(
        _layernorm_kernel,
        out_shape=jax.ShapeDtypeStruct((M, D), jnp.float32),
        grid=(M // TM,),
        in_specs=[bs, _full_spec(g.shape), _full_spec(b.shape)],
        out_specs=bs,
        input_output_aliases={0: 0},
        compiler_params=_compiler_params(),
    )(x2d, g, b)


# ----------------------------- params & forward ------------------------------

def init_decoder_params(key, num_decoders, D, E):
    def w(k, shape):   # bf16 weights (MXU inputs), f32 accumulation in-kernel
        return (0.02 * jax.random.normal(k, shape, jnp.float32)).astype(jnp.bfloat16)

    def zeros(n):
        return jnp.zeros((1, n), jnp.float32)

    def ones(n):
        return jnp.ones((1, n), jnp.float32)

    layers = []
    for _ in range(num_decoders):
        key, *ks = jax.random.split(key, 9)
        layers.append(dict(
            ln1_g=ones(D), ln1_b=zeros(D),
            wqkv=w(ks[0], (D, 3 * D)), bqkv=zeros(3 * D),
            wo_self=w(ks[1], (D, D)), bo_self=zeros(D),
            ln2_g=ones(D), ln2_b=zeros(D),
            wq_x=w(ks[2], (D, D)), bq_x=zeros(D),
            wk_x=w(ks[3], (D, D)), bk_x=zeros(D),
            wv_x=w(ks[4], (D, D)), bv_x=zeros(D),
            wo_x=w(ks[5], (D, D)), bo_x=zeros(D),
            ln3_g=ones(D), ln3_b=zeros(D),
            w1=w(ks[6], (D, E)), b1=zeros(E),
            w2=w(ks[7], (E, D)), b2=zeros(D),
        ))
    final = dict(g=ones(D), b=zeros(D))
    return layers, final


def decoder_forward(layers, final_ln, x, enc_keys, enc_values,
                    target_mask, source_mask, num_heads):
    B, S, D = x.shape
    # additive masks precomputed once (0 where visible, -1e9 where masked)
    tgt_add = jnp.where(target_mask > 0, 0.0, NEG_INF).astype(jnp.float32)
    src_add = jnp.where(source_mask > 0, 0.0, NEG_INF).astype(jnp.float32)

    out = x.astype(jnp.float32)
    for p in layers:
        out = self_attention_block(out, tgt_add, p, num_heads)
        out = cross_attention_block(out, enc_keys, enc_values, src_add, p,
                                    num_heads)
        out = ffn_block(out.reshape(B * S, D), p).reshape(B, S, D)

    out2d = layernorm_rows(out.reshape(B * S, D), final_ln["g"], final_ln["b"])
    return out2d.reshape(B, S, D)


if __name__ == "__main__":
    B, S, D, H, E, L = 2, 8, 32, 8, 64, 2   # batch, seq, embed, heads, ffn, layers
    key = jax.random.PRNGKey(0)
    k1, k2, k3, kp = jax.random.split(key, 4)

    x = jax.random.normal(k1, (B, S, D), jnp.float32)
    enc_keys = jax.random.normal(k2, (B, S, D), jnp.float32)
    enc_values = jax.random.normal(k3, (B, S, D), jnp.float32)
    target_mask = jnp.tril(jnp.ones((S, S), jnp.float32))   # causal
    source_mask = jnp.ones((S, S), jnp.float32)             # full visibility

    layers, final_ln = init_decoder_params(kp, L, D, E)

    fwd = jax.jit(decoder_forward, static_argnums=(7,))
    out = fwd(layers, final_ln, x, enc_keys, enc_values,
              target_mask, source_mask, H)
    out = jax.block_until_ready(out)
    assert out.shape == (B, S, D) and out.dtype == jnp.float32
    assert bool(jnp.all(jnp.isfinite(out)))
    print("KERNEL_OK")
</pallas_src>

<mosaic_0001>
module attributes {stable_mosaic.version = 11 : i64} {
  func.func @_cross_attn_block_kernel(%arg0: i32, %arg1: memref<1x8x32xf32, #tpu.memory_space<vmem>>, %arg2: memref<1x8x32xf32, #tpu.memory_space<vmem>>, %arg3: memref<1x8x32xf32, #tpu.memory_space<vmem>>, %arg4: memref<8x8xf32, #tpu.memory_space<vmem>>, %arg5: memref<1x32xf32, #tpu.memory_space<vmem>>, %arg6: memref<1x32xf32, #tpu.memory_space<vmem>>, %arg7: memref<32x32xbf16, #tpu.memory_space<vmem>>, %arg8: memref<1x32xf32, #tpu.memory_space<vmem>>, %arg9: memref<32x32xbf16, #tpu.memory_space<vmem>>, %arg10: memref<1x32xf32, #tpu.memory_space<vmem>>, %arg11: memref<32x32xbf16, #tpu.memory_space<vmem>>, %arg12: memref<1x32xf32, #tpu.memory_space<vmem>>, %arg13: memref<32x32xbf16, #tpu.memory_space<vmem>>, %arg14: memref<1x32xf32, #tpu.memory_space<vmem>>, %arg15: memref<1x8x32xf32, #tpu.memory_space<vmem>>, %arg16: memref<8x32xf32, #tpu.memory_space<vmem>>) attributes {dimension_semantics = [#tpu.dimension_semantics<parallel>], iteration_bounds = array<i64: 2>, scalar_prefetch = 0 : i64, scratch_operands = 1 : i64, tpu.core_type = #tpu.core_type<tc>, window_params = [{transform_indices = @transform_0, window_bounds = array<i64: 1, 8, 32>}, {transform_indices = @transform_1, window_bounds = array<i64: 1, 8, 32>}, {transform_indices = @transform_2, window_bounds = array<i64: 1, 8, 32>}, {pipeline_mode = #tpu.pipeline_mode<synchronous>, transform_indices = @transform_3, window_bounds = array<i64: 8, 8>}, {pipeline_mode = #tpu.pipeline_mode<synchronous>, transform_indices = @transform_4, window_bounds = array<i64: 1, 32>}, {pipeline_mode = #tpu.pipeline_mode<synchronous>, transform_indices = @transform_5, window_bounds = array<i64: 1, 32>}, {pipeline_mode = #tpu.pipeline_mode<synchronous>, transform_indices = @transform_6, window_bounds = array<i64: 32, 32>}, {pipeline_mode = #tpu.pipeline_mode<synchronous>, transform_indices = @transform_7, window_bounds = array<i64: 1, 32>}, {pipeline_mode = #tpu.pipeline_mode<synchronous>, transform_indices = @transform_8, window_bounds = array<i64: 32, 32>}, {pipeline_mode = #tpu.pipeline_mode<synchronous>, transform_indices = @transform_9, window_bounds = array<i64: 1, 32>}, {pipeline_mode = #tpu.pipeline_mode<synchronous>, transform_indices = @transform_10, window_bounds = array<i64: 32, 32>}, {pipeline_mode = #tpu.pipeline_mode<synchronous>, transform_indices = @transform_11, window_bounds = array<i64: 1, 32>}, {pipeline_mode = #tpu.pipeline_mode<synchronous>, transform_indices = @transform_12, window_bounds = array<i64: 32, 32>}, {pipeline_mode = #tpu.pipeline_mode<synchronous>, transform_indices = @transform_13, window_bounds = array<i64: 1, 32>}, {transform_indices = @transform_14, window_bounds = array<i64: 1, 8, 32>}]} {
    %c0 = arith.constant 0 : index
    %c0_0 = arith.constant 0 : index
    %c0_1 = arith.constant 0 : index
    %0 = vector.load %arg1[%c0, %c0_0, %c0_1] : memref<1x8x32xf32, #tpu.memory_space<vmem>>, vector<1x8x32xf32>
    %1 = vector.shape_cast %0 : vector<1x8x32xf32> to vector<8x32xf32>
    %c0_2 = arith.constant 0 : index
    %c0_3 = arith.constant 0 : index
    %2 = vector.load %arg5[%c0_2, %c0_3] : memref<1x32xf32, #tpu.memory_space<vmem>>, vector<1x32xf32>
    %c0_4 = arith.constant 0 : index
    %c0_5 = arith.constant 0 : index
    %3 = vector.load %arg6[%c0_4, %c0_5] : memref<1x32xf32, #tpu.memory_space<vmem>>, vector<1x32xf32>
    %cst = arith.constant dense<0.000000e+00> : vector<8xf32>
    %4 = vector.multi_reduction <add>, %1, %cst [1] : vector<8x32xf32> to vector<8xf32>
    %5 = vector.shape_cast %4 : vector<8xf32> to vector<8x1xf32>
    %cst_6 = arith.constant 3.200000e+01 : f32
    %6 = vector.broadcast %cst_6 : f32 to vector<8x1xf32>
    %7 = arith.divf %5, %6 : vector<8x1xf32>
    %8 = vector.broadcast %7 : vector<8x1xf32> to vector<8x32xf32>
    %9 = arith.subf %1, %8 : vector<8x32xf32>
    %10 = arith.mulf %9, %9 : vector<8x32xf32>
    %cst_7 = arith.constant dense<0.000000e+00> : vector<8xf32>
    %11 = vector.multi_reduction <add>, %10, %cst_7 [1] : vector<8x32xf32> to vector<8xf32>
    %12 = vector.shape_cast %11 : vector<8xf32> to vector<8x1xf32>
    %cst_8 = arith.constant 3.200000e+01 : f32
    %13 = vector.broadcast %cst_8 : f32 to vector<8x1xf32>
    %14 = arith.divf %12, %13 : vector<8x1xf32>
    %15 = vector.broadcast %7 : vector<8x1xf32> to vector<8x32xf32>
    %16 = arith.subf %1, %15 : vector<8x32xf32>
    %cst_9 = arith.constant 9.99999997E-7 : f32
    %17 = vector.broadcast %cst_9 : f32 to vector<8x1xf32>
    %18 = arith.addf %14, %17 : vector<8x1xf32>
    %19 = math.rsqrt %18 : vector<8x1xf32>
    %20 = vector.broadcast %19 : vector<8x1xf32> to vector<8x32xf32>
    %21 = arith.mulf %16, %20 : vector<8x32xf32>
    %22 = vector.broadcast %2 : vector<1x32xf32> to vector<8x32xf32>
    %23 = arith.mulf %21, %22 : vector<8x32xf32>
    %24 = vector.broadcast %3 : vector<1x32xf32> to vector<8x32xf32>
    %25 = arith.addf %23, %24 : vector<8x32xf32>
    %26 = arith.truncf %25 : vector<8x32xf32> to vector<8x32xbf16>
    %c0_10 = arith.constant 0 : index
    %c0_11 = arith.constant 0 : index
    %27 = vector.load %arg7[%c0_10, %c0_11] : memref<32x32xbf16, #tpu.memory_space<vmem>>, vector<32x32xbf16>
    %cst_12 = arith.constant dense<0.000000e+00> : vector<8x32xf32>
    %28 = tpu.matmul %26, %27, %cst_12 {dimension_numbers = #tpu.dot_dimension_numbers<[1], [0], [0], [1], [0, 0, 1, 1], [], []>} : vector<8x32xbf16>, vector<32x32xbf16>, vector<8x32xf32> -> vector<8x32xf32>
    %c0_13 = arith.constant 0 : index
    %c0_14 = arith.constant 0 : index
    %29 = vector.load %arg8[%c0_13, %c0_14] : memref<1x32xf32, #tpu.memory_space<vmem>>, vector<1x32xf32>
    %30 = vector.broadcast %29 : vector<1x32xf32> to vector<8x32xf32>
    %31 = arith.addf %28, %30 : vector<8x32xf32>
    %c0_15 = arith.constant 0 : index
    %c0_16 = arith.constant 0 : index
    %c0_17 = arith.constant 0 : index
    %32 = vector.load %arg2[%c0_15, %c0_16, %c0_17] : memref<1x8x32xf32, #tpu.memory_space<vmem>>, vector<1x8x32xf32>
    %33 = vector.shape_cast %32 : vector<1x8x32xf32> to vector<8x32xf32>
    %34 = arith.truncf %33 : vector<8x32xf32> to vector<8x32xbf16>
    %c0_18 = arith.constant 0 : index
    %c0_19 = arith.constant 0 : index
    %35 = vector.load %arg9[%c0_18, %c0_19] : memref<32x32xbf16, #tpu.memory_space<vmem>>, vector<32x32xbf16>
    %cst_20 = arith.constant dense<0.000000e+00> : vector<8x32xf32>
    %36 = tpu.matmul %34, %35, %cst_20 {dimension_numbers = #tpu.dot_dimension_numbers<[1], [0], [0], [1], [0, 0, 1, 1], [], []>} : vector<8x32xbf16>, vector<32x32xbf16>, vector<8x32xf32> -> vector<8x32xf32>
    %c0_21 = arith.constant 0 : index
    %c0_22 = arith.constant 0 : index
    %37 = vector.load %arg10[%c0_21, %c0_22] : memref<1x32xf32, #tpu.memory_space<vmem>>, vector<1x32xf32>
    %38 = vector.broadcast %37 : vector<1x32xf32> to vector<8x32xf32>
    %39 = arith.addf %36, %38 : vector<8x32xf32>
    %c0_23 = arith.constant 0 : index
    %c0_24 = arith.constant 0 : index
    %c0_25 = arith.constant 0 : index
    %40 = vector.load %arg3[%c0_23, %c0_24, %c0_25] : memref<1x8x32xf32, #tpu.memory_space<vmem>>, vector<1x8x32xf32>
    %41 = vector.shape_cast %40 : vector<1x8x32xf32> to vector<8x32xf32>
    %42 = arith.truncf %41 : vector<8x32xf32> to vector<8x32xbf16>
    %c0_26 = arith.constant 0 : index
    %c0_27 = arith.constant 0 : index
    %43 = vector.load %arg11[%c0_26, %c0_27] : memref<32x32xbf16, #tpu.memory_space<vmem>>, vector<32x32xbf16>
    %cst_28 = arith.constant dense<0.000000e+00> : vector<8x32xf32>
    %44 = tpu.matmul %42, %43, %cst_28 {dimension_numbers = #tpu.dot_dimension_numbers<[1], [0], [0], [1], [0, 0, 1, 1], [], []>} : vector<8x32xbf16>, vector<32x32xbf16>, vector<8x32xf32> -> vector<8x32xf32>
    %c0_29 = arith.constant 0 : index
    %c0_30 = arith.constant 0 : index
    %45 = vector.load %arg12[%c0_29, %c0_30] : memref<1x32xf32, #tpu.memory_space<vmem>>, vector<1x32xf32>
    %46 = vector.broadcast %45 : vector<1x32xf32> to vector<8x32xf32>
    %47 = arith.addf %44, %46 : vector<8x32xf32>
    %c0_31 = arith.constant 0 : index
    %c0_32 = arith.constant 0 : index
    %48 = vector.load %arg4[%c0_31, %c0_32] : memref<8x8xf32, #tpu.memory_space<vmem>>, vector<8x8xf32>
    %49 = vector.extract_strided_slice %31 {offsets = [0, 0], sizes = [8, 4], strides = [1, 1]} : vector<8x32xf32> to vector<8x4xf32>
    %50 = arith.truncf %49 : vector<8x4xf32> to vector<8x4xbf16>
    %51 = vector.extract_strided_slice %39 {offsets = [0, 0], sizes = [8, 4], strides = [1, 1]} : vector<8x32xf32> to vector<8x4xf32>
    %52 = arith.truncf %51 : vector<8x4xf32> to vector<8x4xbf16>
    %53 = vector.extract_strided_slice %47 {offsets = [0, 0], sizes = [8, 4], strides = [1, 1]} : vector<8x32xf32> to vector<8x4xf32>
    %54 = arith.truncf %53 : vector<8x4xf32> to vector<8x4xbf16>
    %cst_33 = arith.constant dense<0.000000e+00> : vector<8x8xf32>
    %55 = tpu.matmul %50, %52, %cst_33 {dimension_numbers = #tpu.dot_dimension_numbers<[1], [1], [0], [0], [0, 0, 1, 0], [], []>} : vector<8x4xbf16>, vector<8x4xbf16>, vector<8x8xf32> -> vector<8x8xf32>
    %cst_34 = arith.constant 5.000000e-01 : f32
    %56 = vector.broadcast %cst_34 : f32 to vector<8x8xf32>
    %57 = arith.mulf %55, %56 : vector<8x8xf32>
    %58 = arith.addf %57, %48 : vector<8x8xf32>
    %cst_35 = arith.constant dense<0xFF800000> : vector<8xf32>
    %59 = vector.multi_reduction <maximumf>, %58, %cst_35 [1] : vector<8x8xf32> to vector<8xf32>
    %60 = vector.shape_cast %59 : vector<8xf32> to vector<8x1xf32>
    %61 = vector.broadcast %60 : vector<8x1xf32> to vector<8x8xf32>
    %62 = arith.subf %58, %61 : vector<8x8xf32>
    %63 = math.exp %62 : vector<8x8xf32>
    %cst_36 = arith.constant dense<0.000000e+00> : vector<8xf32>
    %64 = vector.multi_reduction <add>, %63, %cst_36 [1] : vector<8x8xf32> to vector<8xf32>
    %65 = vector.shape_cast %64 : vector<8xf32> to vector<8x1xf32>
    %66 = tpu.reciprocal %65 {approx = true} : vector<8x1xf32> -> vector<8x1xf32>
    %67 = vector.broadcast %66 : vector<8x1xf32> to vector<8x8xf32>
    %68 = arith.mulf %63, %67 : vector<8x8xf32>
    %69 = arith.truncf %68 : vector<8x8xf32> to vector<8x8xbf16>
    %cst_37 = arith.constant dense<0.000000e+00> : vector<8x4xf32>
    %70 = tpu.matmul %69, %54, %cst_37 {dimension_numbers = #tpu.dot_dimension_numbers<[1], [0], [0], [1], [0, 0, 1, 1], [], []>} : vector<8x8xbf16>, vector<8x4xbf16>, vector<8x4xf32> -> vector<8x4xf32>
    %c0_38 = arith.constant 0 : index
    %c0_39 = arith.constant 0 : index
    %71 = vector.load %arg16[%c0_38, %c0_39] : memref<8x32xf32, #tpu.memory_space<vmem>>, vector<8x4xf32>
    tpu.vector_store %arg16[%c0_38, %c0_39], %70 {strides = array<i32>} : memref<8x32xf32, #tpu.memory_space<vmem>>, vector<8x4xf32>,
    %72 = vector.extract_strided_slice %31 {offsets = [0, 4], sizes = [8, 4], strides = [1, 1]} : vector<8x32xf32> to vector<8x4xf32>
    %73 = arith.truncf %72 : vector<8x4xf32> to vector<8x4xbf16>
    %74 = vector.extract_strided_slice %39 {offsets = [0, 4], sizes = [8, 4], strides = [1, 1]} : vector<8x32xf32> to vector<8x4xf32>
    %75 = arith.truncf %74 : vector<8x4xf32> to vector<8x4xbf16>
    %76 = vector.extract_strided_slice %47 {offsets = [0, 4], sizes = [8, 4], strides = [1, 1]} : vector<8x32xf32> to vector<8x4xf32>
    %77 = arith.truncf %76 : vector<8x4xf32> to vector<8x4xbf16>
    %cst_40 = arith.constant dense<0.000000e+00> : vector<8x8xf32>
    %78 = tpu.matmul %73, %75, %cst_40 {dimension_numbers = #tpu.dot_dimension_numbers<[1], [1], [0], [0], [0, 0, 1, 0], [], []>} : vector<8x4xbf16>, vector<8x4xbf16>, vector<8x8xf32> -> vector<8x8xf32>
    %cst_41 = arith.constant 5.000000e-01 : f32
    %79 = vector.broadcast %cst_41 : f32 to vector<8x8xf32>
    %80 = arith.mulf %78, %79 : vector<8x8xf32>
    %81 = arith.addf %80, %48 : vector<8x8xf32>
    %cst_42 = arith.constant dense<0xFF800000> : vector<8xf32>
    %82 = vector.multi_reduction <maximumf>, %81, %cst_42 [1] : vector<8x8xf32> to vector<8xf32>
    %83 = vector.shape_cast %82 : vector<8xf32> to vector<8x1xf32>
    %84 = vector.broadcast %83 : vector<8x1xf32> to vector<8x8xf32>
    %85 = arith.subf %81, %84 : vector<8x8xf32>
    %86 = math.exp %85 : vector<8x8xf32>
    %cst_43 = arith.constant dense<0.000000e+00> : vector<8xf32>
    %87 = vector.multi_reduction <add>, %86, %cst_43 [1] : vector<8x8xf32> to vector<8xf32>
    %88 = vector.shape_cast %87 : vector<8xf32> to vector<8x1xf32>
    %89 = tpu.reciprocal %88 {approx = true} : vector<8x1xf32> -> vector<8x1xf32>
    %90 = vector.broadcast %89 : vector<8x1xf32> to vector<8x8xf32>
    %91 = arith.mulf %86, %90 : vector<8x8xf32>
    %92 = arith.truncf %91 : vector<8x8xf32> to vector<8x8xbf16>
    %cst_44 = arith.constant dense<0.000000e+00> : vector<8x4xf32>
    %93 = tpu.matmul %92, %77, %cst_44 {dimension_numbers = #tpu.dot_dimension_numbers<[1], [0], [0], [1], [0, 0, 1, 1], [], []>} : vector<8x8xbf16>, vector<8x4xbf16>, vector<8x4xf32> -> vector<8x4xf32>
    %c0_45 = arith.constant 0 : index
    %c4 = arith.constant 4 : index
    %94 = vector.load %arg16[%c0_45, %c4] : memref<8x32xf32, #tpu.memory_space<vmem>>, vector<8x4xf32>
    tpu.vector_store %arg16[%c0_45, %c4], %93 {strides = array<i32>} : memref<8x32xf32, #tpu.memory_space<vmem>>, vector<8x4xf32>,
    %95 = vector.extract_strided_slice %31 {offsets = [0, 8], sizes = [8, 4], strides = [1, 1]} : vector<8x32xf32> to vector<8x4xf32>
    %96 = arith.truncf %95 : vector<8x4xf32> to vector<8x4xbf16>
    %97 = vector.extract_strided_slice %39 {offsets = [0, 8], sizes = [8, 4], strides = [1, 1]} : vector<8x32xf32> to vector<8x4xf32>
    %98 = arith.truncf %97 : vector<8x4xf32> to vector<8x4xbf16>
    %99 = vector.extract_strided_slice %47 {offsets = [0, 8], sizes = [8, 4], strides = [1, 1]} : vector<8x32xf32> to vector<8x4xf32>
    %100 = arith.truncf %99 : vector<8x4xf32> to vector<8x4xbf16>
    %cst_46 = arith.constant dense<0.000000e+00> : vector<8x8xf32>
    %101 = tpu.matmul %96, %98, %cst_46 {dimension_numbers = #tpu.dot_dimension_numbers<[1], [1], [0], [0], [0, 0, 1, 0], [], []>} : vector<8x4xbf16>, vector<8x4xbf16>, vector<8x8xf32> -> vector<8x8xf32>
    %cst_47 = arith.constant 5.000000e-01 : f32
    %102 = vector.broadcast %cst_47 : f32 to vector<8x8xf32>
    %103 = arith.mulf %101, %102 : vector<8x8xf32>
    %104 = arith.addf %103, %48 : vector<8x8xf32>
    %cst_48 = arith.constant dense<0xFF800000> : vector<8xf32>
    %105 = vector.multi_reduction <maximumf>, %104, %cst_48 [1] : vector<8x8xf32> to vector<8xf32>
    %106 = vector.shape_cast %105 : vector<8xf32> to vector<8x1xf32>
    %107 = vector.broadcast %106 : vector<8x1xf32> to vector<8x8xf32>
    %108 = arith.subf %104, %107 : vector<8x8xf32>
    %109 = math.exp %108 : vector<8x8xf32>
    %cst_49 = arith.constant dense<0.000000e+00> : vector<8xf32>
    %110 = vector.multi_reduction <add>, %109, %cst_49 [1] : vector<8x8xf32> to vector<8xf32>
    %111 = vector.shape_cast %110 : vector<8xf32> to vector<8x1xf32>
    %112 = tpu.reciprocal %111 {approx = true} : vector<8x1xf32> -> vector<8x1xf32>
    %113 = vector.broadcast %112 : vector<8x1xf32> to vector<8x8xf32>
    %114 = arith.mulf %109, %113 : vector<8x8xf32>
    %115 = arith.truncf %114 : vector<8x8xf32> to vector<8x8xbf16>
    %cst_50 = arith.constant dense<0.000000e+00> : vector<8x4xf32>
    %116 = tpu.matmul %115, %100, %cst_50 {dimension_numbers = #tpu.dot_dimension_numbers<[1], [0], [0], [1], [0, 0, 1, 1], [], []>} : vector<8x8xbf16>, vector<8x4xbf16>, vector<8x4xf32> -> vector<8x4xf32>
    %c0_51 = arith.constant 0 : index
    %c8 = arith.constant 8 : index
    %117 = vector.load %arg16[%c0_51, %c8] : memref<8x32xf32, #tpu.memory_space<vmem>>, vector<8x4xf32>
    tpu.vector_store %arg16[%c0_51, %c8], %116 {strides = array<i32>} : memref<8x32xf32, #tpu.memory_space<vmem>>, vector<8x4xf32>,
    %118 = vector.extract_strided_slice %31 {offsets = [0, 12], sizes = [8, 4], strides = [1, 1]} : vector<8x32xf32> to vector<8x4xf32>
    %119 = arith.truncf %118 : vector<8x4xf32> to vector<8x4xbf16>
    %120 = vector.extract_strided_slice %39 {offsets = [0, 12], sizes = [8, 4], strides = [1, 1]} : vector<8x32xf32> to vector<8x4xf32>
    %121 = arith.truncf %120 : vector<8x4xf32> to vector<8x4xbf16>
    %122 = vector.extract_strided_slice %47 {offsets = [0, 12], sizes = [8, 4], strides = [1, 1]} : vector<8x32xf32> to vector<8x4xf32>
    %123 = arith.truncf %122 : vector<8x4xf32> to vector<8x4xbf16>
    %cst_52 = arith.constant dense<0.000000e+00> : vector<8x8xf32>
    %124 = tpu.matmul %119, %121, %cst_52 {dimension_numbers = #tpu.dot_dimension_numbers<[1], [1], [0], [0], [0, 0, 1, 0], [], []>} : vector<8x4xbf16>, vector<8x4xbf16>, vector<8x8xf32> -> vector<8x8xf32>
    %cst_53 = arith.constant 5.000000e-01 : f32
    %125 = vector.broadcast %cst_53 : f32 to vector<8x8xf32>
    %126 = arith.mulf %124, %125 : vector<8x8xf32>
    %127 = arith.addf %126, %48 : vector<8x8xf32>
    %cst_54 = arith.constant dense<0xFF800000> : vector<8xf32>
    %128 = vector.multi_reduction <maximumf>, %127, %cst_54 [1] : vector<8x8xf32> to vector<8xf32>
    %129 = vector.shape_cast %128 : vector<8xf32> to vector<8x1xf32>
    %130 = vector.broadcast %129 : vector<8x1xf32> to vector<8x8xf32>
    %131 = arith.subf %127, %130 : vector<8x8xf32>
    %132 = math.exp %131 : vector<8x8xf32>
    %cst_55 = arith.constant dense<0.000000e+00> : vector<8xf32>
    %133 = vector.multi_reduction <add>, %132, %cst_55 [1] : vector<8x8xf32> to vector<8xf32>
    %134 = vector.shape_cast %133 : vector<8xf32> to vector<8x1xf32>
    %135 = tpu.reciprocal %134 {approx = true} : vector<8x1xf32> -> vector<8x1xf32>
    %136 = vector.broadcast %135 : vector<8x1xf32> to vector<8x8xf32>
    %137 = arith.mulf %132, %136 : vector<8x8xf32>
    %138 = arith.truncf %137 : vector<8x8xf32> to vector<8x8xbf16>
    %cst_56 = arith.constant dense<0.000000e+00> : vector<8x4xf32>
    %139 = tpu.matmul %138, %123, %cst_56 {dimension_numbers = #tpu.dot_dimension_numbers<[1], [0], [0], [1], [0, 0, 1, 1], [], []>} : vector<8x8xbf16>, vector<8x4xbf16>, vector<8x4xf32> -> vector<8x4xf32>
    %c0_57 = arith.constant 0 : index
    %c12 = arith.constant 12 : index
    %140 = vector.load %arg16[%c0_57, %c12] : memref<8x32xf32, #tpu.memory_space<vmem>>, vector<8x4xf32>
    tpu.vector_store %arg16[%c0_57, %c12], %139 {strides = array<i32>} : memref<8x32xf32, #tpu.memory_space<vmem>>, vector<8x4xf32>,
    %141 = vector.extract_strided_slice %31 {offsets = [0, 16], sizes = [8, 4], strides = [1, 1]} : vector<8x32xf32> to vector<8x4xf32>
    %142 = arith.truncf %141 : vector<8x4xf32> to vector<8x4xbf16>
    %143 = vector.extract_strided_slice %39 {offsets = [0, 16], sizes = [8, 4], strides = [1, 1]} : vector<8x32xf32> to vector<8x4xf32>
    %144 = arith.truncf %143 : vector<8x4xf32> to vector<8x4xbf16>
    %145 = vector.extract_strided_slice %47 {offsets = [0, 16], sizes = [8, 4], strides = [1, 1]} : vector<8x32xf32> to vector<8x4xf32>
    %146 = arith.truncf %145 : vector<8x4xf32> to vector<8x4xbf16>
    %cst_58 = arith.constant dense<0.000000e+00> : vector<8x8xf32>
    %147 = tpu.matmul %142, %144, %cst_58 {dimension_numbers = #tpu.dot_dimension_numbers<[1], [1], [0], [0], [0, 0, 1, 0], [], []>} : vector<8x4xbf16>, vector<8x4xbf16>, vector<8x8xf32> -> vector<8x8xf32>
    %cst_59 = arith.constant 5.000000e-01 : f32
    %148 = vector.broadcast %cst_59 : f32 to vector<8x8xf32>
    %149 = arith.mulf %147, %148 : vector<8x8xf32>
    %150 = arith.addf %149, %48 : vector<8x8xf32>
    %cst_60 = arith.constant dense<0xFF800000> : vector<8xf32>
    %151 = vector.multi_reduction <maximumf>, %150, %cst_60 [1] : vector<8x8xf32> to vector<8xf32>
    %152 = vector.shape_cast %151 : vector<8xf32> to vector<8x1xf32>
    %153 = vector.broadcast %152 : vector<8x1xf32> to vector<8x8xf32>
    %154 = arith.subf %150, %153 : vector<8x8xf32>
    %155 = math.exp %154 : vector<8x8xf32>
    %cst_61 = arith.constant dense<0.000000e+00> : vector<8xf32>
    %156 = vector.multi_reduction <add>, %155, %cst_61 [1] : vector<8x8xf32> to vector<8xf32>
    %157 = vector.shape_cast %156 : vector<8xf32> to vector<8x1xf32>
    %158 = tpu.reciprocal %157 {approx = true} : vector<8x1xf32> -> vector<8x1xf32>
    %159 = vector.broadcast %158 : vector<8x1xf32> to vector<8x8xf32>
    %160 = arith.mulf %155, %159 : vector<8x8xf32>
    %161 = arith.truncf %160 : vector<8x8xf32> to vector<8x8xbf16>
    %cst_62 = arith.constant dense<0.000000e+00> : vector<8x4xf32>
    %162 = tpu.matmul %161, %146, %cst_62 {dimension_numbers = #tpu.dot_dimension_numbers<[1], [0], [0], [1], [0, 0, 1, 1], [], []>} : vector<8x8xbf16>, vector<8x4xbf16>, vector<8x4xf32> -> vector<8x4xf32>
    %c0_63 = arith.constant 0 : index
    %c16 = arith.constant 16 : index
    %163 = vector.load %arg16[%c0_63, %c16] : memref<8x32xf32, #tpu.memory_space<vmem>>, vector<8x4xf32>
    tpu.vector_store %arg16[%c0_63, %c16], %162 {strides = array<i32>} : memref<8x32xf32, #tpu.memory_space<vmem>>, vector<8x4xf32>,
    %164 = vector.extract_strided_slice %31 {offsets = [0, 20], sizes = [8, 4], strides = [1, 1]} : vector<8x32xf32> to vector<8x4xf32>
    %165 = arith.truncf %164 : vector<8x4xf32> to vector<8x4xbf16>
    %166 = vector.extract_strided_slice %39 {offsets = [0, 20], sizes = [8, 4], strides = [1, 1]} : vector<8x32xf32> to vector<8x4xf32>
    %167 = arith.truncf %166 : vector<8x4xf32> to vector<8x4xbf16>
    %168 = vector.extract_strided_slice %47 {offsets = [0, 20], sizes = [8, 4], strides = [1, 1]} : vector<8x32xf32> to vector<8x4xf32>
    %169 = arith.truncf %168 : vector<8x4xf32> to vector<8x4xbf16>
    %cst_64 = arith.constant dense<0.000000e+00> : vector<8x8xf32>
    %170 = tpu.matmul %165, %167, %cst_64 {dimension_numbers = #tpu.dot_dimension_numbers<[1], [1], [0], [0], [0, 0, 1, 0], [], []>} : vector<8x4xbf16>, vector<8x4xbf16>, vector<8x8xf32> -> vector<8x8xf32>
    %cst_65 = arith.constant 5.000000e-01 : f32
    %171 = vector.broadcast %cst_65 : f32 to vector<8x8xf32>
    %172 = arith.mulf %170, %171 : vector<8x8xf32>
    %173 = arith.addf %172, %48 : vector<8x8xf32>
    %cst_66 = arith.constant dense<0xFF800000> : vector<8xf32>
    %174 = vector.multi_reduction <maximumf>, %173, %cst_66 [1] : vector<8x8xf32> to vector<8xf32>
    %175 = vector.shape_cast %174 : vector<8xf32> to vector<8x1xf32>
    %176 = vector.broadcast %175 : vector<8x1xf32> to vector<8x8xf32>
    %177 = arith.subf %173, %176 : vector<8x8xf32>
    %178 = math.exp %177 : vector<8x8xf32>
    %cst_67 = arith.constant dense<0.000000e+00> : vector<8xf32>
    %179 = vector.multi_reduction <add>, %178, %cst_67 [1] : vector<8x8xf32> to vector<8xf32>
    %180 = vector.shape_cast %179 : vector<8xf32> to vector<8x1xf32>
    %181 = tpu.reciprocal %180 {approx = true} : vector<8x1xf32> -> vector<8x1xf32>
    %182 = vector.broadcast %181 : vector<8x1xf32> to vector<8x8xf32>
    %183 = arith.mulf %178, %182 : vector<8x8xf32>
    %184 = arith.truncf %183 : vector<8x8xf32> to vector<8x8xbf16>
    %cst_68 = arith.constant dense<0.000000e+00> : vector<8x4xf32>
    %185 = tpu.matmul %184, %169, %cst_68 {dimension_numbers = #tpu.dot_dimension_numbers<[1], [0], [0], [1], [0, 0, 1, 1], [], []>} : vector<8x8xbf16>, vector<8x4xbf16>, vector<8x4xf32> -> vector<8x4xf32>
    %c0_69 = arith.constant 0 : index
    %c20 = arith.constant 20 : index
    %186 = vector.load %arg16[%c0_69, %c20] : memref<8x32xf32, #tpu.memory_space<vmem>>, vector<8x4xf32>
    tpu.vector_store %arg16[%c0_69, %c20], %185 {strides = array<i32>} : memref<8x32xf32, #tpu.memory_space<vmem>>, vector<8x4xf32>,
    %187 = vector.extract_strided_slice %31 {offsets = [0, 24], sizes = [8, 4], strides = [1, 1]} : vector<8x32xf32> to vector<8x4xf32>
    %188 = arith.truncf %187 : vector<8x4xf32> to vector<8x4xbf16>
    %189 = vector.extract_strided_slice %39 {offsets = [0, 24], sizes = [8, 4], strides = [1, 1]} : vector<8x32xf32> to vector<8x4xf32>
    %190 = arith.truncf %189 : vector<8x4xf32> to vector<8x4xbf16>
    %191 = vector.extract_strided_slice %47 {offsets = [0, 24], sizes = [8, 4], strides = [1, 1]} : vector<8x32xf32> to vector<8x4xf32>
    %192 = arith.truncf %191 : vector<8x4xf32> to vector<8x4xbf16>
    %cst_70 = arith.constant dense<0.000000e+00> : vector<8x8xf32>
    %193 = tpu.matmul %188, %190, %cst_70 {dimension_numbers = #tpu.dot_dimension_numbers<[1], [1], [0], [0], [0, 0, 1, 0], [], []>} : vector<8x4xbf16>, vector<8x4xbf16>, vector<8x8xf32> -> vector<8x8xf32>
    %cst_71 = arith.constant 5.000000e-01 : f32
    %194 = vector.broadcast %cst_71 : f32 to vector<8x8xf32>
    %195 = arith.mulf %193, %194 : vector<8x8xf32>
    %196 = arith.addf %195, %48 : vector<8x8xf32>
    %cst_72 = arith.constant dense<0xFF800000> : vector<8xf32>
    %197 = vector.multi_reduction <maximumf>, %196, %cst_72 [1] : vector<8x8xf32> to vector<8xf32>
    %198 = vector.shape_cast %197 : vector<8xf32> to vector<8x1xf32>
    %199 = vector.broadcast %198 : vector<8x1xf32> to vector<8x8xf32>
    %200 = arith.subf %196, %199 : vector<8x8xf32>
    %201 = math.exp %200 : vector<8x8xf32>
    %cst_73 = arith.constant dense<0.000000e+00> : vector<8xf32>
    %202 = vector.multi_reduction <add>, %201, %cst_73 [1] : vector<8x8xf32> to vector<8xf32>
    %203 = vector.shape_cast %202 : vector<8xf32> to vector<8x1xf32>
    %204 = tpu.reciprocal %203 {approx = true} : vector<8x1xf32> -> vector<8x1xf32>
    %205 = vector.broadcast %204 : vector<8x1xf32> to vector<8x8xf32>
    %206 = arith.mulf %201, %205 : vector<8x8xf32>
    %207 = arith.truncf %206 : vector<8x8xf32> to vector<8x8xbf16>
    %cst_74 = arith.constant dense<0.000000e+00> : vector<8x4xf32>
    %208 = tpu.matmul %207, %192, %cst_74 {dimension_numbers = #tpu.dot_dimension_numbers<[1], [0], [0], [1], [0, 0, 1, 1], [], []>} : vector<8x8xbf16>, vector<8x4xbf16>, vector<8x4xf32> -> vector<8x4xf32>
    %c0_75 = arith.constant 0 : index
    %c24 = arith.constant 24 : index
    %209 = vector.load %arg16[%c0_75, %c24] : memref<8x32xf32, #tpu.memory_space<vmem>>, vector<8x4xf32>
    tpu.vector_store %arg16[%c0_75, %c24], %208 {strides = array<i32>} : memref<8x32xf32, #tpu.memory_space<vmem>>, vector<8x4xf32>,
    %210 = vector.extract_strided_slice %31 {offsets = [0, 28], sizes = [8, 4], strides = [1, 1]} : vector<8x32xf32> to vector<8x4xf32>
    %211 = arith.truncf %210 : vector<8x4xf32> to vector<8x4xbf16>
    %212 = vector.extract_strided_slice %39 {offsets = [0, 28], sizes = [8, 4], strides = [1, 1]} : vector<8x32xf32> to vector<8x4xf32>
    %213 = arith.truncf %212 : vector<8x4xf32> to vector<8x4xbf16>
    %214 = vector.extract_strided_slice %47 {offsets = [0, 28], sizes = [8, 4], strides = [1, 1]} : vector<8x32xf32> to vector<8x4xf32>
    %215 = arith.truncf %214 : vector<8x4xf32> to vector<8x4xbf16>
    %cst_76 = arith.constant dense<0.000000e+00> : vector<8x8xf32>
    %216 = tpu.matmul %211, %213, %cst_76 {dimension_numbers = #tpu.dot_dimension_numbers<[1], [1], [0], [0], [0, 0, 1, 0], [], []>} : vector<8x4xbf16>, vector<8x4xbf16>, vector<8x8xf32> -> vector<8x8xf32>
    %cst_77 = arith.constant 5.000000e-01 : f32
    %217 = vector.broadcast %cst_77 : f32 to vector<8x8xf32>
    %218 = arith.mulf %216, %217 : vector<8x8xf32>
    %219 = arith.addf %218, %48 : vector<8x8xf32>
    %cst_78 = arith.constant dense<0xFF800000> : vector<8xf32>
    %220 = vector.multi_reduction <maximumf>, %219, %cst_78 [1] : vector<8x8xf32> to vector<8xf32>
    %221 = vector.shape_cast %220 : vector<8xf32> to vector<8x1xf32>
    %222 = vector.broadcast %221 : vector<8x1xf32> to vector<8x8xf32>
    %223 = arith.subf %219, %222 : vector<8x8xf32>
    %224 = math.exp %223 : vector<8x8xf32>
    %cst_79 = arith.constant dense<0.000000e+00> : vector<8xf32>
    %225 = vector.multi_reduction <add>, %224, %cst_79 [1] : vector<8x8xf32> to vector<8xf32>
    %226 = vector.shape_cast %225 : vector<8xf32> to vector<8x1xf32>
    %227 = tpu.reciprocal %226 {approx = true} : vector<8x1xf32> -> vector<8x1xf32>
    %228 = vector.broadcast %227 : vector<8x1xf32> to vector<8x8xf32>
    %229 = arith.mulf %224, %228 : vector<8x8xf32>
    %230 = arith.truncf %229 : vector<8x8xf32> to vector<8x8xbf16>
    %cst_80 = arith.constant dense<0.000000e+00> : vector<8x4xf32>
    %231 = tpu.matmul %230, %215, %cst_80 {dimension_numbers = #tpu.dot_dimension_numbers<[1], [0], [0], [1], [0, 0, 1, 1], [], []>} : vector<8x8xbf16>, vector<8x4xbf16>, vector<8x4xf32> -> vector<8x4xf32>
    %c0_81 = arith.constant 0 : index
    %c28 = arith.constant 28 : index
    %232 = vector.load %arg16[%c0_81, %c28] : memref<8x32xf32, #tpu.memory_space<vmem>>, vector<8x4xf32>
    tpu.vector_store %arg16[%c0_81, %c28], %231 {strides = array<i32>} : memref<8x32xf32, #tpu.memory_space<vmem>>, vector<8x4xf32>,
    %c0_82 = arith.constant 0 : index
    %c0_83 = arith.constant 0 : index
    %233 = vector.load %arg16[%c0_82, %c0_83] : memref<8x32xf32, #tpu.memory_space<vmem>>, vector<8x32xf32>
    %234 = arith.truncf %233 : vector<8x32xf32> to vector<8x32xbf16>
    %c0_84 = arith.constant 0 : index
    %c0_85 = arith.constant 0 : index
    %235 = vector.load %arg13[%c0_84, %c0_85] : memref<32x32xbf16, #tpu.memory_space<vmem>>, vector<32x32xbf16>
    %cst_86 = arith.constant dense<0.000000e+00> : vector<8x32xf32>
    %236 = tpu.matmul %234, %235, %cst_86 {dimension_numbers = #tpu.dot_dimension_numbers<[1], [0], [0], [1], [0, 0, 1, 1], [], []>} : vector<8x32xbf16>, vector<32x32xbf16>, vector<8x32xf32> -> vector<8x32xf32>
    %c0_87 = arith.constant 0 : index
    %c0_88 = arith.constant 0 : index
    %237 = vector.load %arg14[%c0_87, %c0_88] : memref<1x32xf32, #tpu.memory_space<vmem>>, vector<1x32xf32>
    %238 = vector.broadcast %237 : vector<1x32xf32> to vector<8x32xf32>
    %239 = arith.addf %236, %238 : vector<8x32xf32>
    %240 = arith.addf %239, %1 : vector<8x32xf32>
    %c0_89 = arith.constant 0 : index
    %c0_90 = arith.constant 0 : index
    %c0_91 = arith.constant 0 : index
    %241 = vector.load %arg15[%c0_89, %c0_90, %c0_91] : memref<1x8x32xf32, #tpu.memory_space<vmem>>, vector<1x8x32xf32>
    %242 = vector.shape_cast %241 : vector<1x8x32xf32> to vector<8x32xf32>
    %243 = vector.shape_cast %240 : vector<8x32xf32> to vector<1x8x32xf32>
    tpu.vector_store %arg15[%c0_89, %c0_90, %c0_91], %243 {strides = array<i32>} : memref<1x8x32xf32, #tpu.memory_space<vmem>>, vector<1x8x32xf32>,
    return
  }
  func.func @transform_0(%arg0: i32) -> (i32, i32, i32) {
    %c0_i32 = arith.constant 0 : i32
    %c0_i32_0 = arith.constant 0 : i32
    %c0_i32_1 = arith.constant 0 : i32
    return %arg0, %c0_i32, %c0_i32_0 : i32, i32, i32
  }
  func.func @transform_1(%arg0: i32) -> (i32, i32, i32) {
    %c0_i32 = arith.constant 0 : i32
    %c0_i32_0 = arith.constant 0 : i32
    %c0_i32_1 = arith.constant 0 : i32
    return %arg0, %c0_i32, %c0_i32_0 : i32, i32, i32
  }
  func.func @transform_2(%arg0: i32) -> (i32, i32, i32) {
    %c0_i32 = arith.constant 0 : i32
    %c0_i32_0 = arith.constant 0 : i32
    %c0_i32_1 = arith.constant 0 : i32
    return %arg0, %c0_i32, %c0_i32_0 : i32, i32, i32
  }
  func.func @transform_3(%arg0: i32) -> (i32, i32) {
    %c0_i32 = arith.constant 0 : i32
    %c0_i32_0 = arith.constant 0 : i32
    %c0_i32_1 = arith.constant 0 : i32
    return %c0_i32, %c0_i32_0 : i32, i32
  }
  func.func @transform_4(%arg0: i32) -> (i32, i32) {
    %c0_i32 = arith.constant 0 : i32
    %c0_i32_0 = arith.constant 0 : i32
    %c0_i32_1 = arith.constant 0 : i32
    return %c0_i32, %c0_i32_0 : i32, i32
  }
  func.func @transform_5(%arg0: i32) -> (i32, i32) {
    %c0_i32 = arith.constant 0 : i32
    %c0_i32_0 = arith.constant 0 : i32
    %c0_i32_1 = arith.constant 0 : i32
    return %c0_i32, %c0_i32_0 : i32, i32
  }
  func.func @transform_6(%arg0: i32) -> (i32, i32) {
    %c0_i32 = arith.constant 0 : i32
    %c0_i32_0 = arith.constant 0 : i32
    %c0_i32_1 = arith.constant 0 : i32
    return %c0_i32, %c0_i32_0 : i32, i32
  }
  func.func @transform_7(%arg0: i32) -> (i32, i32) {
    %c0_i32 = arith.constant 0 : i32
    %c0_i32_0 = arith.constant 0 : i32
    %c0_i32_1 = arith.constant 0 : i32
    return %c0_i32, %c0_i32_0 : i32, i32
  }
  func.func @transform_8(%arg0: i32) -> (i32, i32) {
    %c0_i32 = arith.constant 0 : i32
    %c0_i32_0 = arith.constant 0 : i32
    %c0_i32_1 = arith.constant 0 : i32
    return %c0_i32, %c0_i32_0 : i32, i32
  }
  func.func @transform_9(%arg0: i32) -> (i32, i32) {
    %c0_i32 = arith.constant 0 : i32
    %c0_i32_0 = arith.constant 0 : i32
    %c0_i32_1 = arith.constant 0 : i32
    return %c0_i32, %c0_i32_0 : i32, i32
  }
  func.func @transform_10(%arg0: i32) -> (i32, i32) {
    %c0_i32 = arith.constant 0 : i32
    %c0_i32_0 = arith.constant 0 : i32
    %c0_i32_1 = arith.constant 0 : i32
    return %c0_i32, %c0_i32_0 : i32, i32
  }
  func.func @transform_11(%arg0: i32) -> (i32, i32) {
    %c0_i32 = arith.constant 0 : i32
    %c0_i32_0 = arith.constant 0 : i32
    %c0_i32_1 = arith.constant 0 : i32
    return %c0_i32, %c0_i32_0 : i32, i32
  }
  func.func @transform_12(%arg0: i32) -> (i32, i32) {
    %c0_i32 = arith.constant 0 : i32
    %c0_i32_0 = arith.constant 0 : i32
    %c0_i32_1 = arith.constant 0 : i32
    return %c0_i32, %c0_i32_0 : i32, i32
  }
  func.func @transform_13(%arg0: i32) -> (i32, i32) {
    %c0_i32 = arith.constant 0 : i32
    %c0_i32_0 = arith.constant 0 : i32
    %c0_i32_1 = arith.constant 0 : i32
    return %c0_i32, %c0_i32_0 : i32, i32
  }
  func.func @transform_14(%arg0: i32) -> (i32, i32, i32) {
    %c0_i32 = arith.constant 0 : i32
    %c0_i32_0 = arith.constant 0 : i32
    %c0_i32_1 = arith.constant 0 : i32
    return %arg0, %c0_i32, %c0_i32_0 : i32, i32, i32
  }
}

module attributes {stable_mosaic.version = 11 : i64} {
  func.func @_self_attn_block_kernel(%arg0: i32, %arg1: memref<1x8x32xf32, #tpu.memory_space<vmem>>, %arg2: memref<8x8xf32, #tpu.memory_space<vmem>>, %arg3: memref<1x32xf32, #tpu.memory_space<vmem>>, %arg4: memref<1x32xf32, #tpu.memory_space<vmem>>, %arg5: memref<32x96xbf16, #tpu.memory_space<vmem>>, %arg6: memref<1x96xf32, #tpu.memory_space<vmem>>, %arg7: memref<32x32xbf16, #tpu.memory_space<vmem>>, %arg8: memref<1x32xf32, #tpu.memory_space<vmem>>, %arg9: memref<1x8x32xf32, #tpu.memory_space<vmem>>, %arg10: memref<8x32xf32, #tpu.memory_space<vmem>>) attributes {dimension_semantics = [#tpu.dimension_semantics<parallel>], iteration_bounds = array<i64: 2>, scalar_prefetch = 0 : i64, scratch_operands = 1 : i64, tpu.core_type = #tpu.core_type<tc>, window_params = [{transform_indices = @transform_0, window_bounds = array<i64: 1, 8, 32>}, {pipeline_mode = #tpu.pipeline_mode<synchronous>, transform_indices = @transform_1, window_bounds = array<i64: 8, 8>}, {pipeline_mode = #tpu.pipeline_mode<synchronous>, transform_indices = @transform_2, window_bounds = array<i64: 1, 32>}, {pipeline_mode = #tpu.pipeline_mode<synchronous>, transform_indices = @transform_3, window_bounds = array<i64: 1, 32>}, {pipeline_mode = #tpu.pipeline_mode<synchronous>, transform_indices = @transform_4, window_bounds = array<i64: 32, 96>}, {pipeline_mode = #tpu.pipeline_mode<synchronous>, transform_indices = @transform_5, window_bounds = array<i64: 1, 96>}, {pipeline_mode = #tpu.pipeline_mode<synchronous>, transform_indices = @transform_6, window_bounds = array<i64: 32, 32>}, {pipeline_mode = #tpu.pipeline_mode<synchronous>, transform_indices = @transform_7, window_bounds = array<i64: 1, 32>}, {transform_indices = @transform_8, window_bounds = array<i64: 1, 8, 32>}]} {
    %c0 = arith.constant 0 : index
    %c0_0 = arith.constant 0 : index
    %c0_1 = arith.constant 0 : index
    %0 = vector.load %arg1[%c0, %c0_0, %c0_1] : memref<1x8x32xf32, #tpu.memory_space<vmem>>, vector<1x8x32xf32>
    %1 = vector.shape_cast %0 : vector<1x8x32xf32> to vector<8x32xf32>
    %c0_2 = arith.constant 0 : index
    %c0_3 = arith.constant 0 : index
    %2 = vector.load %arg3[%c0_2, %c0_3] : memref<1x32xf32, #tpu.memory_space<vmem>>, vector<1x32xf32>
    %c0_4 = arith.constant 0 : index
    %c0_5 = arith.constant 0 : index
    %3 = vector.load %arg4[%c0_4, %c0_5] : memref<1x32xf32, #tpu.memory_space<vmem>>, vector<1x32xf32>
    %cst = arith.constant dense<0.000000e+00> : vector<8xf32>
    %4 = vector.multi_reduction <add>, %1, %cst [1] : vector<8x32xf32> to vector<8xf32>
    %5 = vector.shape_cast %4 : vector<8xf32> to vector<8x1xf32>
    %cst_6 = arith.constant 3.200000e+01 : f32
    %6 = vector.broadcast %cst_6 : f32 to vector<8x1xf32>
    %7 = arith.divf %5, %6 : vector<8x1xf32>
    %8 = vector.broadcast %7 : vector<8x1xf32> to vector<8x32xf32>
    %9 = arith.subf %1, %8 : vector<8x32xf32>
    %10 = arith.mulf %9, %9 : vector<8x32xf32>
    %cst_7 = arith.constant dense<0.000000e+00> : vector<8xf32>
    %11 = vector.multi_reduction <add>, %10, %cst_7 [1] : vector<8x32xf32> to vector<8xf32>
    %12 = vector.shape_cast %11 : vector<8xf32> to vector<8x1xf32>
    %cst_8 = arith.constant 3.200000e+01 : f32
    %13 = vector.broadcast %cst_8 : f32 to vector<8x1xf32>
    %14 = arith.divf %12, %13 : vector<8x1xf32>
    %15 = vector.broadcast %7 : vector<8x1xf32> to vector<8x32xf32>
    %16 = arith.subf %1, %15 : vector<8x32xf32>
    %cst_9 = arith.constant 9.99999997E-7 : f32
    %17 = vector.broadcast %cst_9 : f32 to vector<8x1xf32>
    %18 = arith.addf %14, %17 : vector<8x1xf32>
    %19 = math.rsqrt %18 : vector<8x1xf32>
    %20 = vector.broadcast %19 : vector<8x1xf32> to vector<8x32xf32>
    %21 = arith.mulf %16, %20 : vector<8x32xf32>
    %22 = vector.broadcast %2 : vector<1x32xf32> to vector<8x32xf32>
    %23 = arith.mulf %21, %22 : vector<8x32xf32>
    %24 = vector.broadcast %3 : vector<1x32xf32> to vector<8x32xf32>
    %25 = arith.addf %23, %24 : vector<8x32xf32>
    %26 = arith.truncf %25 : vector<8x32xf32> to vector<8x32xbf16>
    %c0_10 = arith.constant 0 : index
    %c0_11 = arith.constant 0 : index
    %27 = vector.load %arg5[%c0_10, %c0_11] : memref<32x96xbf16, #tpu.memory_space<vmem>>, vector<32x96xbf16>
    %cst_12 = arith.constant dense<0.000000e+00> : vector<8x96xf32>
    %28 = tpu.matmul %26, %27, %cst_12 {dimension_numbers = #tpu.dot_dimension_numbers<[1], [0], [0], [1], [0, 0, 1, 1], [], []>} : vector<8x32xbf16>, vector<32x96xbf16>, vector<8x96xf32> -> vector<8x96xf32>
    %c0_13 = arith.constant 0 : index
    %c0_14 = arith.constant 0 : index
    %29 = vector.load %arg6[%c0_13, %c0_14] : memref<1x96xf32, #tpu.memory_space<vmem>>, vector<1x96xf32>
    %30 = vector.broadcast %29 : vector<1x96xf32> to vector<8x96xf32>
    %31 = arith.addf %28, %30 : vector<8x96xf32>
    %32 = vector.extract_strided_slice %31 {offsets = [0, 0], sizes = [8, 32], strides = [1, 1]} : vector<8x96xf32> to vector<8x32xf32>
    %33 = vector.extract_strided_slice %31 {offsets = [0, 32], sizes = [8, 32], strides = [1, 1]} : vector<8x96xf32> to vector<8x32xf32>
    %34 = vector.extract_strided_slice %31 {offsets = [0, 64], sizes = [8, 32], strides = [1, 1]} : vector<8x96xf32> to vector<8x32xf32>
    %c0_15 = arith.constant 0 : index
    %c0_16 = arith.constant 0 : index
    %35 = vector.load %arg2[%c0_15, %c0_16] : memref<8x8xf32, #tpu.memory_space<vmem>>, vector<8x8xf32>
    %36 = vector.extract_strided_slice %32 {offsets = [0, 0], sizes = [8, 4], strides = [1, 1]} : vector<8x32xf32> to vector<8x4xf32>
    %37 = arith.truncf %36 : vector<8x4xf32> to vector<8x4xbf16>
    %38 = vector.extract_strided_slice %33 {offsets = [0, 0], sizes = [8, 4], strides = [1, 1]} : vector<8x32xf32> to vector<8x4xf32>
    %39 = arith.truncf %38 : vector<8x4xf32> to vector<8x4xbf16>
    %40 = vector.extract_strided_slice %34 {offsets = [0, 0], sizes = [8, 4], strides = [1, 1]} : vector<8x32xf32> to vector<8x4xf32>
    %41 = arith.truncf %40 : vector<8x4xf32> to vector<8x4xbf16>
    %cst_17 = arith.constant dense<0.000000e+00> : vector<8x8xf32>
    %42 = tpu.matmul %37, %39, %cst_17 {dimension_numbers = #tpu.dot_dimension_numbers<[1], [1], [0], [0], [0, 0, 1, 0], [], []>} : vector<8x4xbf16>, vector<8x4xbf16>, vector<8x8xf32> -> vector<8x8xf32>
    %cst_18 = arith.constant 5.000000e-01 : f32
    %43 = vector.broadcast %cst_18 : f32 to vector<8x8xf32>
    %44 = arith.mulf %42, %43 : vector<8x8xf32>
    %45 = arith.addf %44, %35 : vector<8x8xf32>
    %cst_19 = arith.constant dense<0xFF800000> : vector<8xf32>
    %46 = vector.multi_reduction <maximumf>, %45, %cst_19 [1] : vector<8x8xf32> to vector<8xf32>
    %47 = vector.shape_cast %46 : vector<8xf32> to vector<8x1xf32>
    %48 = vector.broadcast %47 : vector<8x1xf32> to vector<8x8xf32>
    %49 = arith.subf %45, %48 : vector<8x8xf32>
    %50 = math.exp %49 : vector<8x8xf32>
    %cst_20 = arith.constant dense<0.000000e+00> : vector<8xf32>
    %51 = vector.multi_reduction <add>, %50, %cst_20 [1] : vector<8x8xf32> to vector<8xf32>
    %52 = vector.shape_cast %51 : vector<8xf32> to vector<8x1xf32>
    %53 = tpu.reciprocal %52 {approx = true} : vector<8x1xf32> -> vector<8x1xf32>
    %54 = vector.broadcast %53 : vector<8x1xf32> to vector<8x8xf32>
    %55 = arith.mulf %50, %54 : vector<8x8xf32>
    %56 = arith.truncf %55 : vector<8x8xf32> to vector<8x8xbf16>
    %cst_21 = arith.constant dense<0.000000e+00> : vector<8x4xf32>
    %57 = tpu.matmul %56, %41, %cst_21 {dimension_numbers = #tpu.dot_dimension_numbers<[1], [0], [0], [1], [0, 0, 1, 1], [], []>} : vector<8x8xbf16>, vector<8x4xbf16>, vector<8x4xf32> -> vector<8x4xf32>
    %c0_22 = arith.constant 0 : index
    %c0_23 = arith.constant 0 : index
    %58 = vector.load %arg10[%c0_22, %c0_23] : memref<8x32xf32, #tpu.memory_space<vmem>>, vector<8x4xf32>
    tpu.vector_store %arg10[%c0_22, %c0_23], %57 {strides = array<i32>} : memref<8x32xf32, #tpu.memory_space<vmem>>, vector<8x4xf32>,
    %59 = vector.extract_strided_slice %32 {offsets = [0, 4], sizes = [8, 4], strides = [1, 1]} : vector<8x32xf32> to vector<8x4xf32>
    %60 = arith.truncf %59 : vector<8x4xf32> to vector<8x4xbf16>
    %61 = vector.extract_strided_slice %33 {offsets = [0, 4], sizes = [8, 4], strides = [1, 1]} : vector<8x32xf32> to vector<8x4xf32>
    %62 = arith.truncf %61 : vector<8x4xf32> to vector<8x4xbf16>
    %63 = vector.extract_strided_slice %34 {offsets = [0, 4], sizes = [8, 4], strides = [1, 1]} : vector<8x32xf32> to vector<8x4xf32>
    %64 = arith.truncf %63 : vector<8x4xf32> to vector<8x4xbf16>
    %cst_24 = arith.constant dense<0.000000e+00> : vector<8x8xf32>
    %65 = tpu.matmul %60, %62, %cst_24 {dimension_numbers = #tpu.dot_dimension_numbers<[1], [1], [0], [0], [0, 0, 1, 0], [], []>} : vector<8x4xbf16>, vector<8x4xbf16>, vector<8x8xf32> -> vector<8x8xf32>
    %cst_25 = arith.constant 5.000000e-01 : f32
    %66 = vector.broadcast %cst_25 : f32 to vector<8x8xf32>
    %67 = arith.mulf %65, %66 : vector<8x8xf32>
    %68 = arith.addf %67, %35 : vector<8x8xf32>
    %cst_26 = arith.constant dense<0xFF800000> : vector<8xf32>
    %69 = vector.multi_reduction <maximumf>, %68, %cst_26 [1] : vector<8x8xf32> to vector<8xf32>
    %70 = vector.shape_cast %69 : vector<8xf32> to vector<8x1xf32>
    %71 = vector.broadcast %70 : vector<8x1xf32> to vector<8x8xf32>
    %72 = arith.subf %68, %71 : vector<8x8xf32>
    %73 = math.exp %72 : vector<8x8xf32>
    %cst_27 = arith.constant dense<0.000000e+00> : vector<8xf32>
    %74 = vector.multi_reduction <add>, %73, %cst_27 [1] : vector<8x8xf32> to vector<8xf32>
    %75 = vector.shape_cast %74 : vector<8xf32> to vector<8x1xf32>
    %76 = tpu.reciprocal %75 {approx = true} : vector<8x1xf32> -> vector<8x1xf32>
    %77 = vector.broadcast %76 : vector<8x1xf32> to vector<8x8xf32>
    %78 = arith.mulf %73, %77 : vector<8x8xf32>
    %79 = arith.truncf %78 : vector<8x8xf32> to vector<8x8xbf16>
    %cst_28 = arith.constant dense<0.000000e+00> : vector<8x4xf32>
    %80 = tpu.matmul %79, %64, %cst_28 {dimension_numbers = #tpu.dot_dimension_numbers<[1], [0], [0], [1], [0, 0, 1, 1], [], []>} : vector<8x8xbf16>, vector<8x4xbf16>, vector<8x4xf32> -> vector<8x4xf32>
    %c0_29 = arith.constant 0 : index
    %c4 = arith.constant 4 : index
    %81 = vector.load %arg10[%c0_29, %c4] : memref<8x32xf32, #tpu.memory_space<vmem>>, vector<8x4xf32>
    tpu.vector_store %arg10[%c0_29, %c4], %80 {strides = array<i32>} : memref<8x32xf32, #tpu.memory_space<vmem>>, vector<8x4xf32>,
    %82 = vector.extract_strided_slice %32 {offsets = [0, 8], sizes = [8, 4], strides = [1, 1]} : vector<8x32xf32> to vector<8x4xf32>
    %83 = arith.truncf %82 : vector<8x4xf32> to vector<8x4xbf16>
    %84 = vector.extract_strided_slice %33 {offsets = [0, 8], sizes = [8, 4], strides = [1, 1]} : vector<8x32xf32> to vector<8x4xf32>
    %85 = arith.truncf %84 : vector<8x4xf32> to vector<8x4xbf16>
    %86 = vector.extract_strided_slice %34 {offsets = [0, 8], sizes = [8, 4], strides = [1, 1]} : vector<8x32xf32> to vector<8x4xf32>
    %87 = arith.truncf %86 : vector<8x4xf32> to vector<8x4xbf16>
    %cst_30 = arith.constant dense<0.000000e+00> : vector<8x8xf32>
    %88 = tpu.matmul %83, %85, %cst_30 {dimension_numbers = #tpu.dot_dimension_numbers<[1], [1], [0], [0], [0, 0, 1, 0], [], []>} : vector<8x4xbf16>, vector<8x4xbf16>, vector<8x8xf32> -> vector<8x8xf32>
    %cst_31 = arith.constant 5.000000e-01 : f32
    %89 = vector.broadcast %cst_31 : f32 to vector<8x8xf32>
    %90 = arith.mulf %88, %89 : vector<8x8xf32>
    %91 = arith.addf %90, %35 : vector<8x8xf32>
    %cst_32 = arith.constant dense<0xFF800000> : vector<8xf32>
    %92 = vector.multi_reduction <maximumf>, %91, %cst_32 [1] : vector<8x8xf32> to vector<8xf32>
    %93 = vector.shape_cast %92 : vector<8xf32> to vector<8x1xf32>
    %94 = vector.broadcast %93 : vector<8x1xf32> to vector<8x8xf32>
    %95 = arith.subf %91, %94 : vector<8x8xf32>
    %96 = math.exp %95 : vector<8x8xf32>
    %cst_33 = arith.constant dense<0.000000e+00> : vector<8xf32>
    %97 = vector.multi_reduction <add>, %96, %cst_33 [1] : vector<8x8xf32> to vector<8xf32>
    %98 = vector.shape_cast %97 : vector<8xf32> to vector<8x1xf32>
    %99 = tpu.reciprocal %98 {approx = true} : vector<8x1xf32> -> vector<8x1xf32>
    %100 = vector.broadcast %99 : vector<8x1xf32> to vector<8x8xf32>
    %101 = arith.mulf %96, %100 : vector<8x8xf32>
    %102 = arith.truncf %101 : vector<8x8xf32> to vector<8x8xbf16>
    %cst_34 = arith.constant dense<0.000000e+00> : vector<8x4xf32>
    %103 = tpu.matmul %102, %87, %cst_34 {dimension_numbers = #tpu.dot_dimension_numbers<[1], [0], [0], [1], [0, 0, 1, 1], [], []>} : vector<8x8xbf16>, vector<8x4xbf16>, vector<8x4xf32> -> vector<8x4xf32>
    %c0_35 = arith.constant 0 : index
    %c8 = arith.constant 8 : index
    %104 = vector.load %arg10[%c0_35, %c8] : memref<8x32xf32, #tpu.memory_space<vmem>>, vector<8x4xf32>
    tpu.vector_store %arg10[%c0_35, %c8], %103 {strides = array<i32>} : memref<8x32xf32, #tpu.memory_space<vmem>>, vector<8x4xf32>,
    %105 = vector.extract_strided_slice %32 {offsets = [0, 12], sizes = [8, 4], strides = [1, 1]} : vector<8x32xf32> to vector<8x4xf32>
    %106 = arith.truncf %105 : vector<8x4xf32> to vector<8x4xbf16>
    %107 = vector.extract_strided_slice %33 {offsets = [0, 12], sizes = [8, 4], strides = [1, 1]} : vector<8x32xf32> to vector<8x4xf32>
    %108 = arith.truncf %107 : vector<8x4xf32> to vector<8x4xbf16>
    %109 = vector.extract_strided_slice %34 {offsets = [0, 12], sizes = [8, 4], strides = [1, 1]} : vector<8x32xf32> to vector<8x4xf32>
    %110 = arith.truncf %109 : vector<8x4xf32> to vector<8x4xbf16>
    %cst_36 = arith.constant dense<0.000000e+00> : vector<8x8xf32>
    %111 = tpu.matmul %106, %108, %cst_36 {dimension_numbers = #tpu.dot_dimension_numbers<[1], [1], [0], [0], [0, 0, 1, 0], [], []>} : vector<8x4xbf16>, vector<8x4xbf16>, vector<8x8xf32> -> vector<8x8xf32>
    %cst_37 = arith.constant 5.000000e-01 : f32
    %112 = vector.broadcast %cst_37 : f32 to vector<8x8xf32>
    %113 = arith.mulf %111, %112 : vector<8x8xf32>
    %114 = arith.addf %113, %35 : vector<8x8xf32>
    %cst_38 = arith.constant dense<0xFF800000> : vector<8xf32>
    %115 = vector.multi_reduction <maximumf>, %114, %cst_38 [1] : vector<8x8xf32> to vector<8xf32>
    %116 = vector.shape_cast %115 : vector<8xf32> to vector<8x1xf32>
    %117 = vector.broadcast %116 : vector<8x1xf32> to vector<8x8xf32>
    %118 = arith.subf %114, %117 : vector<8x8xf32>
    %119 = math.exp %118 : vector<8x8xf32>
    %cst_39 = arith.constant dense<0.000000e+00> : vector<8xf32>
    %120 = vector.multi_reduction <add>, %119, %cst_39 [1] : vector<8x8xf32> to vector<8xf32>
    %121 = vector.shape_cast %120 : vector<8xf32> to vector<8x1xf32>
    %122 = tpu.reciprocal %121 {approx = true} : vector<8x1xf32> -> vector<8x1xf32>
    %123 = vector.broadcast %122 : vector<8x1xf32> to vector<8x8xf32>
    %124 = arith.mulf %119, %123 : vector<8x8xf32>
    %125 = arith.truncf %124 : vector<8x8xf32> to vector<8x8xbf16>
    %cst_40 = arith.constant dense<0.000000e+00> : vector<8x4xf32>
    %126 = tpu.matmul %125, %110, %cst_40 {dimension_numbers = #tpu.dot_dimension_numbers<[1], [0], [0], [1], [0, 0, 1, 1], [], []>} : vector<8x8xbf16>, vector<8x4xbf16>, vector<8x4xf32> -> vector<8x4xf32>
    %c0_41 = arith.constant 0 : index
    %c12 = arith.constant 12 : index
    %127 = vector.load %arg10[%c0_41, %c12] : memref<8x32xf32, #tpu.memory_space<vmem>>, vector<8x4xf32>
    tpu.vector_store %arg10[%c0_41, %c12], %126 {strides = array<i32>} : memref<8x32xf32, #tpu.memory_space<vmem>>, vector<8x4xf32>,
    %128 = vector.extract_strided_slice %32 {offsets = [0, 16], sizes = [8, 4], strides = [1, 1]} : vector<8x32xf32> to vector<8x4xf32>
    %129 = arith.truncf %128 : vector<8x4xf32> to vector<8x4xbf16>
    %130 = vector.extract_strided_slice %33 {offsets = [0, 16], sizes = [8, 4], strides = [1, 1]} : vector<8x32xf32> to vector<8x4xf32>
    %131 = arith.truncf %130 : vector<8x4xf32> to vector<8x4xbf16>
    %132 = vector.extract_strided_slice %34 {offsets = [0, 16], sizes = [8, 4], strides = [1, 1]} : vector<8x32xf32> to vector<8x4xf32>
    %133 = arith.truncf %132 : vector<8x4xf32> to vector<8x4xbf16>
    %cst_42 = arith.constant dense<0.000000e+00> : vector<8x8xf32>
    %134 = tpu.matmul %129, %131, %cst_42 {dimension_numbers = #tpu.dot_dimension_numbers<[1], [1], [0], [0], [0, 0, 1, 0], [], []>} : vector<8x4xbf16>, vector<8x4xbf16>, vector<8x8xf32> -> vector<8x8xf32>
    %cst_43 = arith.constant 5.000000e-01 : f32
    %135 = vector.broadcast %cst_43 : f32 to vector<8x8xf32>
    %136 = arith.mulf %134, %135 : vector<8x8xf32>
    %137 = arith.addf %136, %35 : vector<8x8xf32>
    %cst_44 = arith.constant dense<0xFF800000> : vector<8xf32>
    %138 = vector.multi_reduction <maximumf>, %137, %cst_44 [1] : vector<8x8xf32> to vector<8xf32>
    %139 = vector.shape_cast %138 : vector<8xf32> to vector<8x1xf32>
    %140 = vector.broadcast %139 : vector<8x1xf32> to vector<8x8xf32>
    %141 = arith.subf %137, %140 : vector<8x8xf32>
    %142 = math.exp %141 : vector<8x8xf32>
    %cst_45 = arith.constant dense<0.000000e+00> : vector<8xf32>
    %143 = vector.multi_reduction <add>, %142, %cst_45 [1] : vector<8x8xf32> to vector<8xf32>
    %144 = vector.shape_cast %143 : vector<8xf32> to vector<8x1xf32>
    %145 = tpu.reciprocal %144 {approx = true} : vector<8x1xf32> -> vector<8x1xf32>
    %146 = vector.broadcast %145 : vector<8x1xf32> to vector<8x8xf32>
    %147 = arith.mulf %142, %146 : vector<8x8xf32>
    %148 = arith.truncf %147 : vector<8x8xf32> to vector<8x8xbf16>
    %cst_46 = arith.constant dense<0.000000e+00> : vector<8x4xf32>
    %149 = tpu.matmul %148, %133, %cst_46 {dimension_numbers = #tpu.dot_dimension_numbers<[1], [0], [0], [1], [0, 0, 1, 1], [], []>} : vector<8x8xbf16>, vector<8x4xbf16>, vector<8x4xf32> -> vector<8x4xf32>
    %c0_47 = arith.constant 0 : index
    %c16 = arith.constant 16 : index
    %150 = vector.load %arg10[%c0_47, %c16] : memref<8x32xf32, #tpu.memory_space<vmem>>, vector<8x4xf32>
    tpu.vector_store %arg10[%c0_47, %c16], %149 {strides = array<i32>} : memref<8x32xf32, #tpu.memory_space<vmem>>, vector<8x4xf32>,
    %151 = vector.extract_strided_slice %32 {offsets = [0, 20], sizes = [8, 4], strides = [1, 1]} : vector<8x32xf32> to vector<8x4xf32>
    %152 = arith.truncf %151 : vector<8x4xf32> to vector<8x4xbf16>
    %153 = vector.extract_strided_slice %33 {offsets = [0, 20], sizes = [8, 4], strides = [1, 1]} : vector<8x32xf32> to vector<8x4xf32>
    %154 = arith.truncf %153 : vector<8x4xf32> to vector<8x4xbf16>
    %155 = vector.extract_strided_slice %34 {offsets = [0, 20], sizes = [8, 4], strides = [1, 1]} : vector<8x32xf32> to vector<8x4xf32>
    %156 = arith.truncf %155 : vector<8x4xf32> to vector<8x4xbf16>
    %cst_48 = arith.constant dense<0.000000e+00> : vector<8x8xf32>
    %157 = tpu.matmul %152, %154, %cst_48 {dimension_numbers = #tpu.dot_dimension_numbers<[1], [1], [0], [0], [0, 0, 1, 0], [], []>} : vector<8x4xbf16>, vector<8x4xbf16>, vector<8x8xf32> -> vector<8x8xf32>
    %cst_49 = arith.constant 5.000000e-01 : f32
    %158 = vector.broadcast %cst_49 : f32 to vector<8x8xf32>
    %159 = arith.mulf %157, %158 : vector<8x8xf32>
    %160 = arith.addf %159, %35 : vector<8x8xf32>
    %cst_50 = arith.constant dense<0xFF800000> : vector<8xf32>
    %161 = vector.multi_reduction <maximumf>, %160, %cst_50 [1] : vector<8x8xf32> to vector<8xf32>
    %162 = vector.shape_cast %161 : vector<8xf32> to vector<8x1xf32>
    %163 = vector.broadcast %162 : vector<8x1xf32> to vector<8x8xf32>
    %164 = arith.subf %160, %163 : vector<8x8xf32>
    %165 = math.exp %164 : vector<8x8xf32>
    %cst_51 = arith.constant dense<0.000000e+00> : vector<8xf32>
    %166 = vector.multi_reduction <add>, %165, %cst_51 [1] : vector<8x8xf32> to vector<8xf32>
    %167 = vector.shape_cast %166 : vector<8xf32> to vector<8x1xf32>
    %168 = tpu.reciprocal %167 {approx = true} : vector<8x1xf32> -> vector<8x1xf32>
    %169 = vector.broadcast %168 : vector<8x1xf32> to vector<8x8xf32>
    %170 = arith.mulf %165, %169 : vector<8x8xf32>
    %171 = arith.truncf %170 : vector<8x8xf32> to vector<8x8xbf16>
    %cst_52 = arith.constant dense<0.000000e+00> : vector<8x4xf32>
    %172 = tpu.matmul %171, %156, %cst_52 {dimension_numbers = #tpu.dot_dimension_numbers<[1], [0], [0], [1], [0, 0, 1, 1], [], []>} : vector<8x8xbf16>, vector<8x4xbf16>, vector<8x4xf32> -> vector<8x4xf32>
    %c0_53 = arith.constant 0 : index
    %c20 = arith.constant 20 : index
    %173 = vector.load %arg10[%c0_53, %c20] : memref<8x32xf32, #tpu.memory_space<vmem>>, vector<8x4xf32>
    tpu.vector_store %arg10[%c0_53, %c20], %172 {strides = array<i32>} : memref<8x32xf32, #tpu.memory_space<vmem>>, vector<8x4xf32>,
    %174 = vector.extract_strided_slice %32 {offsets = [0, 24], sizes = [8, 4], strides = [1, 1]} : vector<8x32xf32> to vector<8x4xf32>
    %175 = arith.truncf %174 : vector<8x4xf32> to vector<8x4xbf16>
    %176 = vector.extract_strided_slice %33 {offsets = [0, 24], sizes = [8, 4], strides = [1, 1]} : vector<8x32xf32> to vector<8x4xf32>
    %177 = arith.truncf %176 : vector<8x4xf32> to vector<8x4xbf16>
    %178 = vector.extract_strided_slice %34 {offsets = [0, 24], sizes = [8, 4], strides = [1, 1]} : vector<8x32xf32> to vector<8x4xf32>
    %179 = arith.truncf %178 : vector<8x4xf32> to vector<8x4xbf16>
    %cst_54 = arith.constant dense<0.000000e+00> : vector<8x8xf32>
    %180 = tpu.matmul %175, %177, %cst_54 {dimension_numbers = #tpu.dot_dimension_numbers<[1], [1], [0], [0], [0, 0, 1, 0], [], []>} : vector<8x4xbf16>, vector<8x4xbf16>, vector<8x8xf32> -> vector<8x8xf32>
    %cst_55 = arith.constant 5.000000e-01 : f32
    %181 = vector.broadcast %cst_55 : f32 to vector<8x8xf32>
    %182 = arith.mulf %180, %181 : vector<8x8xf32>
    %183 = arith.addf %182, %35 : vector<8x8xf32>
    %cst_56 = arith.constant dense<0xFF800000> : vector<8xf32>
    %184 = vector.multi_reduction <maximumf>, %183, %cst_56 [1] : vector<8x8xf32> to vector<8xf32>
    %185 = vector.shape_cast %184 : vector<8xf32> to vector<8x1xf32>
    %186 = vector.broadcast %185 : vector<8x1xf32> to vector<8x8xf32>
    %187 = arith.subf %183, %186 : vector<8x8xf32>
    %188 = math.exp %187 : vector<8x8xf32>
    %cst_57 = arith.constant dense<0.000000e+00> : vector<8xf32>
    %189 = vector.multi_reduction <add>, %188, %cst_57 [1] : vector<8x8xf32> to vector<8xf32>
    %190 = vector.shape_cast %189 : vector<8xf32> to vector<8x1xf32>
    %191 = tpu.reciprocal %190 {approx = true} : vector<8x1xf32> -> vector<8x1xf32>
    %192 = vector.broadcast %191 : vector<8x1xf32> to vector<8x8xf32>
    %193 = arith.mulf %188, %192 : vector<8x8xf32>
    %194 = arith.truncf %193 : vector<8x8xf32> to vector<8x8xbf16>
    %cst_58 = arith.constant dense<0.000000e+00> : vector<8x4xf32>
    %195 = tpu.matmul %194, %179, %cst_58 {dimension_numbers = #tpu.dot_dimension_numbers<[1], [0], [0], [1], [0, 0, 1, 1], [], []>} : vector<8x8xbf16>, vector<8x4xbf16>, vector<8x4xf32> -> vector<8x4xf32>
    %c0_59 = arith.constant 0 : index
    %c24 = arith.constant 24 : index
    %196 = vector.load %arg10[%c0_59, %c24] : memref<8x32xf32, #tpu.memory_space<vmem>>, vector<8x4xf32>
    tpu.vector_store %arg10[%c0_59, %c24], %195 {strides = array<i32>} : memref<8x32xf32, #tpu.memory_space<vmem>>, vector<8x4xf32>,
    %197 = vector.extract_strided_slice %32 {offsets = [0, 28], sizes = [8, 4], strides = [1, 1]} : vector<8x32xf32> to vector<8x4xf32>
    %198 = arith.truncf %197 : vector<8x4xf32> to vector<8x4xbf16>
    %199 = vector.extract_strided_slice %33 {offsets = [0, 28], sizes = [8, 4], strides = [1, 1]} : vector<8x32xf32> to vector<8x4xf32>
    %200 = arith.truncf %199 : vector<8x4xf32> to vector<8x4xbf16>
    %201 = vector.extract_strided_slice %34 {offsets = [0, 28], sizes = [8, 4], strides = [1, 1]} : vector<8x32xf32> to vector<8x4xf32>
    %202 = arith.truncf %201 : vector<8x4xf32> to vector<8x4xbf16>
    %cst_60 = arith.constant dense<0.000000e+00> : vector<8x8xf32>
    %203 = tpu.matmul %198, %200, %cst_60 {dimension_numbers = #tpu.dot_dimension_numbers<[1], [1], [0], [0], [0, 0, 1, 0], [], []>} : vector<8x4xbf16>, vector<8x4xbf16>, vector<8x8xf32> -> vector<8x8xf32>
    %cst_61 = arith.constant 5.000000e-01 : f32
    %204 = vector.broadcast %cst_61 : f32 to vector<8x8xf32>
    %205 = arith.mulf %203, %204 : vector<8x8xf32>
    %206 = arith.addf %205, %35 : vector<8x8xf32>
    %cst_62 = arith.constant dense<0xFF800000> : vector<8xf32>
    %207 = vector.multi_reduction <maximumf>, %206, %cst_62 [1] : vector<8x8xf32> to vector<8xf32>
    %208 = vector.shape_cast %207 : vector<8xf32> to vector<8x1xf32>
    %209 = vector.broadcast %208 : vector<8x1xf32> to vector<8x8xf32>
    %210 = arith.subf %206, %209 : vector<8x8xf32>
    %211 = math.exp %210 : vector<8x8xf32>
    %cst_63 = arith.constant dense<0.000000e+00> : vector<8xf32>
    %212 = vector.multi_reduction <add>, %211, %cst_63 [1] : vector<8x8xf32> to vector<8xf32>
    %213 = vector.shape_cast %212 : vector<8xf32> to vector<8x1xf32>
    %214 = tpu.reciprocal %213 {approx = true} : vector<8x1xf32> -> vector<8x1xf32>
    %215 = vector.broadcast %214 : vector<8x1xf32> to vector<8x8xf32>
    %216 = arith.mulf %211, %215 : vector<8x8xf32>
    %217 = arith.truncf %216 : vector<8x8xf32> to vector<8x8xbf16>
    %cst_64 = arith.constant dense<0.000000e+00> : vector<8x4xf32>
    %218 = tpu.matmul %217, %202, %cst_64 {dimension_numbers = #tpu.dot_dimension_numbers<[1], [0], [0], [1], [0, 0, 1, 1], [], []>} : vector<8x8xbf16>, vector<8x4xbf16>, vector<8x4xf32> -> vector<8x4xf32>
    %c0_65 = arith.constant 0 : index
    %c28 = arith.constant 28 : index
    %219 = vector.load %arg10[%c0_65, %c28] : memref<8x32xf32, #tpu.memory_space<vmem>>, vector<8x4xf32>
    tpu.vector_store %arg10[%c0_65, %c28], %218 {strides = array<i32>} : memref<8x32xf32, #tpu.memory_space<vmem>>, vector<8x4xf32>,
    %c0_66 = arith.constant 0 : index
    %c0_67 = arith.constant 0 : index
    %220 = vector.load %arg10[%c0_66, %c0_67] : memref<8x32xf32, #tpu.memory_space<vmem>>, vector<8x32xf32>
    %221 = arith.truncf %220 : vector<8x32xf32> to vector<8x32xbf16>
    %c0_68 = arith.constant 0 : index
    %c0_69 = arith.constant 0 : index
    %222 = vector.load %arg7[%c0_68, %c0_69] : memref<32x32xbf16, #tpu.memory_space<vmem>>, vector<32x32xbf16>
    %cst_70 = arith.constant dense<0.000000e+00> : vector<8x32xf32>
    %223 = tpu.matmul %221, %222, %cst_70 {dimension_numbers = #tpu.dot_dimension_numbers<[1], [0], [0], [1], [0, 0, 1, 1], [], []>} : vector<8x32xbf16>, vector<32x32xbf16>, vector<8x32xf32> -> vector<8x32xf32>
    %c0_71 = arith.constant 0 : index
    %c0_72 = arith.constant 0 : index
    %224 = vector.load %arg8[%c0_71, %c0_72] : memref<1x32xf32, #tpu.memory_space<vmem>>, vector<1x32xf32>
    %225 = vector.broadcast %224 : vector<1x32xf32> to vector<8x32xf32>
    %226 = arith.addf %223, %225 : vector<8x32xf32>
    %227 = arith.addf %226, %1 : vector<8x32xf32>
    %c0_73 = arith.constant 0 : index
    %c0_74 = arith.constant 0 : index
    %c0_75 = arith.constant 0 : index
    %228 = vector.load %arg9[%c0_73, %c0_74, %c0_75] : memref<1x8x32xf32, #tpu.memory_space<vmem>>, vector<1x8x32xf32>
    %229 = vector.shape_cast %228 : vector<1x8x32xf32> to vector<8x32xf32>
    %230 = vector.shape_cast %227 : vector<8x32xf32> to vector<1x8x32xf32>
    tpu.vector_store %arg9[%c0_73, %c0_74, %c0_75], %230 {strides = array<i32>} : memref<1x8x32xf32, #tpu.memory_space<vmem>>, vector<1x8x32xf32>,
    return
  }
  func.func @transform_0(%arg0: i32) -> (i32, i32, i32) {
    %c0_i32 = arith.constant 0 : i32
    %c0_i32_0 = arith.constant 0 : i32
    %c0_i32_1 = arith.constant 0 : i32
    return %arg0, %c0_i32, %c0_i32_0 : i32, i32, i32
  }
  func.func @transform_1(%arg0: i32) -> (i32, i32) {
    %c0_i32 = arith.constant 0 : i32
    %c0_i32_0 = arith.constant 0 : i32
    %c0_i32_1 = arith.constant 0 : i32
    return %c0_i32, %c0_i32_0 : i32, i32
  }
  func.func @transform_2(%arg0: i32) -> (i32, i32) {
    %c0_i32 = arith.constant 0 : i32
    %c0_i32_0 = arith.constant 0 : i32
    %c0_i32_1 = arith.constant 0 : i32
    return %c0_i32, %c0_i32_0 : i32, i32
  }
  func.func @transform_3(%arg0: i32) -> (i32, i32) {
    %c0_i32 = arith.constant 0 : i32
    %c0_i32_0 = arith.constant 0 : i32
    %c0_i32_1 = arith.constant 0 : i32
    return %c0_i32, %c0_i32_0 : i32, i32
  }
  func.func @transform_4(%arg0: i32) -> (i32, i32) {
    %c0_i32 = arith.constant 0 : i32
    %c0_i32_0 = arith.constant 0 : i32
    %c0_i32_1 = arith.constant 0 : i32
    return %c0_i32, %c0_i32_0 : i32, i32
  }
  func.func @transform_5(%arg0: i32) -> (i32, i32) {
    %c0_i32 = arith.constant 0 : i32
    %c0_i32_0 = arith.constant 0 : i32
    %c0_i32_1 = arith.constant 0 : i32
    return %c0_i32, %c0_i32_0 : i32, i32
  }
  func.func @transform_6(%arg0: i32) -> (i32, i32) {
    %c0_i32 = arith.constant 0 : i32
    %c0_i32_0 = arith.constant 0 : i32
    %c0_i32_1 = arith.constant 0 : i32
    return %c0_i32, %c0_i32_0 : i32, i32
  }
  func.func @transform_7(%arg0: i32) -> (i32, i32) {
    %c0_i32 = arith.constant 0 : i32
    %c0_i32_0 = arith.constant 0 : i32
    %c0_i32_1 = arith.constant 0 : i32
    return %c0_i32, %c0_i32_0 : i32, i32
  }
  func.func @transform_8(%arg0: i32) -> (i32, i32, i32) {
    %c0_i32 = arith.constant 0 : i32
    %c0_i32_0 = arith.constant 0 : i32
    %c0_i32_1 = arith.constant 0 : i32
    return %arg0, %c0_i32, %c0_i32_0 : i32, i32, i32
  }
}

module attributes {stable_mosaic.version = 11 : i64} {
  func.func @_layernorm_kernel(%arg0: i32, %arg1: memref<16x32xf32, #tpu.memory_space<vmem>>, %arg2: memref<1x32xf32, #tpu.memory_space<vmem>>, %arg3: memref<1x32xf32, #tpu.memory_space<vmem>>, %arg4: memref<16x32xf32, #tpu.memory_space<vmem>>) attributes {dimension_semantics = [#tpu.dimension_semantics<parallel>], iteration_bounds = array<i64: 1>, scalar_prefetch = 0 : i64, scratch_operands = 0 : i64, tpu.core_type = #tpu.core_type<tc>, window_params = [{transform_indices = @transform_0, window_bounds = array<i64: 16, 32>}, {pipeline_mode = #tpu.pipeline_mode<synchronous>, transform_indices = @transform_1, window_bounds = array<i64: 1, 32>}, {pipeline_mode = #tpu.pipeline_mode<synchronous>, transform_indices = @transform_2, window_bounds = array<i64: 1, 32>}, {transform_indices = @transform_3, window_bounds = array<i64: 16, 32>}]} {
    %c0 = arith.constant 0 : index
    %c0_0 = arith.constant 0 : index
    %0 = vector.load %arg1[%c0, %c0_0] : memref<16x32xf32, #tpu.memory_space<vmem>>, vector<16x32xf32>
    %c0_1 = arith.constant 0 : index
    %c0_2 = arith.constant 0 : index
    %1 = vector.load %arg2[%c0_1, %c0_2] : memref<1x32xf32, #tpu.memory_space<vmem>>, vector<1x32xf32>
    %c0_3 = arith.constant 0 : index
    %c0_4 = arith.constant 0 : index
    %2 = vector.load %arg3[%c0_3, %c0_4] : memref<1x32xf32, #tpu.memory_space<vmem>>, vector<1x32xf32>
    %cst = arith.constant dense<0.000000e+00> : vector<16xf32>
    %3 = vector.multi_reduction <add>, %0, %cst [1] : vector<16x32xf32> to vector<16xf32>
    %4 = vector.shape_cast %3 : vector<16xf32> to vector<16x1xf32>
    %cst_5 = arith.constant 3.200000e+01 : f32
    %5 = vector.broadcast %cst_5 : f32 to vector<16x1xf32>
    %6 = arith.divf %4, %5 : vector<16x1xf32>
    %7 = vector.broadcast %6 : vector<16x1xf32> to vector<16x32xf32>
    %8 = arith.subf %0, %7 : vector<16x32xf32>
    %9 = arith.mulf %8, %8 : vector<16x32xf32>
    %cst_6 = arith.constant dense<0.000000e+00> : vector<16xf32>
    %10 = vector.multi_reduction <add>, %9, %cst_6 [1] : vector<16x32xf32> to vector<16xf32>
    %11 = vector.shape_cast %10 : vector<16xf32> to vector<16x1xf32>
    %cst_7 = arith.constant 3.200000e+01 : f32
    %12 = vector.broadcast %cst_7 : f32 to vector<16x1xf32>
    %13 = arith.divf %11, %12 : vector<16x1xf32>
    %14 = vector.broadcast %6 : vector<16x1xf32> to vector<16x32xf32>
    %15 = arith.subf %0, %14 : vector<16x32xf32>
    %cst_8 = arith.constant 9.99999997E-7 : f32
    %16 = vector.broadcast %cst_8 : f32 to vector<16x1xf32>
    %17 = arith.addf %13, %16 : vector<16x1xf32>
    %18 = math.rsqrt %17 : vector<16x1xf32>
    %19 = vector.broadcast %18 : vector<16x1xf32> to vector<16x32xf32>
    %20 = arith.mulf %15, %19 : vector<16x32xf32>
    %21 = vector.broadcast %1 : vector<1x32xf32> to vector<16x32xf32>
    %22 = arith.mulf %20, %21 : vector<16x32xf32>
    %23 = vector.broadcast %2 : vector<1x32xf32> to vector<16x32xf32>
    %24 = arith.addf %22, %23 : vector<16x32xf32>
    %c0_9 = arith.constant 0 : index
    %c0_10 = arith.constant 0 : index
    %25 = vector.load %arg4[%c0_9, %c0_10] : memref<16x32xf32, #tpu.memory_space<vmem>>, vector<16x32xf32>
    tpu.vector_store %arg4[%c0_9, %c0_10], %24 {strides = array<i32>} : memref<16x32xf32, #tpu.memory_space<vmem>>, vector<16x32xf32>,
    return
  }
  func.func @transform_0(%arg0: i32) -> (i32, i32) {
    %c0_i32 = arith.constant 0 : i32
    %c0_i32_0 = arith.constant 0 : i32
    return %arg0, %c0_i32 : i32, i32
  }
  func.func @transform_1(%arg0: i32) -> (i32, i32) {
    %c0_i32 = arith.constant 0 : i32
    %c0_i32_0 = arith.constant 0 : i32
    %c0_i32_1 = arith.constant 0 : i32
    return %c0_i32, %c0_i32_0 : i32, i32
  }
  func.func @transform_2(%arg0: i32) -> (i32, i32) {
    %c0_i32 = arith.constant 0 : i32
    %c0_i32_0 = arith.constant 0 : i32
    %c0_i32_1 = arith.constant 0 : i32
    return %c0_i32, %c0_i32_0 : i32, i32
  }
  func.func @transform_3(%arg0: i32) -> (i32, i32) {
    %c0_i32 = arith.constant 0 : i32
    %c0_i32_0 = arith.constant 0 : i32
    return %arg0, %c0_i32 : i32, i32
  }
}

module attributes {stable_mosaic.version = 11 : i64} {
  func.func @_ffn_block_kernel(%arg0: i32, %arg1: memref<16x32xf32, #tpu.memory_space<vmem>>, %arg2: memref<1x32xf32, #tpu.memory_space<vmem>>, %arg3: memref<1x32xf32, #tpu.memory_space<vmem>>, %arg4: memref<32x64xbf16, #tpu.memory_space<vmem>>, %arg5: memref<1x64xf32, #tpu.memory_space<vmem>>, %arg6: memref<64x32xbf16, #tpu.memory_space<vmem>>, %arg7: memref<1x32xf32, #tpu.memory_space<vmem>>, %arg8: memref<16x32xf32, #tpu.memory_space<vmem>>) attributes {dimension_semantics = [#tpu.dimension_semantics<parallel>], iteration_bounds = array<i64: 1>, scalar_prefetch = 0 : i64, scratch_operands = 0 : i64, tpu.core_type = #tpu.core_type<tc>, window_params = [{transform_indices = @transform_0, window_bounds = array<i64: 16, 32>}, {pipeline_mode = #tpu.pipeline_mode<synchronous>, transform_indices = @transform_1, window_bounds = array<i64: 1, 32>}, {pipeline_mode = #tpu.pipeline_mode<synchronous>, transform_indices = @transform_2, window_bounds = array<i64: 1, 32>}, {pipeline_mode = #tpu.pipeline_mode<synchronous>, transform_indices = @transform_3, window_bounds = array<i64: 32, 64>}, {pipeline_mode = #tpu.pipeline_mode<synchronous>, transform_indices = @transform_4, window_bounds = array<i64: 1, 64>}, {pipeline_mode = #tpu.pipeline_mode<synchronous>, transform_indices = @transform_5, window_bounds = array<i64: 64, 32>}, {pipeline_mode = #tpu.pipeline_mode<synchronous>, transform_indices = @transform_6, window_bounds = array<i64: 1, 32>}, {transform_indices = @transform_7, window_bounds = array<i64: 16, 32>}]} {
    %c0 = arith.constant 0 : index
    %c0_0 = arith.constant 0 : index
    %0 = vector.load %arg1[%c0, %c0_0] : memref<16x32xf32, #tpu.memory_space<vmem>>, vector<16x32xf32>
    %c0_1 = arith.constant 0 : index
    %c0_2 = arith.constant 0 : index
    %1 = vector.load %arg2[%c0_1, %c0_2] : memref<1x32xf32, #tpu.memory_space<vmem>>, vector<1x32xf32>
    %c0_3 = arith.constant 0 : index
    %c0_4 = arith.constant 0 : index
    %2 = vector.load %arg3[%c0_3, %c0_4] : memref<1x32xf32, #tpu.memory_space<vmem>>, vector<1x32xf32>
    %cst = arith.constant dense<0.000000e+00> : vector<16xf32>
    %3 = vector.multi_reduction <add>, %0, %cst [1] : vector<16x32xf32> to vector<16xf32>
    %4 = vector.shape_cast %3 : vector<16xf32> to vector<16x1xf32>
    %cst_5 = arith.constant 3.200000e+01 : f32
    %5 = vector.broadcast %cst_5 : f32 to vector<16x1xf32>
    %6 = arith.divf %4, %5 : vector<16x1xf32>
    %7 = vector.broadcast %6 : vector<16x1xf32> to vector<16x32xf32>
    %8 = arith.subf %0, %7 : vector<16x32xf32>
    %9 = arith.mulf %8, %8 : vector<16x32xf32>
    %cst_6 = arith.constant dense<0.000000e+00> : vector<16xf32>
    %10 = vector.multi_reduction <add>, %9, %cst_6 [1] : vector<16x32xf32> to vector<16xf32>
    %11 = vector.shape_cast %10 : vector<16xf32> to vector<16x1xf32>
    %cst_7 = arith.constant 3.200000e+01 : f32
    %12 = vector.broadcast %cst_7 : f32 to vector<16x1xf32>
    %13 = arith.divf %11, %12 : vector<16x1xf32>
    %14 = vector.broadcast %6 : vector<16x1xf32> to vector<16x32xf32>
    %15 = arith.subf %0, %14 : vector<16x32xf32>
    %cst_8 = arith.constant 9.99999997E-7 : f32
    %16 = vector.broadcast %cst_8 : f32 to vector<16x1xf32>
    %17 = arith.addf %13, %16 : vector<16x1xf32>
    %18 = math.rsqrt %17 : vector<16x1xf32>
    %19 = vector.broadcast %18 : vector<16x1xf32> to vector<16x32xf32>
    %20 = arith.mulf %15, %19 : vector<16x32xf32>
    %21 = vector.broadcast %1 : vector<1x32xf32> to vector<16x32xf32>
    %22 = arith.mulf %20, %21 : vector<16x32xf32>
    %23 = vector.broadcast %2 : vector<1x32xf32> to vector<16x32xf32>
    %24 = arith.addf %22, %23 : vector<16x32xf32>
    %25 = arith.truncf %24 : vector<16x32xf32> to vector<16x32xbf16>
    %c0_9 = arith.constant 0 : index
    %c0_10 = arith.constant 0 : index
    %26 = vector.load %arg4[%c0_9, %c0_10] : memref<32x64xbf16, #tpu.memory_space<vmem>>, vector<32x64xbf16>
    %cst_11 = arith.constant dense<0.000000e+00> : vector<16x64xf32>
    %27 = tpu.matmul %25, %26, %cst_11 {dimension_numbers = #tpu.dot_dimension_numbers<[1], [0], [0], [1], [0, 0, 1, 1], [], []>} : vector<16x32xbf16>, vector<32x64xbf16>, vector<16x64xf32> -> vector<16x64xf32>
    %c0_12 = arith.constant 0 : index
    %c0_13 = arith.constant 0 : index
    %28 = vector.load %arg5[%c0_12, %c0_13] : memref<1x64xf32, #tpu.memory_space<vmem>>, vector<1x64xf32>
    %29 = vector.broadcast %28 : vector<1x64xf32> to vector<16x64xf32>
    %30 = arith.addf %27, %29 : vector<16x64xf32>
    %cst_14 = arith.constant 0.000000e+00 : f32
    %31 = vector.broadcast %cst_14 : f32 to vector<16x64xf32>
    %32 = arith.maximumf %30, %31 : vector<16x64xf32>
    %33 = arith.truncf %32 : vector<16x64xf32> to vector<16x64xbf16>
    %c0_15 = arith.constant 0 : index
    %c0_16 = arith.constant 0 : index
    %34 = vector.load %arg6[%c0_15, %c0_16] : memref<64x32xbf16, #tpu.memory_space<vmem>>, vector<64x32xbf16>
    %cst_17 = arith.constant dense<0.000000e+00> : vector<16x32xf32>
    %35 = tpu.matmul %33, %34, %cst_17 {dimension_numbers = #tpu.dot_dimension_numbers<[1], [0], [0], [1], [0, 0, 1, 1], [], []>} : vector<16x64xbf16>, vector<64x32xbf16>, vector<16x32xf32> -> vector<16x32xf32>
    %c0_18 = arith.constant 0 : index
    %c0_19 = arith.constant 0 : index
    %36 = vector.load %arg7[%c0_18, %c0_19] : memref<1x32xf32, #tpu.memory_space<vmem>>, vector<1x32xf32>
    %37 = vector.broadcast %36 : vector<1x32xf32> to vector<16x32xf32>
    %38 = arith.addf %35, %37 : vector<16x32xf32>
    %39 = arith.addf %38, %0 : vector<16x32xf32>
    %c0_20 = arith.constant 0 : index
    %c0_21 = arith.constant 0 : index
    %40 = vector.load %arg8[%c0_20, %c0_21] : memref<16x32xf32, #tpu.memory_space<vmem>>, vector<16x32xf32>
    tpu.vector_store %arg8[%c0_20, %c0_21], %39 {strides = array<i32>} : memref<16x32xf32, #tpu.memory_space<vmem>>, vector<16x32xf32>,
    return
  }
  func.func @transform_0(%arg0: i32) -> (i32, i32) {
    %c0_i32 = arith.constant 0 : i32
    %c0_i32_0 = arith.constant 0 : i32
    return %arg0, %c0_i32 : i32, i32
  }
  func.func @transform_1(%arg0: i32) -> (i32, i32) {
    %c0_i32 = arith.constant 0 : i32
    %c0_i32_0 = arith.constant 0 : i32
    %c0_i32_1 = arith.constant 0 : i32
    return %c0_i32, %c0_i32_0 : i32, i32
  }
  func.func @transform_2(%arg0: i32) -> (i32, i32) {
    %c0_i32 = arith.constant 0 : i32
    %c0_i32_0 = arith.constant 0 : i32
    %c0_i32_1 = arith.constant 0 : i32
    return %c0_i32, %c0_i32_0 : i32, i32
  }
  func.func @transform_3(%arg0: i32) -> (i32, i32) {
    %c0_i32 = arith.constant 0 : i32
    %c0_i32_0 = arith.constant 0 : i32
    %c0_i32_1 = arith.constant 0 : i32
    return %c0_i32, %c0_i32_0 : i32, i32
  }
  func.func @transform_4(%arg0: i32) -> (i32, i32) {
    %c0_i32 = arith.constant 0 : i32
    %c0_i32_0 = arith.constant 0 : i32
    %c0_i32_1 = arith.constant 0 : i32
    return %c0_i32, %c0_i32_0 : i32, i32
  }
  func.func @transform_5(%arg0: i32) -> (i32, i32) {
    %c0_i32 = arith.constant 0 : i32
    %c0_i32_0 = arith.constant 0 : i32
    %c0_i32_1 = arith.constant 0 : i32
    return %c0_i32, %c0_i32_0 : i32, i32
  }
  func.func @transform_6(%arg0: i32) -> (i32, i32) {
    %c0_i32 = arith.constant 0 : i32
    %c0_i32_0 = arith.constant 0 : i32
    %c0_i32_1 = arith.constant 0 : i32
    return %c0_i32, %c0_i32_0 : i32, i32
  }
  func.func @transform_7(%arg0: i32) -> (i32, i32) {
    %c0_i32 = arith.constant 0 : i32
    %c0_i32_0 = arith.constant 0 : i32
    return %arg0, %c0_i32 : i32, i32
  }
}

</mosaic_0001>

<llo_original>
// kernel: decoder_forward.13
$region0: #{decoder_forward.13}
  #allocation0 [shape = 'u32[]', space=smem, size = 0x4, offset = 0x4, fixed_abs, tag = 'smem constant byte address 0x4 - core index']
  #allocation1 [shape = 'u32[144,128]{1,0:T(1,128)}', space=vmem, size = 0x12000, scoped, tag = 'internal scratch']
  %s0 = inlined_call_operand.vmem [shape: f32[16,32], index: 0, kind: input, shape index: {}, may-alias: {0,3}]
  %s1 = inlined_call_operand.vmem [shape: f32[1,32], index: 1, kind: input, shape index: {}]
  %s2 = inlined_call_operand.vmem [shape: f32[1,32], index: 2, kind: input, shape index: {}]
  %s3 = inlined_call_operand.vmem [shape: f32[16,32], index: 3, kind: output, shape index: {}, may-alias: {0,3}]
  %s4 = sld [smem:[#allocation0]]
  $region22: #{decoder_forward.13} parent=0
    _
  %s6 = ssub.s32 1, %s4
  %s7 = scalar_select 0, %s6, %s4
  // Predicated region
  $region2: #{decoder_forward.13} parent=0 // pred_check
    _
  $region3: #{decoder_forward.13} parent=0 // pred_check_branch
    %9 = sbr.rel (0) target = $region5
  $region4: #{decoder_forward.13} parent=0 // pred_region
    _
  $region5: #{decoder_forward.13} parent=0 // pred_fallthru
    _
  // Predicated region
  $region6: #{decoder_forward.13} parent=0 // pred_check
    _
  $region7: #{decoder_forward.13} parent=0 // pred_check_branch
    %11 = sbr.rel (0) target = $region9
  $region8: #{decoder_forward.13} parent=0 // pred_region
    _
  $region9: #{decoder_forward.13} parent=0 // pred_fallthru
    _
  // Predicated region
  $region10: #{decoder_forward.13} parent=0 // pred_check
    _
  $region11: #{decoder_forward.13} parent=0 // pred_check_branch
    %13 = sbr.rel (0) target = $region13
  $region12: #{decoder_forward.13} parent=0 // pred_region
    _
  $region13: #{decoder_forward.13} parent=0 // pred_fallthru
    _
  %v14 = vld [vmem:[%s0] sm:$0xff]
  %v15 = vld [vmem:[%s0 + $0x8] sm:$0xff]
  %v16 = vld [vmem:[%s1] sm:$0x1]
  %v17 = vld [vmem:[%s2] sm:$0x1]
  %vm18 = vcmask 261120
  %v19 = vsel %vm18, %v14, 0.0
  %20 = vadd.xlane.f32.xlu0 %v19
  %v21 = vpop.xlane.xlu0 %20
  %v22 = vsel %vm18, %v15, 0.0
  %23 = vadd.xlane.f32.xlu0 %v22
  %v24 = vpop.xlane.xlu0 %23
  %v25 = vrcp.pop 32.0
  %v26 = vmul.f32 %v21, %v25
  %v27 = vmul.f32 %v24, %v25
  %v28 = vsub.f32 %v14, %v26
  %v29 = vsub.f32 %v15, %v27
  %v30 = vmul.f32 %v28, %v28
  %v31 = vmul.f32 %v29, %v29
  %v32 = vsel %vm18, %v30, 0.0
  %33 = vadd.xlane.f32.xlu0 %v32
  %v34 = vpop.xlane.xlu0 %33
  %v35 = vsel %vm18, %v31, 0.0
  %36 = vadd.xlane.f32.xlu0 %v35
  %v37 = vpop.xlane.xlu0 %36
  %v38 = vmul.f32 %v34, %v25
  %v39 = vmul.f32 %v37, %v25
  %v40 = vadd.f32 %v38, 1e-06
  %v41 = vadd.f32 %v39, 1e-06
  %v42 = vrsqrt.pop %v40
  %v43 = vrsqrt.pop %v41
  %v44 = vmul.f32 %v28, %v42
  %v45 = vmul.f32 %v29, %v43
  %v47 = vlaneseq
  %v48 = vshrl.u32 %v47, 7
  %v49 = vsub.s32 0, %v48
  %v50 = vrot.slane %v16, %v49
  %v52 = vmul.f32 %v44, %v50
  %v53 = vmul.f32 %v45, %v50
  %v55 = vlaneseq
  %v56 = vshrl.u32 %v55, 7
  %v57 = vsub.s32 0, %v56
  %v58 = vrot.slane %v17, %v57
  %v60 = vadd.f32 %v52, %v58
  %v61 = vadd.f32 %v53, %v58
  %62 = vst.msk [vmem:[%s3] sm:$0xff] %vm18, %v60
  %63 = vst.msk [vmem:[%s3 + $0x8] sm:$0xff] %vm18, %v61
  // Predicated region
  $region14: #{decoder_forward.13} parent=0 // pred_check
    _
  $region15: #{decoder_forward.13} parent=0 // pred_check_branch
    %65 = sbr.rel (0) target = $region17
  $region16: #{decoder_forward.13} parent=0 // pred_region
    _
  $region17: #{decoder_forward.13} parent=0 // pred_fallthru
    _
  // Predicated region
  $region18: #{decoder_forward.13} parent=0 // pred_check
    _
  $region19: #{decoder_forward.13} parent=0 // pred_check_branch
    %67 = sbr.rel (0) target = $region21
  $region20: #{decoder_forward.13} parent=0 // pred_region
    _
  $region21: #{decoder_forward.13} parent=0 // pred_fallthru
    _

// kernel: decoder_forward.9
$region0: #{decoder_forward.9}
  #allocation0 [shape = 'u32[]', space=smem, size = 0x4, offset = 0x4, fixed_abs, tag = 'smem constant byte address 0x4 - core index']
  #allocation1 [shape = 'u32[144,128]{1,0:T(1,128)}', space=vmem, size = 0x12000, scoped, tag = 'internal scratch']
  %s0 = inlined_call_operand.vmem [shape: f32[16,32], index: 0, kind: input, shape index: {}, may-alias: {0,7}]
  %s1 = inlined_call_operand.vmem [shape: f32[1,32], index: 1, kind: input, shape index: {}]
  %s2 = inlined_call_operand.vmem [shape: f32[1,32], index: 2, kind: input, shape index: {}]
  %s3 = inlined_call_operand.vmem [shape: bf16[32,64], index: 3, kind: input, shape index: {}]
  %s4 = inlined_call_operand.vmem [shape: f32[1,64], index: 4, kind: input, shape index: {}]
  %s5 = inlined_call_operand.vmem [shape: bf16[64,32], index: 5, kind: input, shape index: {}]
  %s6 = inlined_call_operand.vmem [shape: f32[1,32], index: 6, kind: input, shape index: {}]
  %s7 = inlined_call_operand.vmem [shape: f32[16,32], index: 7, kind: output, shape index: {}, may-alias: {0,7}]
  %s8 = sld [smem:[#allocation0]]
  $region38: #{decoder_forward.9} parent=0
    _
  %s10 = ssub.s32 1, %s8
  %s11 = scalar_select 0, %s10, %s8
  // Predicated region
  $region2: #{decoder_forward.9} parent=0 // pred_check
    _
  $region3: #{decoder_forward.9} parent=0 // pred_check_branch
    %13 = sbr.rel (0) target = $region5
  $region4: #{decoder_forward.9} parent=0 // pred_region
    _
  $region5: #{decoder_forward.9} parent=0 // pred_fallthru
    _
  // Predicated region
  $region6: #{decoder_forward.9} parent=0 // pred_check
    _
  $region7: #{decoder_forward.9} parent=0 // pred_check_branch
    %15 = sbr.rel (0) target = $region9
  $region8: #{decoder_forward.9} parent=0 // pred_region
    _
  $region9: #{decoder_forward.9} parent=0 // pred_fallthru
    _
  // Predicated region
  $region10: #{decoder_forward.9} parent=0 // pred_check
    _
  $region11: #{decoder_forward.9} parent=0 // pred_check_branch
    %17 = sbr.rel (0) target = $region13
  $region12: #{decoder_forward.9} parent=0 // pred_region
    _
  $region13: #{decoder_forward.9} parent=0 // pred_fallthru
    _
  // Predicated region
  $region14: #{decoder_forward.9} parent=0 // pred_check
    _
  $region15: #{decoder_forward.9} parent=0 // pred_check_branch
    %19 = sbr.rel (0) target = $region17
  $region16: #{decoder_forward.9} parent=0 // pred_region
    _
  $region17: #{decoder_forward.9} parent=0 // pred_fallthru
    _
  // Predicated region
  $region18: #{decoder_forward.9} parent=0 // pred_check
    _
  $region19: #{decoder_forward.9} parent=0 // pred_check_branch
    %21 = sbr.rel (0) target = $region21
  $region20: #{decoder_forward.9} parent=0 // pred_region
    _
  $region21: #{decoder_forward.9} parent=0 // pred_fallthru
    _
  // Predicated region
  $region22: #{decoder_forward.9} parent=0 // pred_check
    _
  $region23: #{decoder_forward.9} parent=0 // pred_check_branch
    %23 = sbr.rel (0) target = $region25
  $region24: #{decoder_forward.9} parent=0 // pred_region
    _
  $region25: #{decoder_forward.9} parent=0 // pred_fallthru
    _
  // Predicated region
  $region26: #{decoder_forward.9} parent=0 // pred_check
    _
  $region27: #{decoder_forward.9} parent=0 // pred_check_branch
    %25 = sbr.rel (0) target = $region29
  $region28: #{decoder_forward.9} parent=0 // pred_region
    _
  $region29: #{decoder_forward.9} parent=0 // pred_fallthru
    _
  %v27 = vld [vmem:[%s0] sm:$0xff]
  %v28 = vld [vmem:[%s0 + $0x8] sm:$0xff]
  %v29 = vld [vmem:[%s1] sm:$0x1]
  %v30 = vld [vmem:[%s2] sm:$0x1]
  %vm31 = vcmask 261120
  %v32 = vsel %vm31, %v27, 0.0
  %33 = vadd.xlane.f32.xlu0 %v32
  %v34 = vpop.xlane.xlu0 %33
  %v35 = vsel %vm31, %v28, 0.0
  %36 = vadd.xlane.f32.xlu0 %v35
  %v37 = vpop.xlane.xlu0 %36
  %v38 = vrcp.pop 32.0
  %v39 = vmul.f32 %v34, %v38
  %v40 = vmul.f32 %v37, %v38
  %v41 = vsub.f32 %v27, %v39
  %v42 = vsub.f32 %v28, %v40
  %v43 = vmul.f32 %v41, %v41
  %v44 = vmul.f32 %v42, %v42
  %v45 = vsel %vm31, %v43, 0.0
  %46 = vadd.xlane.f32.xlu0 %v45
  %v47 = vpop.xlane.xlu0 %46
  %v48 = vsel %vm31, %v44, 0.0
  %49 = vadd.xlane.f32.xlu0 %v48
  %v50 = vpop.xlane.xlu0 %49
  %v51 = vmul.f32 %v47, %v38
  %v52 = vmul.f32 %v50, %v38
  %v53 = vadd.f32 %v51, 1e-06
  %v54 = vadd.f32 %v52, 1e-06
  %v55 = vrsqrt.pop %v53
  %v56 = vrsqrt.pop %v54
  %v57 = vmul.f32 %v41, %v55
  %v58 = vmul.f32 %v42, %v56
  %v60 = vlaneseq
  %v61 = vshrl.u32 %v60, 7
  %v62 = vsub.s32 0, %v61
  %v63 = vrot.slane %v29, %v62
  %v65 = vmul.f32 %v57, %v63
  %v66 = vmul.f32 %v58, %v63
  %v68 = vlaneseq
  %v69 = vshrl.u32 %v68, 7
  %v70 = vsub.s32 0, %v69
  %v71 = vrot.slane %v30, %v70
  %v73 = vadd.f32 %v65, %v71
  %v74 = vadd.f32 %v66, %v71
  %v75 = vpack.c.bf16 %v74, %v73
  %v76 = vld [vmem:[%s3] sm:$0xf]
  %v77 = vld [vmem:[%s3 + $0x4] sm:$0xf]
  %v78 = vld [vmem:[%s3 + $0x8] sm:$0xf]
  %v79 = vld [vmem:[%s3 + $0xc] sm:$0xf]
  %v80 = vld [vmem:[%s4] sm:$0x1]
  %v82 = vlaneseq
  %v83 = vshrl.u32 %v82, 7
  %v84 = vsub.s32 0, %v83
  %v85 = vrot.slane %v80, %v84
  %v91 = vunpack.c.l.b16 %v76
  %v92 = vunpack.c.l.b16 %v77
  %v93 = vunpack.c.l.b16 %v78
  %v94 = vunpack.c.l.b16 %v79
  %v95 = vpack.c.b16 %v92, %v91
  %v96 = vpack.c.b16 %v94, %v93
  %v100 = vsel %vm31, %v75, 0
  %102 = vmatprep.subr.bf16.mxu0 0
  %103 = vmatpush1.bf16.msra.mxu0 %v95
  %104 = vmatprep.subr.bf16.mxu0 0
  %105 = vmatpush1.bf16.msra.mxu0 %v96
  %106 = vmatprep.subr.bf16.mxu0 0
  %107 = vmatpush1.bf16.msra.mxu0 0
  %108 = vmatprep.subr.bf16.mxu0 0
  %109 = vmatpush1.bf16.msra.mxu0 0
  %110 = vmatprep.subr.bf16.mxu0 0
  %111 = vmatpush1.bf16.msra.mxu0 0
  %112 = vmatprep.subr.bf16.mxu0 0
  %113 = vmatpush1.bf16.msra.mxu0 0
  %114 = vmatprep.subr.bf16.mxu0 0
  %115 = vmatpush1.bf16.msra.mxu0 0
  %116 = vmatprep.subr.bf16.mxu0 0
  %117 = vmatpush1.bf16.msra.mxu0 0
  %118 = vmatprep.subr.bf16.mxu0 0
  %119 = vmatpush1.bf16.msra.mxu0 0
  %120 = vmatprep.subr.bf16.mxu0 0
  %121 = vmatpush1.bf16.msra.mxu0 0
  %122 = vmatprep.subr.bf16.mxu0 0
  %123 = vmatpush1.bf16.msra.mxu0 0
  %124 = vmatprep.subr.bf16.mxu0 0
  %125 = vmatpush1.bf16.msra.mxu0 0
  %126 = vmatprep.subr.bf16.mxu0 0
  %127 = vmatpush1.bf16.msra.mxu0 0
  %128 = vmatprep.subr.bf16.mxu0 0
  %129 = vmatpush1.bf16.msra.mxu0 0
  %130 = vmatprep.subr.bf16.mxu0 0
  %131 = vmatpush1.bf16.msra.mxu0 0
  %132 = vmatprep.subr.bf16.mxu0 0
  %133 = vmatpush1.bf16.msra.mxu0 0
  %134 = vmatprep.mubr.bf16.mxu0 0
  %135 = vmatmul.mubr.bf16.gmra.mrb[0].mxu0 %v100
  %v136 = vpop.f32.mrb[0].mxu0
  %v137 = vadd.f32 %v85, %v136
  %v138 = vpop.f32.mrb[0].mxu0
  %v139 = vpop.f32.mrb[0].mxu0
  %v140 = vadd.f32 %v85, %v139
  %v141 = vpop.f32.mrb[0].mxu0
  %142 = vdwg.mxu0
  %v143 = vmax.f32 %v137, 0.0
  %v144 = vmax.f32 %v140, 0.0
  %v145 = vpack.c.bf16 %v144, %v143
  %v146 = vld [vmem:[%s5] sm:$0xf]
  %v147 = vld [vmem:[%s5 + $0x4] sm:$0xf]
  %v148 = vld [vmem:[%s5 + $0x8] sm:$0xf]
  %v149 = vld [vmem:[%s5 + $0xc] sm:$0xf]
  %v150 = vld [vmem:[%s5 + $0x10] sm:$0xf]
  %v151 = vld [vmem:[%s5 + $0x14] sm:$0xf]
  %v152 = vld [vmem:[%s5 + $0x18] sm:$0xf]
  %v153 = vld [vmem:[%s5 + $0x1c] sm:$0xf]
  %v154 = vld [vmem:[%s6] sm:$0x1]
  %v156 = vlaneseq
  %v157 = vshrl.u32 %v156, 7
  %v158 = vsub.s32 0, %v157
  %v159 = vrot.slane %v154, %v158
  %v169 = vunpack.c.l.b16 %v146
  %v170 = vunpack.c.l.b16 %v147
  %v171 = vunpack.c.l.b16 %v148
  %v172 = vunpack.c.l.b16 %v149
  %v173 = vunpack.c.l.b16 %v150
  %v174 = vunpack.c.l.b16 %v151
  %v175 = vunpack.c.l.b16 %v152
  %v176 = vunpack.c.l.b16 %v153
  %v177 = vpack.c.b16 %v170, %v169
  %v178 = vpack.c.b16 %v172, %v171
  %v179 = vpack.c.b16 %v174, %v173
  %v180 = vpack.c.b16 %v176, %v175
  %vm185 = vcmask 523264
  %v187 = vsel %vm185, %v145, 0
  %189 = vmatprep.subr.bf16.mxu0 0
  %190 = vmatpush1.bf16.msra.mxu0 %v177
  %191 = vmatprep.subr.bf16.mxu0 0
  %192 = vmatpush1.bf16.msra.mxu0 %v178
  %193 = vmatprep.subr.bf16.mxu0 0
  %194 = vmatpush1.bf16.msra.mxu0 %v179
  %195 = vmatprep.subr.bf16.mxu0 0
  %196 = vmatpush1.bf16.msra.mxu0 %v180
  %197 = vmatprep.subr.bf16.mxu0 0
  %198 = vmatpush1.bf16.msra.mxu0 0
  %199 = vmatprep.subr.bf16.mxu0 0
  %200 = vmatpush1.bf16.msra.mxu0 0
  %201 = vmatprep.subr.bf16.mxu0 0
  %202 = vmatpush1.bf16.msra.mxu0 0
  %203 = vmatprep.subr.bf16.mxu0 0
  %204 = vmatpush1.bf16.msra.mxu0 0
  %205 = vmatprep.subr.bf16.mxu0 0
  %206 = vmatpush1.bf16.msra.mxu0 0
  %207 = vmatprep.subr.bf16.mxu0 0
  %208 = vmatpush1.bf16.msra.mxu0 0
  %209 = vmatprep.subr.bf16.mxu0 0
  %210 = vmatpush1.bf16.msra.mxu0 0
  %211 = vmatprep.subr.bf16.mxu0 0
  %212 = vmatpush1.bf16.msra.mxu0 0
  %213 = vmatprep.subr.bf16.mxu0 0
  %214 = vmatpush1.bf16.msra.mxu0 0
  %215 = vmatprep.subr.bf16.mxu0 0
  %216 = vmatpush1.bf16.msra.mxu0 0
  %217 = vmatprep.subr.bf16.mxu0 0
  %218 = vmatpush1.bf16.msra.mxu0 0
  %219 = vmatprep.subr.bf16.mxu0 0
  %220 = vmatpush1.bf16.msra.mxu0 0
  %221 = vmatprep.mubr.bf16.mxu0 0
  %222 = vmatmul.mubr.bf16.gmra.mrb[0].mxu0 %v187
  %v223 = vpop.f32.mrb[0].mxu0
  %v224 = vadd.f32 %v159, %v223
  %v225 = vpop.f32.mrb[0].mxu0
  %v226 = vpop.f32.mrb[0].mxu0
  %v227 = vadd.f32 %v159, %v226
  %v228 = vpop.f32.mrb[0].mxu0
  %229 = vdwg.mxu0
  %v230 = vadd.f32 %v224, %v27
  %v231 = vadd.f32 %v227, %v28
  %232 = vst.msk [vmem:[%s7] sm:$0xff] %vm31, %v230
  %233 = vst.msk [vmem:[%s7 + $0x8] sm:$0xff] %vm31, %v231
  // Predicated region
  $region30: #{decoder_forward.9} parent=0 // pred_check
    _
  $region31: #{decoder_forward.9} parent=0 // pred_check_branch
    %235 = sbr.rel (0) target = $region33
  $region32: #{decoder_forward.9} parent=0 // pred_region
    _
  $region33: #{decoder_forward.9} parent=0 // pred_fallthru
    _
  // Predicated region
  $region34: #{decoder_forward.9} parent=0 // pred_check
    _
  $region35: #{decoder_forward.9} parent=0 // pred_check_branch
    %237 = sbr.rel (0) target = $region37
  $region36: #{decoder_forward.9} parent=0 // pred_region
    _
  $region37: #{decoder_forward.9} parent=0 // pred_fallthru
    _

// kernel: decoder_forward.7
$region0: #{decoder_forward.7}
  #allocation0 [shape = 'u32[]', space=smem, size = 0x4, offset = 0x4, fixed_abs, tag = 'smem constant byte address 0x4 - core index']
  #allocation1 [shape = 'u32[144,128]{1,0:T(1,128)}', space=vmem, size = 0x12000, scoped, tag = 'internal scratch']
  #allocation2 [shape = 'f32[8,32]{1,0:T(8,128)}', space=vmem, size = 0x1000, scoped, tag = 'scratch operand']
  %s0 = inlined_call_operand.vmem [shape: f32[2,8,32], index: 0, kind: input, shape index: {}, may-alias: {0,8}]
  %s1 = inlined_call_operand.vmem [shape: f32[8,8], index: 1, kind: input, shape index: {}]
  %s2 = inlined_call_operand.vmem [shape: f32[1,32], index: 2, kind: input, shape index: {}]
  %s3 = inlined_call_operand.vmem [shape: f32[1,32], index: 3, kind: input, shape index: {}]
  %s4 = inlined_call_operand.vmem [shape: bf16[32,96], index: 4, kind: input, shape index: {}]
  %s5 = inlined_call_operand.vmem [shape: f32[1,96], index: 5, kind: input, shape index: {}]
  %s6 = inlined_call_operand.vmem [shape: bf16[32,32], index: 6, kind: input, shape index: {}]
  %s7 = inlined_call_operand.vmem [shape: f32[1,32], index: 7, kind: input, shape index: {}]
  %s8 = inlined_call_operand.vmem [shape: f32[2,8,32], index: 8, kind: output, shape index: {}, may-alias: {0,8}]
  %s9 = sld [smem:[#allocation0]]
  $region65: #{decoder_forward.7} parent=0
    _
  %s11 = ssub.s32 1, %s9
  %s12 = scalar_select 0, %s11, %s9
  loop: start=0, step=1, limit=4
  $region2: #{decoder_forward.7} parent=0 // loop_pre_header
    _
  $region3: #{decoder_forward.7} parent=0 // loop_header
    %s14 = sphi 0, %s18
    %p15 = scmp.ge.s32.totalorder %s14, 4
    %s24 = sphi 0, %s26
    %s27 = sphi 0, %s24
    %s28 = sphi 0, %s27
    %s44 = sphi 0, %s28
    %s48 = sphi 0, %s48
    %s50 = sphi 0, %s48
    %s51 = sphi 0, %s50
    %s65 = sphi 0, %s51
    %s69 = sphi 0, %s69
    %s71 = sphi 0, %s69
    %s72 = sphi 0, %s71
    %s86 = sphi 0, %s72
    %s90 = sphi 0, %s90
    %s92 = sphi 0, %s90
    %s93 = sphi 0, %s92
    %s107 = sphi 0, %s93
    %s111 = sphi 0, %s111
    %s113 = sphi 0, %s111
    %s114 = sphi 0, %s113
    %s128 = sphi 0, %s114
    %s132 = sphi 0, %s132
    %s134 = sphi 0, %s132
    %s135 = sphi 0, %s134
    %s149 = sphi 0, %s135
    %s153 = sphi 0, %s153
    %s155 = sphi 0, %s153
    %s156 = sphi 0, %s155
    %s170 = sphi 0, %s156
    %s174 = sphi 0, %s174
    %s176 = sphi 0, %s174
    %s177 = sphi 0, %s176
    %s191 = sphi 0, %s177
    %s197 = sphi 0, %s199
    %s200 = sphi 0, %s197
    %s201 = sphi 0, %s200
    %s217 = sphi 0, %s201
  $region4: #{decoder_forward.7} parent=0 // loop_header_branch
    %17 = sbr.rel (%p15) target = $region8
  $region5: #{decoder_forward.7} parent=0 // loop_body
    %s19 = ssub.s32 %s14, 1
    %s20 = ssub.s32 %s14, 2
    %s21 = sadd.s32 %s14, 1
    %s22 = ssub.s32 %s14, %s21
    %p23 = scmp.eq.s32.totalorder %s22, 0
    %s25 = sadd.s32 %s24, 1
    %s26 = scalar_select %p23, %s24, %s25
    %p29 = pneg %p23
    %p30 = scmp.eq.s32.totalorder %s14, 1
    %p31 = por %p29, %p30
    %p32 = scmp.ne.s32.totalorder %s24, %s27
    %p33 = scmp.eq.s32.totalorder %s14, 0
    %p34 = por %p32, %p33
    %p35 = scmp.ne.s32.totalorder %s24, %s27
    %p36 = scmp.eq.s32.totalorder %s19, 1
    %p37 = por %p35, %p36
    %p38 = scmp.ne.s32.totalorder %s27, %s28
    %p39 = scmp.eq.s32.totalorder %s19, 0
    %p40 = por %p38, %p39
    %p41 = scmp.ne.s32.totalorder %s27, %s28
    %p42 = scmp.eq.s32.totalorder %s20, 1
    %p43 = por %p41, %p42
    %p45 = scmp.ne.s32.totalorder %s28, %s44
    %p46 = scmp.eq.s32.totalorder %s20, 0
    %p47 = por %p45, %p46
    %s49 = sadd.s32 %s48, 1
    %p52 = scmp.eq.s32.totalorder %s14, 1
    %p53 = scmp.ne.s32.totalorder %s48, %s50
    %p54 = scmp.eq.s32.totalorder %s14, 0
    %p55 = por %p53, %p54
    %p56 = scmp.ne.s32.totalorder %s48, %s50
    %p57 = scmp.eq.s32.totalorder %s19, 1
    %p58 = por %p56, %p57
    %p59 = scmp.ne.s32.totalorder %s50, %s51
    %p60 = scmp.eq.s32.totalorder %s19, 0
    %p61 = por %p59, %p60
    %p62 = scmp.ne.s32.totalorder %s50, %s51
    %p63 = scmp.eq.s32.totalorder %s20, 1
    %p64 = por %p62, %p63
    %p66 = scmp.ne.s32.totalorder %s51, %s65
    %p67 = scmp.eq.s32.totalorder %s20, 0
    %p68 = por %p66, %p67
    %s70 = sadd.s32 %s69, 1
    %p73 = scmp.eq.s32.totalorder %s14, 1
    %p74 = scmp.ne.s32.totalorder %s69, %s71
    %p75 = scmp.eq.s32.totalorder %s14, 0
    %p76 = por %p74, %p75
    %p77 = scmp.ne.s32.totalorder %s69, %s71
    %p78 = scmp.eq.s32.totalorder %s19, 1
    %p79 = por %p77, %p78
    %p80 = scmp.ne.s32.totalorder %s71, %s72
    %p81 = scmp.eq.s32.totalorder %s19, 0
    %p82 = por %p80, %p81
    %p83 = scmp.ne.s32.totalorder %s71, %s72
    %p84 = scmp.eq.s32.totalorder %s20, 1
    %p85 = por %p83, %p84
    %p87 = scmp.ne.s32.totalorder %s72, %s86
    %p88 = scmp.eq.s32.totalorder %s20, 0
    %p89 = por %p87, %p88
    %s91 = sadd.s32 %s90, 1
    %p94 = scmp.eq.s32.totalorder %s14, 1
    %p95 = scmp.ne.s32.totalorder %s90, %s92
    %p96 = scmp.eq.s32.totalorder %s14, 0
    %p97 = por %p95, %p96
    %p98 = scmp.ne.s32.totalorder %s90, %s92
    %p99 = scmp.eq.s32.totalorder %s19, 1
    %p100 = por %p98, %p99
    %p101 = scmp.ne.s32.totalorder %s92, %s93
    %p102 = scmp.eq.s32.totalorder %s19, 0
    %p103 = por %p101, %p102
    %p104 = scmp.ne.s32.totalorder %s92, %s93
    %p105 = scmp.eq.s32.totalorder %s20, 1
    %p106 = por %p104, %p105
    %p108 = scmp.ne.s32.totalorder %s93, %s107
    %p109 = scmp.eq.s32.totalorder %s20, 0
    %p110 = por %p108, %p109
    %s112 = sadd.s32 %s111, 1
    %p115 = scmp.eq.s32.totalorder %s14, 1
    %p116 = scmp.ne.s32.totalorder %s111, %s113
    %p117 = scmp.eq.s32.totalorder %s14, 0
    %p118 = por %p116, %p117
    %p119 = scmp.ne.s32.totalorder %s111, %s113
    %p120 = scmp.eq.s32.totalorder %s19, 1
    %p121 = por %p119, %p120
    %p122 = scmp.ne.s32.totalorder %s113, %s114
    %p123 = scmp.eq.s32.totalorder %s19, 0
    %p124 = por %p122, %p123
    %p125 = scmp.ne.s32.totalorder %s113, %s114
    %p126 = scmp.eq.s32.totalorder %s20, 1
    %p127 = por %p125, %p126
    %p129 = scmp.ne.s32.totalorder %s114, %s128
    %p130 = scmp.eq.s32.totalorder %s20, 0
    %p131 = por %p129, %p130
    %s133 = sadd.s32 %s132, 1
    %p136 = scmp.eq.s32.totalorder %s14, 1
    %p137 = scmp.ne.s32.totalorder %s132, %s134
    %p138 = scmp.eq.s32.totalorder %s14, 0
    %p139 = por %p137, %p138
    %p140 = scmp.ne.s32.totalorder %s132, %s134
    %p141 = scmp.eq.s32.totalorder %s19, 1
    %p142 = por %p140, %p141
    %p143 = scmp.ne.s32.totalorder %s134, %s135
    %p144 = scmp.eq.s32.totalorder %s19, 0
    %p145 = por %p143, %p144
    %p146 = scmp.ne.s32.totalorder %s134, %s135
    %p147 = scmp.eq.s32.totalorder %s20, 1
    %p148 = por %p146, %p147
    %p150 = scmp.ne.s32.totalorder %s135, %s149
    %p151 = scmp.eq.s32.totalorder %s20, 0
    %p152 = por %p150, %p151
    %s154 = sadd.s32 %s153, 1
    %p157 = scmp.eq.s32.totalorder %s14, 1
    %p158 = scmp.ne.s32.totalorder %s153, %s155
    %p159 = scmp.eq.s32.totalorder %s14, 0
    %p160 = por %p158, %p159
    %p161 = scmp.ne.s32.totalorder %s153, %s155
    %p162 = scmp.eq.s32.totalorder %s19, 1
    %p163 = por %p161, %p162
    %p164 = scmp.ne.s32.totalorder %s155, %s156
    %p165 = scmp.eq.s32.totalorder %s19, 0
    %p166 = por %p164, %p165
    %p167 = scmp.ne.s32.totalorder %s155, %s156
    %p168 = scmp.eq.s32.totalorder %s20, 1
    %p169 = por %p167, %p168
    %p171 = scmp.ne.s32.totalorder %s156, %s170
    %p172 = scmp.eq.s32.totalorder %s20, 0
    %p173 = por %p171, %p172
    %s175 = sadd.s32 %s174, 1
    %p178 = scmp.eq.s32.totalorder %s14, 1
    %p179 = scmp.ne.s32.totalorder %s174, %s176
    %p180 = scmp.eq.s32.totalorder %s14, 0
    %p181 = por %p179, %p180
    %p182 = scmp.ne.s32.totalorder %s174, %s176
    %p183 = scmp.eq.s32.totalorder %s19, 1
    %p184 = por %p182, %p183
    %p185 = scmp.ne.s32.totalorder %s176, %s177
    %p186 = scmp.eq.s32.totalorder %s19, 0
    %p187 = por %p185, %p186
    %p188 = scmp.ne.s32.totalorder %s176, %s177
    %p189 = scmp.eq.s32.totalorder %s20, 1
    %p190 = por %p188, %p189
    %p192 = scmp.ne.s32.totalorder %s177, %s191
    %p193 = scmp.eq.s32.totalorder %s20, 0
    %p194 = por %p192, %p193
    %s195 = ssub.s32 %s14, %s21
    %p196 = scmp.eq.s32.totalorder %s195, 0
    %s198 = sadd.s32 %s197, 1
    %s199 = scalar_select %p196, %s197, %s198
    %p202 = pneg %p196
    %p203 = scmp.eq.s32.totalorder %s14, 1
    %p204 = por %p202, %p203
    %p205 = scmp.ne.s32.totalorder %s197, %s200
    %p206 = scmp.eq.s32.totalorder %s14, 0
    %p207 = por %p205, %p206
    %p208 = scmp.ne.s32.totalorder %s197, %s200
    %p209 = scmp.eq.s32.totalorder %s19, 1
    %p210 = por %p208, %p209
    %p211 = scmp.ne.s32.totalorder %s200, %s201
    %p212 = scmp.eq.s32.totalorder %s19, 0
    %p213 = por %p211, %p212
    %p214 = scmp.ne.s32.totalorder %s200, %s201
    %p215 = scmp.eq.s32.totalorder %s20, 1
    %p216 = por %p214, %p215
    %p218 = scmp.ne.s32.totalorder %s201, %s217
    %p219 = scmp.eq.s32.totalorder %s20, 0
    %p220 = por %p218, %p219
    %p221 = scmp.le.s32.totalorder 1, %s14
    %p222 = scmp.lt.s32.totalorder %s14, 3
    %p223 = pnand %p221, %p222
    %p224 = pneg %p223
    // Predicated region
    $region9: #{decoder_forward.7} parent=5 // pred_check
      _
    $region10: #{decoder_forward.7} parent=5 // pred_check_branch
      %226 = sbr.rel (%p223) target = $region12
    $region11: #{decoder_forward.7} parent=5 // pred_region
      %s227 = ssub.s32 %s14, 1
      // Predicated region
      $region13: #{decoder_forward.7} parent=11 // pred_check
        %p228 = pneg %p61
      $region14: #{decoder_forward.7} parent=11 // pred_check_branch
        %230 = sbr.rel (%p228) target = $region16
      $region15: #{decoder_forward.7} parent=11 // pred_region
        _
      $region16: #{decoder_forward.7} parent=11 // pred_fallthru
        _
      // Predicated region
      $region17: #{decoder_forward.7} parent=11 // pred_check
        %p231 = pneg %p82
      $region18: #{decoder_forward.7} parent=11 // pred_check_branch
        %233 = sbr.rel (%p231) target = $region20
      $region19: #{decoder_forward.7} parent=11 // pred_region
        _
      $region20: #{decoder_forward.7} parent=11 // pred_fallthru
        _
      // Predicated region
      $region21: #{decoder_forward.7} parent=11 // pred_check
        %p234 = pneg %p103
      $region22: #{decoder_forward.7} parent=11 // pred_check_branch
        %236 = sbr.rel (%p234) target = $region24
      $region23: #{decoder_forward.7} parent=11 // pred_region
        _
      $region24: #{decoder_forward.7} parent=11 // pred_fallthru
        _
      // Predicated region
      $region25: #{decoder_forward.7} parent=11 // pred_check
        %p237 = pneg %p124
      $region26: #{decoder_forward.7} parent=11 // pred_check_branch
        %239 = sbr.rel (%p237) target = $region28
      $region27: #{decoder_forward.7} parent=11 // pred_region
        _
      $region28: #{decoder_forward.7} parent=11 // pred_fallthru
        _
      // Predicated region
      $region29: #{decoder_forward.7} parent=11 // pred_check
        %p240 = pneg %p145
      $region30: #{decoder_forward.7} parent=11 // pred_check_branch
        %242 = sbr.rel (%p240) target = $region32
      $region31: #{decoder_forward.7} parent=11 // pred_region
        _
      $region32: #{decoder_forward.7} parent=11 // pred_fallthru
        _
      // Predicated region
      $region33: #{decoder_forward.7} parent=11 // pred_check
        %p243 = pneg %p166
      $region34: #{decoder_forward.7} parent=11 // pred_check_branch
        %245 = sbr.rel (%p243) target = $region36
      $region35: #{decoder_forward.7} parent=11 // pred_region
        _
      $region36: #{decoder_forward.7} parent=11 // pred_fallthru
        _
      // Predicated region
      $region37: #{decoder_forward.7} parent=11 // pred_check
        %p246 = pneg %p187
      $region38: #{decoder_forward.7} parent=11 // pred_check_branch
        %248 = sbr.rel (%p246) target = $region40
      $region39: #{decoder_forward.7} parent=11 // pred_region
        _
      $region40: #{decoder_forward.7} parent=11 // pred_fallthru
        _
    $region12: #{decoder_forward.7} parent=5 // pred_fallthru
      _
    %p249 = scmp.lt.s32.totalorder %s14, 2
    // Predicated region
    $region41: #{decoder_forward.7} parent=5 // pred_check
      %p250 = pneg %p249
    $region42: #{decoder_forward.7} parent=5 // pred_check_branch
      %252 = sbr.rel (%p250) target = $region44
    $region43: #{decoder_forward.7} parent=5 // pred_region
      // Predicated region
      $region45: #{decoder_forward.7} parent=43 // pred_check
        %p253 = pneg %p34
      $region46: #{decoder_forward.7} parent=43 // pred_check_branch
        %255 = sbr.rel (%p253) target = $region48
      $region47: #{decoder_forward.7} parent=43 // pred_region
        %p256 = scmp.lt.s32.totalorder %s14, 1
        %s257 = scalar_select %p256, %s14, 1
        %s258 = smul.addr %s257, 8
        %s259 = scalar_lea.vmem %s0, %s258
      $region48: #{decoder_forward.7} parent=43 // pred_fallthru
        _
    $region44: #{decoder_forward.7} parent=5 // pred_fallthru
      _
    %p260 = scmp.le.s32.totalorder 1, %s14
    %p261 = scmp.lt.s32.totalorder %s14, 3
    %p262 = pnand %p260, %p261
    %p263 = pneg %p262
    // Predicated region
    $region49: #{decoder_forward.7} parent=5 // pred_check
      _
    $region50: #{decoder_forward.7} parent=5 // pred_check_branch
      %265 = sbr.rel (%p262) target = $region52
    $region51: #{decoder_forward.7} parent=5 // pred_region
      %s266 = ssub.s32 %s14, 1
      %p267 = scmp.lt.s32.totalorder %s19, 1
      %s268 = scalar_select %p267, %s19, 1
      %s269 = smul.addr %s268, 8
      %s270 = scalar_lea.vmem %s0, %s269
      %p271 = pneg %p40
      %p272 = pneg %p37
      %p273 = pneg %p61
      %p274 = pneg %p58
      %p275 = pneg %p82
      %p276 = pneg %p79
      %p277 = pneg %p103
      %p278 = pneg %p100
      %p279 = pneg %p124
      %p280 = pneg %p121
      %p281 = pneg %p145
      %p282 = pneg %p142
      %p283 = pneg %p166
      %p284 = pneg %p163
      %p285 = pneg %p187
      %p286 = pneg %p184
      %p287 = pneg %p213
      %p288 = pneg %p210
      %p289 = scmp.lt.s32.totalorder %s19, 1
      %s290 = scalar_select %p289, %s19, 1
      %s291 = smul.addr %s290, 8
      %s292 = scalar_lea.vmem %s8, %s291
      %p293 = scmp.lt.s32.totalorder %s19, 1
      %s294 = scalar_select %p293, %s19, 1
      %s295 = smul.addr %s294, 8
      %s296 = scalar_lea.vmem %s0, %s295
      %p297 = scmp.lt.s32.totalorder %s19, 1
      %s298 = scalar_select %p297, %s19, 1
      %s299 = smul.addr %s298, 8
      %s300 = scalar_lea.vmem %s8, %s299
      %v302 = vld [vmem:[%s296] sm:$0xff]
      %v303 = vld [vmem:[%s2] sm:$0x1]
      %v304 = vld [vmem:[%s3] sm:$0x1]
      %vm305 = vcmask 261120
      %v306 = vsel %vm305, %v302, 0.0
      %307 = vadd.xlane.f32.xlu0 %v306
      %v308 = vpop.xlane.xlu0 %307
      %v309 = vrcp.pop 32.0
      %v310 = vmul.f32 %v308, %v309
      %v311 = vsub.f32 %v302, %v310
      %v312 = vmul.f32 %v311, %v311
      %v313 = vsel %vm305, %v312, 0.0
      %314 = vadd.xlane.f32.xlu0 %v313
      %v315 = vpop.xlane.xlu0 %314
      %v316 = vmul.f32 %v315, %v309
      %v317 = vadd.f32 %v316, 1e-06
      %v318 = vrsqrt.pop %v317
      %v319 = vmul.f32 %v311, %v318
      %v321 = vlaneseq
      %v322 = vshrl.u32 %v321, 7
      %v323 = vsub.s32 0, %v322
      %v324 = vrot.slane %v303, %v323
      %v326 = vmul.f32 %v319, %v324
      %v328 = vlaneseq
      %v329 = vshrl.u32 %v328, 7
      %v330 = vsub.s32 0, %v329
      %v331 = vrot.slane %v304, %v330
      %v333 = vadd.f32 %v326, %v331
      %v334 = vpack.c.bf16 %v333, %v333
      %v335 = vld [vmem:[%s4] sm:$0xf]
      %v336 = vld [vmem:[%s4 + $0x4] sm:$0xf]
      %v337 = vld [vmem:[%s4 + $0x8] sm:$0xf]
      %v338 = vld [vmem:[%s4 + $0xc] sm:$0xf]
      %v339 = vld [vmem:[%s5] sm:$0x1]
      %v341 = vlaneseq
      %v342 = vshrl.u32 %v341, 7
      %v343 = vsub.s32 0, %v342
      %v344 = vrot.slane %v339, %v343
      %v350 = vunpack.c.l.b16 %v335
      %v351 = vunpack.c.l.b16 %v336
      %v352 = vunpack.c.l.b16 %v337
      %v353 = vunpack.c.l.b16 %v338
      %v354 = vpack.c.b16 %v351, %v350
      %v355 = vpack.c.b16 %v353, %v352
      %v359 = vsel %vm305, %v334, 0
      %361 = vmatprep.subr.bf16.mxu0 0
      %362 = vmatpush1.bf16.msra.mxu0 %v354
      %363 = vmatprep.subr.bf16.mxu0 0
      %364 = vmatpush1.bf16.msra.mxu0 %v355
      %365 = vmatprep.subr.bf16.mxu0 0
      %366 = vmatpush1.bf16.msra.mxu0 0
      %367 = vmatprep.subr.bf16.mxu0 0
      %368 = vmatpush1.bf16.msra.mxu0 0
      %369 = vmatprep.subr.bf16.mxu0 0
      %370 = vmatpush1.bf16.msra.mxu0 0
      %371 = vmatprep.subr.bf16.mxu0 0
      %372 = vmatpush1.bf16.msra.mxu0 0
      %373 = vmatprep.subr.bf16.mxu0 0
      %374 = vmatpush1.bf16.msra.mxu0 0
      %375 = vmatprep.subr.bf16.mxu0 0
      %376 = vmatpush1.bf16.msra.mxu0 0
      %377 = vmatprep.subr.bf16.mxu0 0
      %378 = vmatpush1.bf16.msra.mxu0 0
      %379 = vmatprep.subr.bf16.mxu0 0
      %380 = vmatpush1.bf16.msra.mxu0 0
      %381 = vmatprep.subr.bf16.mxu0 0
      %382 = vmatpush1.bf16.msra.mxu0 0
      %383 = vmatprep.subr.bf16.mxu0 0
      %384 = vmatpush1.bf16.msra.mxu0 0
      %385 = vmatprep.subr.bf16.mxu0 0
      %386 = vmatpush1.bf16.msra.mxu0 0
      %387 = vmatprep.subr.bf16.mxu0 0
      %388 = vmatpush1.bf16.msra.mxu0 0
      %389 = vmatprep.subr.bf16.mxu0 0
      %390 = vmatpush1.bf16.msra.mxu0 0
      %391 = vmatprep.subr.bf16.mxu0 0
      %392 = vmatpush1.bf16.msra.mxu0 0
      %393 = vmatprep.mubr.bf16.mxu0 0
      %394 = vmatmul.mubr.bf16.gmra.mrb[0].mxu0 %v359
      %v395 = vpop.f32.mrb[0].mxu0
      %v396 = vadd.f32 %v344, %v395
      %v397 = vpop.f32.mrb[0].mxu0
      %v398 = vpop.f32.mrb[0].mxu0
      %v399 = vpop.f32.mrb[0].mxu0
      %400 = vdwg.mxu0
      %v401 = vld [vmem:[%s1] sm:$0xff]
      %v402 = vpack.c.bf16 %v396, %v396
      %404 = vrot.lane.b32.xlu0 %v402, 96
      %v405 = vpop.permute.xlu0 %404
      %vm406 = vcmask 31744
      %v408 = vsel %vm406, %v402, 0
      %v411 = vsel %vm406, %v405, 0
      %413 = vmatprep.subr.bf16.mxu0 0
      %414 = vmatpush1.bf16.xpose.msra.mxu0 %v411
      %415 = vmatprep.subr.bf16.mxu0 0
      %416 = vmatpush1.bf16.xpose.msra.mxu0 0
      %417 = vmatprep.subr.bf16.mxu0 0
      %418 = vmatpush1.bf16.xpose.msra.mxu0 0
      %419 = vmatprep.subr.bf16.mxu0 0
      %420 = vmatpush1.bf16.xpose.msra.mxu0 0
      %421 = vmatprep.subr.bf16.mxu0 0
      %422 = vmatpush1.bf16.xpose.msra.mxu0 0
      %423 = vmatprep.subr.bf16.mxu0 0
      %424 = vmatpush1.bf16.xpose.msra.mxu0 0
      %425 = vmatprep.subr.bf16.mxu0 0
      %426 = vmatpush1.bf16.xpose.msra.mxu0 0
      %427 = vmatprep.subr.bf16.mxu0 0
      %428 = vmatpush1.bf16.xpose.msra.mxu0 0
      %429 = vmatprep.subr.bf16.mxu0 0
      %430 = vmatpush1.bf16.xpose.msra.mxu0 0
      %431 = vmatprep.subr.bf16.mxu0 0
      %432 = vmatpush1.bf16.xpose.msra.mxu0 0
      %433 = vmatprep.subr.bf16.mxu0 0
      %434 = vmatpush1.bf16.xpose.msra.mxu0 0
      %435 = vmatprep.subr.bf16.mxu0 0
      %436 = vmatpush1.bf16.xpose.msra.mxu0 0
      %437 = vmatprep.subr.bf16.mxu0 0
      %438 = vmatpush1.bf16.xpose.msra.mxu0 0
      %439 = vmatprep.subr.bf16.mxu0 0
      %440 = vmatpush1.bf16.xpose.msra.mxu0 0
      %441 = vmatprep.subr.bf16.mxu0 0
      %442 = vmatpush1.bf16.xpose.msra.mxu0 0
      %443 = vmatprep.subr.bf16.mxu0 0
      %444 = vmatpush1.bf16.xpose.msra.mxu0 0
      %445 = vmatprep.mubr.bf16.mxu0 0
      %446 = vmatmul.mubr.bf16.gmra.mrb[0].mxu0 %v408
      %v447 = vpop.f32.mrb[0].mxu0
      %v448 = vadd.f32 0.0, %v447
      %v449 = vpop.f32.mrb[0].mxu0
      %v450 = vpop.f32.mrb[0].mxu0
      %v451 = vpop.f32.mrb[0].mxu0
      %452 = vdwg.mxu0
      %v453 = vmul.f32 %v448, 0.5
      %v454 = vadd.f32 %v453, %v401
      %vm455 = vcmask 64512
      %v456 = vsel %vm455, %v454, -inf
      %457 = vmax.xlane.f32.xlu0 %v456
      %v458 = vpop.xlane.xlu0 %457
      %v459 = vsub.f32 %v454, %v458
      %v460 = vmul.f32 %v459, 1.442695
      %v461 = vpow.pop %v460
      %v462 = vsel %vm455, %v461, 0.0
      %463 = vadd.xlane.f32.xlu0 %v462
      %v464 = vpop.xlane.xlu0 %463
      %v465 = vrcp.pop %v464
      %v466 = vmul.f32 %v461, %v465
      %v467 = vpack.c.bf16 %v466, %v466
      %468 = vrot.lane.b32.xlu0 %v402, 64
      %v469 = vpop.permute.xlu0 %468
      %v471 = vsel %vm455, %v467, 0
      %vm473 = vcmask 1043456
      %v475 = vsel %vm473, %v469, 0
      %477 = vmatprep.subr.bf16.mxu0 0
      %478 = vmatpush1.bf16.msra.mxu0 %v475
      %479 = vmatprep.subr.bf16.mxu0 0
      %480 = vmatpush1.bf16.msra.mxu0 0
      %481 = vmatprep.subr.bf16.mxu0 0
      %482 = vmatpush1.bf16.msra.mxu0 0
      %483 = vmatprep.subr.bf16.mxu0 0
      %484 = vmatpush1.bf16.msra.mxu0 0
      %485 = vmatprep.subr.bf16.mxu0 0
      %486 = vmatpush1.bf16.msra.mxu0 0
      %487 = vmatprep.subr.bf16.mxu0 0
      %488 = vmatpush1.bf16.msra.mxu0 0
      %489 = vmatprep.subr.bf16.mxu0 0
      %490 = vmatpush1.bf16.msra.mxu0 0
      %491 = vmatprep.subr.bf16.mxu0 0
      %492 = vmatpush1.bf16.msra.mxu0 0
      %493 = vmatprep.subr.bf16.mxu0 0
      %494 = vmatpush1.bf16.msra.mxu0 0
      %495 = vmatprep.subr.bf16.mxu0 0
      %496 = vmatpush1.bf16.msra.mxu0 0
      %497 = vmatprep.subr.bf16.mxu0 0
      %498 = vmatpush1.bf16.msra.mxu0 0
      %499 = vmatprep.subr.bf16.mxu0 0
      %500 = vmatpush1.bf16.msra.mxu0 0
      %501 = vmatprep.subr.bf16.mxu0 0
      %502 = vmatpush1.bf16.msra.mxu0 0
      %503 = vmatprep.subr.bf16.mxu0 0
      %504 = vmatpush1.bf16.msra.mxu0 0
      %505 = vmatprep.subr.bf16.mxu0 0
      %506 = vmatpush1.bf16.msra.mxu0 0
      %507 = vmatprep.subr.bf16.mxu0 0
      %508 = vmatpush1.bf16.msra.mxu0 0
      %509 = vmatprep.mubr.bf16.mxu0 0
      %510 = vmatmul.mubr.bf16.gmra.mrb[0].mxu0 %v471
      %v511 = vpop.f32.mrb[0].mxu0
      %v512 = vadd.f32 0.0, %v511
      %v513 = vpop.f32.mrb[0].mxu0
      %v514 = vpop.f32.mrb[0].mxu0
      %v515 = vpop.f32.mrb[0].mxu0
      %516 = vdwg.mxu0
      %517 = vst.msk [vmem:[#allocation2] sm:$0xff] %vm406, %v512
      %518 = vrot.lane.b32.xlu0 %v402, 124
      %v519 = vpop.permute.xlu0 %518
      %520 = vrot.lane.b32.xlu0 %v402, 92
      %v521 = vpop.permute.xlu0 %520
      %v523 = vsel %vm406, %v519, 0
      %v526 = vsel %vm406, %v521, 0
      %528 = vmatprep.subr.bf16.mxu0 0
      %529 = vmatpush1.bf16.xpose.msra.mxu0 %v526
      %530 = vmatprep.subr.bf16.mxu0 0
      %531 = vmatpush1.bf16.xpose.msra.mxu0 0
      %532 = vmatprep.subr.bf16.mxu0 0
      %533 = vmatpush1.bf16.xpose.msra.mxu0 0
      %534 = vmatprep.subr.bf16.mxu0 0
      %535 = vmatpush1.bf16.xpose.msra.mxu0 0
      %536 = vmatprep.subr.bf16.mxu0 0
      %537 = vmatpush1.bf16.xpose.msra.mxu0 0
      %538 = vmatprep.subr.bf16.mxu0 0
      %539 = vmatpush1.bf16.xpose.msra.mxu0 0
      %540 = vmatprep.subr.bf16.mxu0 0
      %541 = vmatpush1.bf16.xpose.msra.mxu0 0
      %542 = vmatprep.subr.bf16.mxu0 0
      %543 = vmatpush1.bf16.xpose.msra.mxu0 0
      %544 = vmatprep.subr.bf16.mxu0 0
      %545 = vmatpush1.bf16.xpose.msra.mxu0 0
      %546 = vmatprep.subr.bf16.mxu0 0
      %547 = vmatpush1.bf16.xpose.msra.mxu0 0
      %548 = vmatprep.subr.bf16.mxu0 0
      %549 = vmatpush1.bf16.xpose.msra.mxu0 0
      %550 = vmatprep.subr.bf16.mxu0 0
      %551 = vmatpush1.bf16.xpose.msra.mxu0 0
      %552 = vmatprep.subr.bf16.mxu0 0
      %553 = vmatpush1.bf16.xpose.msra.mxu0 0
      %554 = vmatprep.subr.bf16.mxu0 0
      %555 = vmatpush1.bf16.xpose.msra.mxu0 0
      %556 = vmatprep.subr.bf16.mxu0 0
      %557 = vmatpush1.bf16.xpose.msra.mxu0 0
      %558 = vmatprep.subr.bf16.mxu0 0
      %559 = vmatpush1.bf16.xpose.msra.mxu0 0
      %560 = vmatprep.mubr.bf16.mxu0 0
      %561 = vmatmul.mubr.bf16.gmra.mrb[0].mxu0 %v523
      %v562 = vpop.f32.mrb[0].mxu0
      %v563 = vadd.f32 0.0, %v562
      %v564 = vpop.f32.mrb[0].mxu0
      %v565 = vpop.f32.mrb[0].mxu0
      %v566 = vpop.f32.mrb[0].mxu0
      %567 = vdwg.mxu0
      %v568 = vmul.f32 %v563, 0.5
      %v569 = vadd.f32 %v568, %v401
      %v570 = vsel %vm455, %v569, -inf
      %571 = vmax.xlane.f32.xlu0 %v570
      %v572 = vpop.xlane.xlu0 %571
      %v573 = vsub.f32 %v569, %v572
      %v574 = vmul.f32 %v573, 1.442695
      %v575 = vpow.pop %v574
      %v576 = vsel %vm455, %v575, 0.0
      %577 = vadd.xlane.f32.xlu0 %v576
      %v578 = vpop.xlane.xlu0 %577
      %v579 = vrcp.pop %v578
      %v580 = vmul.f32 %v575, %v579
      %v581 = vpack.c.bf16 %v580, %v580
      %582 = vrot.lane.b32.xlu0 %v402, 60
      %v583 = vpop.permute.xlu0 %582
      %v585 = vsel %vm455, %v581, 0
      %v588 = vsel %vm473, %v583, 0
      %590 = vmatprep.subr.bf16.mxu0 0
      %591 = vmatpush1.bf16.msra.mxu0 %v588
      %592 = vmatprep.subr.bf16.mxu0 0
      %593 = vmatpush1.bf16.msra.mxu0 0
      %594 = vmatprep.subr.bf16.mxu0 0
      %595 = vmatpush1.bf16.msra.mxu0 0
      %596 = vmatprep.subr.bf16.mxu0 0
      %597 = vmatpush1.bf16.msra.mxu0 0
      %598 = vmatprep.subr.bf16.mxu0 0
      %599 = vmatpush1.bf16.msra.mxu0 0
      %600 = vmatprep.subr.bf16.mxu0 0
      %601 = vmatpush1.bf16.msra.mxu0 0
      %602 = vmatprep.subr.bf16.mxu0 0
      %603 = vmatpush1.bf16.msra.mxu0 0
      %604 = vmatprep.subr.bf16.mxu0 0
      %605 = vmatpush1.bf16.msra.mxu0 0
      %606 = vmatprep.subr.bf16.mxu0 0
      %607 = vmatpush1.bf16.msra.mxu0 0
      %608 = vmatprep.subr.bf16.mxu0 0
      %609 = vmatpush1.bf16.msra.mxu0 0
      %610 = vmatprep.subr.bf16.mxu0 0
      %611 = vmatpush1.bf16.msra.mxu0 0
      %612 = vmatprep.subr.bf16.mxu0 0
      %613 = vmatpush1.bf16.msra.mxu0 0
      %614 = vmatprep.subr.bf16.mxu0 0
      %615 = vmatpush1.bf16.msra.mxu0 0
      %616 = vmatprep.subr.bf16.mxu0 0
      %617 = vmatpush1.bf16.msra.mxu0 0
      %618 = vmatprep.subr.bf16.mxu0 0
      %619 = vmatpush1.bf16.msra.mxu0 0
      %620 = vmatprep.subr.bf16.mxu0 0
      %621 = vmatpush1.bf16.msra.mxu0 0
      %622 = vmatprep.mubr.bf16.mxu0 0
      %623 = vmatmul.mubr.bf16.gmra.mrb[0].mxu0 %v585
      %v624 = vpop.f32.mrb[0].mxu0
      %v625 = vadd.f32 0.0, %v624
      %v626 = vpop.f32.mrb[0].mxu0
      %v627 = vpop.f32.mrb[0].mxu0
      %v628 = vpop.f32.mrb[0].mxu0
      %629 = vdwg.mxu0
      %631 = vrot.lane.b32.xlu0 %v625, 4
      %v632 = vpop.permute.xlu0 %631
      %vm634 = vcmask 64544
      %635 = vst.msk [vmem:[#allocation2] sm:$0xff] %vm634, %v632
      %636 = vrot.lane.b32.xlu0 %v402, 120
      %v637 = vpop.permute.xlu0 %636
      %638 = vrot.lane.b32.xlu0 %v402, 88
      %v639 = vpop.permute.xlu0 %638
      %v641 = vsel %vm406, %v637, 0
      %v644 = vsel %vm406, %v639, 0
      %646 = vmatprep.subr.bf16.mxu0 0
      %647 = vmatpush1.bf16.xpose.msra.mxu0 %v644
      %648 = vmatprep.subr.bf16.mxu0 0
      %649 = vmatpush1.bf16.xpose.msra.mxu0 0
      %650 = vmatprep.subr.bf16.mxu0 0
      %651 = vmatpush1.bf16.xpose.msra.mxu0 0
      %652 = vmatprep.subr.bf16.mxu0 0
      %653 = vmatpush1.bf16.xpose.msra.mxu0 0
      %654 = vmatprep.subr.bf16.mxu0 0
      %655 = vmatpush1.bf16.xpose.msra.mxu0 0
      %656 = vmatprep.subr.bf16.mxu0 0
      %657 = vmatpush1.bf16.xpose.msra.mxu0 0
      %658 = vmatprep.subr.bf16.mxu0 0
      %659 = vmatpush1.bf16.xpose.msra.mxu0 0
      %660 = vmatprep.subr.bf16.mxu0 0
      %661 = vmatpush1.bf16.xpose.msra.mxu0 0
      %662 = vmatprep.subr.bf16.mxu0 0
      %663 = vmatpush1.bf16.xpose.msra.mxu0 0
      %664 = vmatprep.subr.bf16.mxu0 0
      %665 = vmatpush1.bf16.xpose.msra.mxu0 0
      %666 = vmatprep.subr.bf16.mxu0 0
      %667 = vmatpush1.bf16.xpose.msra.mxu0 0
      %668 = vmatprep.subr.bf16.mxu0 0
      %669 = vmatpush1.bf16.xpose.msra.mxu0 0
      %670 = vmatprep.subr.bf16.mxu0 0
      %671 = vmatpush1.bf16.xpose.msra.mxu0 0
      %672 = vmatprep.subr.bf16.mxu0 0
      %673 = vmatpush1.bf16.xpose.msra.mxu0 0
      %674 = vmatprep.subr.bf16.mxu0 0
      %675 = vmatpush1.bf16.xpose.msra.mxu0 0
      %676 = vmatprep.subr.bf16.mxu0 0
      %677 = vmatpush1.bf16.xpose.msra.mxu0 0
      %678 = vmatprep.mubr.bf16.mxu0 0
      %679 = vmatmul.mubr.bf16.gmra.mrb[0].mxu0 %v641
      %v680 = vpop.f32.mrb[0].mxu0
      %v681 = vadd.f32 0.0, %v680
      %v682 = vpop.f32.mrb[0].mxu0
      %v683 = vpop.f32.mrb[0].mxu0
      %v684 = vpop.f32.mrb[0].mxu0
      %685 = vdwg.mxu0
      %v686 = vmul.f32 %v681, 0.5
      %v687 = vadd.f32 %v686, %v401
      %v688 = vsel %vm455, %v687, -inf
      %689 = vmax.xlane.f32.xlu0 %v688
      %v690 = vpop.xlane.xlu0 %689
      %v691 = vsub.f32 %v687, %v690
      %v692 = vmul.f32 %v691, 1.442695
      %v693 = vpow.pop %v692
      %v694 = vsel %vm455, %v693, 0.0
      %695 = vadd.xlane.f32.xlu0 %v694
      %v696 = vpop.xlane.xlu0 %695
      %v697 = vrcp.pop %v696
      %v698 = vmul.f32 %v693, %v697
      %v699 = vpack.c.bf16 %v698, %v698
      %700 = vrot.lane.b32.xlu0 %v402, 56
      %v701 = vpop.permute.xlu0 %700
      %v703 = vsel %vm455, %v699, 0
      %v706 = vsel %vm473, %v701, 0
      %708 = vmatprep.subr.bf16.mxu0 0
      %709 = vmatpush1.bf16.msra.mxu0 %v706
      %710 = vmatprep.subr.bf16.mxu0 0
      %711 = vmatpush1.bf16.msra.mxu0 0
      %712 = vmatprep.subr.bf16.mxu0 0
      %713 = vmatpush1.bf16.msra.mxu0 0
      %714 = vmatprep.subr.bf16.mxu0 0
      %715 = vmatpush1.bf16.msra.mxu0 0
      %716 = vmatprep.subr.bf16.mxu0 0
      %717 = vmatpush1.bf16.msra.mxu0 0
      %718 = vmatprep.subr.bf16.mxu0 0
      %719 = vmatpush1.bf16.msra.mxu0 0
      %720 = vmatprep.subr.bf16.mxu0 0
      %721 = vmatpush1.bf16.msra.mxu0 0
      %722 = vmatprep.subr.bf16.mxu0 0
      %723 = vmatpush1.bf16.msra.mxu0 0
      %724 = vmatprep.subr.bf16.mxu0 0
      %725 = vmatpush1.bf16.msra.mxu0 0
      %726 = vmatprep.subr.bf16.mxu0 0
      %727 = vmatpush1.bf16.msra.mxu0 0
      %728 = vmatprep.subr.bf16.mxu0 0
      %729 = vmatpush1.bf16.msra.mxu0 0
      %730 = vmatprep.subr.bf16.mxu0 0
      %731 = vmatpush1.bf16.msra.mxu0 0
      %732 = vmatprep.subr.bf16.mxu0 0
      %733 = vmatpush1.bf16.msra.mxu0 0
      %734 = vmatprep.subr.bf16.mxu0 0
      %735 = vmatpush1.bf16.msra.mxu0 0
      %736 = vmatprep.subr.bf16.mxu0 0
      %737 = vmatpush1.bf16.msra.mxu0 0
      %738 = vmatprep.subr.bf16.mxu0 0
      %739 = vmatpush1.bf16.msra.mxu0 0
      %740 = vmatprep.mubr.bf16.mxu0 0
      %741 = vmatmul.mubr.bf16.gmra.mrb[0].mxu0 %v703
      %v742 = vpop.f32.mrb[0].mxu0
      %v743 = vadd.f32 0.0, %v742
      %v744 = vpop.f32.mrb[0].mxu0
      %v745 = vpop.f32.mrb[0].mxu0
      %v746 = vpop.f32.mrb[0].mxu0
      %747 = vdwg.mxu0
      %749 = vrot.lane.b32.xlu0 %v743, 8
      %v750 = vpop.permute.xlu0 %749
      %vm752 = vcmask 97344
      %753 = vst.msk [vmem:[#allocation2] sm:$0xff] %vm752, %v750
      %754 = vrot.lane.b32.xlu0 %v402, 116
      %v755 = vpop.permute.xlu0 %754
      %756 = vrot.lane.b32.xlu0 %v402, 84
      %v757 = vpop.permute.xlu0 %756
      %v759 = vsel %vm406, %v755, 0
      %v762 = vsel %vm406, %v757, 0
      %764 = vmatprep.subr.bf16.mxu0 0
      %765 = vmatpush1.bf16.xpose.msra.mxu0 %v762
      %766 = vmatprep.subr.bf16.mxu0 0
      %767 = vmatpush1.bf16.xpose.msra.mxu0 0
      %768 = vmatprep.subr.bf16.mxu0 0
      %769 = vmatpush1.bf16.xpose.msra.mxu0 0
      %770 = vmatprep.subr.bf16.mxu0 0
      %771 = vmatpush1.bf16.xpose.msra.mxu0 0
      %772 = vmatprep.subr.bf16.mxu0 0
      %773 = vmatpush1.bf16.xpose.msra.mxu0 0
      %774 = vmatprep.subr.bf16.mxu0 0
      %775 = vmatpush1.bf16.xpose.msra.mxu0 0
      %776 = vmatprep.subr.bf16.mxu0 0
      %777 = vmatpush1.bf16.xpose.msra.mxu0 0
      %778 = vmatprep.subr.bf16.mxu0 0
      %779 = vmatpush1.bf16.xpose.msra.mxu0 0
      %780 = vmatprep.subr.bf16.mxu0 0
      %781 = vmatpush1.bf16.xpose.msra.mxu0 0
      %782 = vmatprep.subr.bf16.mxu0 0
      %783 = vmatpush1.bf16.xpose.msra.mxu0 0
      %784 = vmatprep.subr.bf16.mxu0 0
      %785 = vmatpush1.bf16.xpose.msra.mxu0 0
      %786 = vmatprep.subr.bf16.mxu0 0
      %787 = vmatpush1.bf16.xpose.msra.mxu0 0
      %788 = vmatprep.subr.bf16.mxu0 0
      %789 = vmatpush1.bf16.xpose.msra.mxu0 0
      %790 = vmatprep.subr.bf16.mxu0 0
      %791 = vmatpush1.bf16.xpose.msra.mxu0 0
      %792 = vmatprep.subr.bf16.mxu0 0
      %793 = vmatpush1.bf16.xpose.msra.mxu0 0
      %794 = vmatprep.subr.bf16.mxu0 0
      %795 = vmatpush1.bf16.xpose.msra.mxu0 0
      %796 = vmatprep.mubr.bf16.mxu0 0
      %797 = vmatmul.mubr.bf16.gmra.mrb[0].mxu0 %v759
      %v798 = vpop.f32.mrb[0].mxu0
      %v799 = vadd.f32 0.0, %v798
      %v800 = vpop.f32.mrb[0].mxu0
      %v801 = vpop.f32.mrb[0].mxu0
      %v802 = vpop.f32.mrb[0].mxu0
      %803 = vdwg.mxu0
      %v804 = vmul.f32 %v799, 0.5
      %v805 = vadd.f32 %v804, %v401
      %v806 = vsel %vm455, %v805, -inf
      %807 = vmax.xlane.f32.xlu0 %v806
      %v808 = vpop.xlane.xlu0 %807
      %v809 = vsub.f32 %v805, %v808
      %v810 = vmul.f32 %v809, 1.442695
      %v811 = vpow.pop %v810
      %v812 = vsel %vm455, %v811, 0.0
      %813 = vadd.xlane.f32.xlu0 %v812
      %v814 = vpop.xlane.xlu0 %813
      %v815 = vrcp.pop %v814
      %v816 = vmul.f32 %v811, %v815
      %v817 = vpack.c.bf16 %v816, %v816
      %818 = vrot.lane.b32.xlu0 %v402, 52
      %v819 = vpop.permute.xlu0 %818
      %v821 = vsel %vm455, %v817, 0
      %v824 = vsel %vm473, %v819, 0
      %826 = vmatprep.subr.bf16.mxu0 0
      %827 = vmatpush1.bf16.msra.mxu0 %v824
      %828 = vmatprep.subr.bf16.mxu0 0
      %829 = vmatpush1.bf16.msra.mxu0 0
      %830 = vmatprep.subr.bf16.mxu0 0
      %831 = vmatpush1.bf16.msra.mxu0 0
      %832 = vmatprep.subr.bf16.mxu0 0
      %833 = vmatpush1.bf16.msra.mxu0 0
      %834 = vmatprep.subr.bf16.mxu0 0
      %835 = vmatpush1.bf16.msra.mxu0 0
      %836 = vmatprep.subr.bf16.mxu0 0
      %837 = vmatpush1.bf16.msra.mxu0 0
      %838 = vmatprep.subr.bf16.mxu0 0
      %839 = vmatpush1.bf16.msra.mxu0 0
      %840 = vmatprep.subr.bf16.mxu0 0
      %841 = vmatpush1.bf16.msra.mxu0 0
      %842 = vmatprep.subr.bf16.mxu0 0
      %843 = vmatpush1.bf16.msra.mxu0 0
      %844 = vmatprep.subr.bf16.mxu0 0
      %845 = vmatpush1.bf16.msra.mxu0 0
      %846 = vmatprep.subr.bf16.mxu0 0
      %847 = vmatpush1.bf16.msra.mxu0 0
      %848 = vmatprep.subr.bf16.mxu0 0
      %849 = vmatpush1.bf16.msra.mxu0 0
      %850 = vmatprep.subr.bf16.mxu0 0
      %851 = vmatpush1.bf16.msra.mxu0 0
      %852 = vmatprep.subr.bf16.mxu0 0
      %853 = vmatpush1.bf16.msra.mxu0 0
      %854 = vmatprep.subr.bf16.mxu0 0
      %855 = vmatpush1.bf16.msra.mxu0 0
      %856 = vmatprep.subr.bf16.mxu0 0
      %857 = vmatpush1.bf16.msra.mxu0 0
      %858 = vmatprep.mubr.bf16.mxu0 0
      %859 = vmatmul.mubr.bf16.gmra.mrb[0].mxu0 %v821
      %v860 = vpop.f32.mrb[0].mxu0
      %v861 = vadd.f32 0.0, %v860
      %v862 = vpop.f32.mrb[0].mxu0
      %v863 = vpop.f32.mrb[0].mxu0
      %v864 = vpop.f32.mrb[0].mxu0
      %865 = vdwg.mxu0
      %867 = vrot.lane.b32.xlu0 %v861, 12
      %v868 = vpop.permute.xlu0 %867
      %vm870 = vcmask 130144
      %871 = vst.msk [vmem:[#allocation2] sm:$0xff] %vm870, %v868
      %872 = vrot.lane.b32.xlu0 %v402, 112
      %v873 = vpop.permute.xlu0 %872
      %874 = vrot.lane.b32.xlu0 %v402, 80
      %v875 = vpop.permute.xlu0 %874
      %v877 = vsel %vm406, %v873, 0
      %v880 = vsel %vm406, %v875, 0
      %882 = vmatprep.subr.bf16.mxu0 0
      %883 = vmatpush1.bf16.xpose.msra.mxu0 %v880
      %884 = vmatprep.subr.bf16.mxu0 0
      %885 = vmatpush1.bf16.xpose.msra.mxu0 0
      %886 = vmatprep.subr.bf16.mxu0 0
      %887 = vmatpush1.bf16.xpose.msra.mxu0 0
      %888 = vmatprep.subr.bf16.mxu0 0
      %889 = vmatpush1.bf16.xpose.msra.mxu0 0
      %890 = vmatprep.subr.bf16.mxu0 0
      %891 = vmatpush1.bf16.xpose.msra.mxu0 0
      %892 = vmatprep.subr.bf16.mxu0 0
      %893 = vmatpush1.bf16.xpose.msra.mxu0 0
      %894 = vmatprep.subr.bf16.mxu0 0
      %895 = vmatpush1.bf16.xpose.msra.mxu0 0
      %896 = vmatprep.subr.bf16.mxu0 0
      %897 = vmatpush1.bf16.xpose.msra.mxu0 0
      %898 = vmatprep.subr.bf16.mxu0 0
      %899 = vmatpush1.bf16.xpose.msra.mxu0 0
      %900 = vmatprep.subr.bf16.mxu0 0
      %901 = vmatpush1.bf16.xpose.msra.mxu0 0
      %902 = vmatprep.subr.bf16.mxu0 0
      %903 = vmatpush1.bf16.xpose.msra.mxu0 0
      %904 = vmatprep.subr.bf16.mxu0 0
      %905 = vmatpush1.bf16.xpose.msra.mxu0 0
      %906 = vmatprep.subr.bf16.mxu0 0
      %907 = vmatpush1.bf16.xpose.msra.mxu0 0
      %908 = vmatprep.subr.bf16.mxu0 0
      %909 = vmatpush1.bf16.xpose.msra.mxu0 0
      %910 = vmatprep.subr.bf16.mxu0 0
      %911 = vmatpush1.bf16.xpose.msra.mxu0 0
      %912 = vmatprep.subr.bf16.mxu0 0
      %913 = vmatpush1.bf16.xpose.msra.mxu0 0
      %914 = vmatprep.mubr.bf16.mxu0 0
      %915 = vmatmul.mubr.bf16.gmra.mrb[0].mxu0 %v877
      %v916 = vpop.f32.mrb[0].mxu0
      %v917 = vadd.f32 0.0, %v916
      %v918 = vpop.f32.mrb[0].mxu0
      %v919 = vpop.f32.mrb[0].mxu0
      %v920 = vpop.f32.mrb[0].mxu0
      %921 = vdwg.mxu0
      %v922 = vmul.f32 %v917, 0.5
      %v923 = vadd.f32 %v922, %v401
      %v924 = vsel %vm455, %v923, -inf
      %925 = vmax.xlane.f32.xlu0 %v924
      %v926 = vpop.xlane.xlu0 %925
      %v927 = vsub.f32 %v923, %v926
      %v928 = vmul.f32 %v927, 1.442695
      %v929 = vpow.pop %v928
      %v930 = vsel %vm455, %v929, 0.0
      %931 = vadd.xlane.f32.xlu0 %v930
      %v932 = vpop.xlane.xlu0 %931
      %v933 = vrcp.pop %v932
      %v934 = vmul.f32 %v929, %v933
      %v935 = vpack.c.bf16 %v934, %v934
      %936 = vrot.lane.b32.xlu0 %v402, 48
      %v937 = vpop.permute.xlu0 %936
      %v939 = vsel %vm455, %v935, 0
      %v942 = vsel %vm473, %v937, 0
      %944 = vmatprep.subr.bf16.mxu0 0
      %945 = vmatpush1.bf16.msra.mxu0 %v942
      %946 = vmatprep.subr.bf16.mxu0 0
      %947 = vmatpush1.bf16.msra.mxu0 0
      %948 = vmatprep.subr.bf16.mxu0 0
      %949 = vmatpush1.bf16.msra.mxu0 0
      %950 = vmatprep.subr.bf16.mxu0 0
      %951 = vmatpush1.bf16.msra.mxu0 0
      %952 = vmatprep.subr.bf16.mxu0 0
      %953 = vmatpush1.bf16.msra.mxu0 0
      %954 = vmatprep.subr.bf16.mxu0 0
      %955 = vmatpush1.bf16.msra.mxu0 0
      %956 = vmatprep.subr.bf16.mxu0 0
      %957 = vmatpush1.bf16.msra.mxu0 0
      %958 = vmatprep.subr.bf16.mxu0 0
      %959 = vmatpush1.bf16.msra.mxu0 0
      %960 = vmatprep.subr.bf16.mxu0 0
      %961 = vmatpush1.bf16.msra.mxu0 0
      %962 = vmatprep.subr.bf16.mxu0 0
      %963 = vmatpush1.bf16.msra.mxu0 0
      %964 = vmatprep.subr.bf16.mxu0 0
      %965 = vmatpush1.bf16.msra.mxu0 0
      %966 = vmatprep.subr.bf16.mxu0 0
      %967 = vmatpush1.bf16.msra.mxu0 0
      %968 = vmatprep.subr.bf16.mxu0 0
      %969 = vmatpush1.bf16.msra.mxu0 0
      %970 = vmatprep.subr.bf16.mxu0 0
      %971 = vmatpush1.bf16.msra.mxu0 0
      %972 = vmatprep.subr.bf16.mxu0 0
      %973 = vmatpush1.bf16.msra.mxu0 0
      %974 = vmatprep.subr.bf16.mxu0 0
      %975 = vmatpush1.bf16.msra.mxu0 0
      %976 = vmatprep.mubr.bf16.mxu0 0
      %977 = vmatmul.mubr.bf16.gmra.mrb[0].mxu0 %v939
      %v978 = vpop.f32.mrb[0].mxu0
      %v979 = vadd.f32 0.0, %v978
      %v980 = vpop.f32.mrb[0].mxu0
      %v981 = vpop.f32.mrb[0].mxu0
      %v982 = vpop.f32.mrb[0].mxu0
      %983 = vdwg.mxu0
      %985 = vrot.lane.b32.xlu0 %v979, 16
      %v986 = vpop.permute.xlu0 %985
      %vm988 = vcmask 162944
      %989 = vst.msk [vmem:[#allocation2] sm:$0xff] %vm988, %v986
      %990 = vrot.lane.b32.xlu0 %v402, 108
      %v991 = vpop.permute.xlu0 %990
      %992 = vrot.lane.b32.xlu0 %v402, 76
      %v993 = vpop.permute.xlu0 %992
      %v995 = vsel %vm406, %v991, 0
      %v998 = vsel %vm406, %v993, 0
      %1000 = vmatprep.subr.bf16.mxu0 0
      %1001 = vmatpush1.bf16.xpose.msra.mxu0 %v998
      %1002 = vmatprep.subr.bf16.mxu0 0
      %1003 = vmatpush1.bf16.xpose.msra.mxu0 0
      %1004 = vmatprep.subr.bf16.mxu0 0
      %1005 = vmatpush1.bf16.xpose.msra.mxu0 0
      %1006 = vmatprep.subr.bf16.mxu0 0
      %1007 = vmatpush1.bf16.xpose.msra.mxu0 0
      %1008 = vmatprep.subr.bf16.mxu0 0
      %1009 = vmatpush1.bf16.xpose.msra.mxu0 0
      %1010 = vmatprep.subr.bf16.mxu0 0
      %1011 = vmatpush1.bf16.xpose.msra.mxu0 0
      %1012 = vmatprep.subr.bf16.mxu0 0
      %1013 = vmatpush1.bf16.xpose.msra.mxu0 0
      %1014 = vmatprep.subr.bf16.mxu0 0
      %1015 = vmatpush1.bf16.xpose.msra.mxu0 0
      %1016 = vmatprep.subr.bf16.mxu0 0
      %1017 = vmatpush1.bf16.xpose.msra.mxu0 0
      %1018 = vmatprep.subr.bf16.mxu0 0
      %1019 = vmatpush1.bf16.xpose.msra.mxu0 0
      %1020 = vmatprep.subr.bf16.mxu0 0
      %1021 = vmatpush1.bf16.xpose.msra.mxu0 0
      %1022 = vmatprep.subr.bf16.mxu0 0
      %1023 = vmatpush1.bf16.xpose.msra.mxu0 0
      %1024 = vmatprep.subr.bf16.mxu0 0
      %1025 = vmatpush1.bf16.xpose.msra.mxu0 0
      %1026 = vmatprep.subr.bf16.mxu0 0
      %1027 = vmatpush1.bf16.xpose.msra.mxu0 0
      %1028 = vmatprep.subr.bf16.mxu0 0
      %1029 = vmatpush1.bf16.xpose.msra.mxu0 0
      %1030 = vmatprep.subr.bf16.mxu0 0
      %1031 = vmatpush1.bf16.xpose.msra.mxu0 0
      %1032 = vmatprep.mubr.bf16.mxu0 0
      %1033 = vmatmul.mubr.bf16.gmra.mrb[0].mxu0 %v995
      %v1034 = vpop.f32.mrb[0].mxu0
      %v1035 = vadd.f32 0.0, %v1034
      %v1036 = vpop.f32.mrb[0].mxu0
      %v1037 = vpop.f32.mrb[0].mxu0
      %v1038 = vpop.f32.mrb[0].mxu0
      %1039 = vdwg.mxu0
      %v1040 = vmul.f32 %v1035, 0.5
      %v1041 = vadd.f32 %v1040, %v401
      %v1042 = vsel %vm455, %v1041, -inf
      %1043 = vmax.xlane.f32.xlu0 %v1042
      %v1044 = vpop.xlane.xlu0 %1043
      %v1045 = vsub.f32 %v1041, %v1044
      %v1046 = vmul.f32 %v1045, 1.442695
      %v1047 = vpow.pop %v1046
      %v1048 = vsel %vm455, %v1047, 0.0
      %1049 = vadd.xlane.f32.xlu0 %v1048
      %v1050 = vpop.xlane.xlu0 %1049
      %v1051 = vrcp.pop %v1050
      %v1052 = vmul.f32 %v1047, %v1051
      %v1053 = vpack.c.bf16 %v1052, %v1052
      %1054 = vrot.lane.b32.xlu0 %v402, 44
      %v1055 = vpop.permute.xlu0 %1054
      %v1057 = vsel %vm455, %v1053, 0
      %v1060 = vsel %vm473, %v1055, 0
      %1062 = vmatprep.subr.bf16.mxu0 0
      %1063 = vmatpush1.bf16.msra.mxu0 %v1060
      %1064 = vmatprep.subr.bf16.mxu0 0
      %1065 = vmatpush1.bf16.msra.mxu0 0
      %1066 = vmatprep.subr.bf16.mxu0 0
      %1067 = vmatpush1.bf16.msra.mxu0 0
      %1068 = vmatprep.subr.bf16.mxu0 0
      %1069 = vmatpush1.bf16.msra.mxu0 0
      %1070 = vmatprep.subr.bf16.mxu0 0
      %1071 = vmatpush1.bf16.msra.mxu0 0
      %1072 = vmatprep.subr.bf16.mxu0 0
      %1073 = vmatpush1.bf16.msra.mxu0 0
      %1074 = vmatprep.subr.bf16.mxu0 0
      %1075 = vmatpush1.bf16.msra.mxu0 0
      %1076 = vmatprep.subr.bf16.mxu0 0
      %1077 = vmatpush1.bf16.msra.mxu0 0
      %1078 = vmatprep.subr.bf16.mxu0 0
      %1079 = vmatpush1.bf16.msra.mxu0 0
      %1080 = vmatprep.subr.bf16.mxu0 0
      %1081 = vmatpush1.bf16.msra.mxu0 0
      %1082 = vmatprep.subr.bf16.mxu0 0
      %1083 = vmatpush1.bf16.msra.mxu0 0
      %1084 = vmatprep.subr.bf16.mxu0 0
      %1085 = vmatpush1.bf16.msra.mxu0 0
      %1086 = vmatprep.subr.bf16.mxu0 0
      %1087 = vmatpush1.bf16.msra.mxu0 0
      %1088 = vmatprep.subr.bf16.mxu0 0
      %1089 = vmatpush1.bf16.msra.mxu0 0
      %1090 = vmatprep.subr.bf16.mxu0 0
      %1091 = vmatpush1.bf16.msra.mxu0 0
      %1092 = vmatprep.subr.bf16.mxu0 0
      %1093 = vmatpush1.bf16.msra.mxu0 0
      %1094 = vmatprep.mubr.bf16.mxu0 0
      %1095 = vmatmul.mubr.bf16.gmra.mrb[0].mxu0 %v1057
      %v1096 = vpop.f32.mrb[0].mxu0
      %v1097 = vadd.f32 0.0, %v1096
      %v1098 = vpop.f32.mrb[0].mxu0
      %v1099 = vpop.f32.mrb[0].mxu0
      %v1100 = vpop.f32.mrb[0].mxu0
      %1101 = vdwg.mxu0
      %1103 = vrot.lane.b32.xlu0 %v1097, 20
      %v1104 = vpop.permute.xlu0 %1103
      %vm1106 = vcmask 195744
      %1107 = vst.msk [vmem:[#allocation2] sm:$0xff] %vm1106, %v1104
      %1108 = vrot.lane.b32.xlu0 %v402, 104
      %v1109 = vpop.permute.xlu0 %1108
      %1110 = vrot.lane.b32.xlu0 %v402, 72
      %v1111 = vpop.permute.xlu0 %1110
      %v1113 = vsel %vm406, %v1109, 0
      %v1116 = vsel %vm406, %v1111, 0
      %1118 = vmatprep.subr.bf16.mxu0 0
      %1119 = vmatpush1.bf16.xpose.msra.mxu0 %v1116
      %1120 = vmatprep.subr.bf16.mxu0 0
      %1121 = vmatpush1.bf16.xpose.msra.mxu0 0
      %1122 = vmatprep.subr.bf16.mxu0 0
      %1123 = vmatpush1.bf16.xpose.msra.mxu0 0
      %1124 = vmatprep.subr.bf16.mxu0 0
      %1125 = vmatpush1.bf16.xpose.msra.mxu0 0
      %1126 = vmatprep.subr.bf16.mxu0 0
      %1127 = vmatpush1.bf16.xpose.msra.mxu0 0
      %1128 = vmatprep.subr.bf16.mxu0 0
      %1129 = vmatpush1.bf16.xpose.msra.mxu0 0
      %1130 = vmatprep.subr.bf16.mxu0 0
      %1131 = vmatpush1.bf16.xpose.msra.mxu0 0
      %1132 = vmatprep.subr.bf16.mxu0 0
      %1133 = vmatpush1.bf16.xpose.msra.mxu0 0
      %1134 = vmatprep.subr.bf16.mxu0 0
      %1135 = vmatpush1.bf16.xpose.msra.mxu0 0
      %1136 = vmatprep.subr.bf16.mxu0 0
      %1137 = vmatpush1.bf16.xpose.msra.mxu0 0
      %1138 = vmatprep.subr.bf16.mxu0 0
      %1139 = vmatpush1.bf16.xpose.msra.mxu0 0
      %1140 = vmatprep.subr.bf16.mxu0 0
      %1141 = vmatpush1.bf16.xpose.msra.mxu0 0
      %1142 = vmatprep.subr.bf16.mxu0 0
      %1143 = vmatpush1.bf16.xpose.msra.mxu0 0
      %1144 = vmatprep.subr.bf16.mxu0 0
      %1145 = vmatpush1.bf16.xpose.msra.mxu0 0
      %1146 = vmatprep.subr.bf16.mxu0 0
      %1147 = vmatpush1.bf16.xpose.msra.mxu0 0
      %1148 = vmatprep.subr.bf16.mxu0 0
      %1149 = vmatpush1.bf16.xpose.msra.mxu0 0
      %1150 = vmatprep.mubr.bf16.mxu0 0
      %1151 = vmatmul.mubr.bf16.gmra.mrb[0].mxu0 %v1113
      %v1152 = vpop.f32.mrb[0].mxu0
      %v1153 = vadd.f32 0.0, %v1152
      %v1154 = vpop.f32.mrb[0].mxu0
      %v1155 = vpop.f32.mrb[0].mxu0
      %v1156 = vpop.f32.mrb[0].mxu0
      %1157 = vdwg.mxu0
      %v1158 = vmul.f32 %v1153, 0.5
      %v1159 = vadd.f32 %v1158, %v401
      %v1160 = vsel %vm455, %v1159, -inf
      %1161 = vmax.xlane.f32.xlu0 %v1160
      %v1162 = vpop.xlane.xlu0 %1161
      %v1163 = vsub.f32 %v1159, %v1162
      %v1164 = vmul.f32 %v1163, 1.442695
      %v1165 = vpow.pop %v1164
      %v1166 = vsel %vm455, %v1165, 0.0
      %1167 = vadd.xlane.f32.xlu0 %v1166
      %v1168 = vpop.xlane.xlu0 %1167
      %v1169 = vrcp.pop %v1168
      %v1170 = vmul.f32 %v1165, %v1169
      %v1171 = vpack.c.bf16 %v1170, %v1170
      %1172 = vrot.lane.b32.xlu0 %v402, 40
      %v1173 = vpop.permute.xlu0 %1172
      %v1175 = vsel %vm455, %v1171, 0
      %v1178 = vsel %vm473, %v1173, 0
      %1180 = vmatprep.subr.bf16.mxu0 0
      %1181 = vmatpush1.bf16.msra.mxu0 %v1178
      %1182 = vmatprep.subr.bf16.mxu0 0
      %1183 = vmatpush1.bf16.msra.mxu0 0
      %1184 = vmatprep.subr.bf16.mxu0 0
      %1185 = vmatpush1.bf16.msra.mxu0 0
      %1186 = vmatprep.subr.bf16.mxu0 0
      %1187 = vmatpush1.bf16.msra.mxu0 0
      %1188 = vmatprep.subr.bf16.mxu0 0
      %1189 = vmatpush1.bf16.msra.mxu0 0
      %1190 = vmatprep.subr.bf16.mxu0 0
      %1191 = vmatpush1.bf16.msra.mxu0 0
      %1192 = vmatprep.subr.bf16.mxu0 0
      %1193 = vmatpush1.bf16.msra.mxu0 0
      %1194 = vmatprep.subr.bf16.mxu0 0
      %1195 = vmatpush1.bf16.msra.mxu0 0
      %1196 = vmatprep.subr.bf16.mxu0 0
      %1197 = vmatpush1.bf16.msra.mxu0 0
      %1198 = vmatprep.subr.bf16.mxu0 0
      %1199 = vmatpush1.bf16.msra.mxu0 0
      %1200 = vmatprep.subr.bf16.mxu0 0
      %1201 = vmatpush1.bf16.msra.mxu0 0
      %1202 = vmatprep.subr.bf16.mxu0 0
      %1203 = vmatpush1.bf16.msra.mxu0 0
      %1204 = vmatprep.subr.bf16.mxu0 0
      %1205 = vmatpush1.bf16.msra.mxu0 0
      %1206 = vmatprep.subr.bf16.mxu0 0
      %1207 = vmatpush1.bf16.msra.mxu0 0
      %1208 = vmatprep.subr.bf16.mxu0 0
      %1209 = vmatpush1.bf16.msra.mxu0 0
      %1210 = vmatprep.subr.bf16.mxu0 0
      %1211 = vmatpush1.bf16.msra.mxu0 0
      %1212 = vmatprep.mubr.bf16.mxu0 0
      %1213 = vmatmul.mubr.bf16.gmra.mrb[0].mxu0 %v1175
      %v1214 = vpop.f32.mrb[0].mxu0
      %v1215 = vadd.f32 0.0, %v1214
      %v1216 = vpop.f32.mrb[0].mxu0
      %v1217 = vpop.f32.mrb[0].mxu0
      %v1218 = vpop.f32.mrb[0].mxu0
      %1219 = vdwg.mxu0
      %1221 = vrot.lane.b32.xlu0 %v1215, 24
      %v1222 = vpop.permute.xlu0 %1221
      %vm1224 = vcmask 228544
      %1225 = vst.msk [vmem:[#allocation2] sm:$0xff] %vm1224, %v1222
      %1226 = vrot.lane.b32.xlu0 %v402, 100
      %v1227 = vpop.permute.xlu0 %1226
      %1228 = vrot.lane.b32.xlu0 %v402, 68
      %v1229 = vpop.permute.xlu0 %1228
      %v1231 = vsel %vm406, %v1227, 0
      %v1234 = vsel %vm406, %v1229, 0
      %1236 = vmatprep.subr.bf16.mxu0 0
      %1237 = vmatpush1.bf16.xpose.msra.mxu0 %v1234
      %1238 = vmatprep.subr.bf16.mxu0 0
      %1239 = vmatpush1.bf16.xpose.msra.mxu0 0
      %1240 = vmatprep.subr.bf16.mxu0 0
      %1241 = vmatpush1.bf16.xpose.msra.mxu0 0
      %1242 = vmatprep.subr.bf16.mxu0 0
      %1243 = vmatpush1.bf16.xpose.msra.mxu0 0
      %1244 = vmatprep.subr.bf16.mxu0 0
      %1245 = vmatpush1.bf16.xpose.msra.mxu0 0
      %1246 = vmatprep.subr.bf16.mxu0 0
      %1247 = vmatpush1.bf16.xpose.msra.mxu0 0
      %1248 = vmatprep.subr.bf16.mxu0 0
      %1249 = vmatpush1.bf16.xpose.msra.mxu0 0
      %1250 = vmatprep.subr.bf16.mxu0 0
      %1251 = vmatpush1.bf16.xpose.msra.mxu0 0
      %1252 = vmatprep.subr.bf16.mxu0 0
      %1253 = vmatpush1.bf16.xpose.msra.mxu0 0
      %1254 = vmatprep.subr.bf16.mxu0 0
      %1255 = vmatpush1.bf16.xpose.msra.mxu0 0
      %1256 = vmatprep.subr.bf16.mxu0 0
      %1257 = vmatpush1.bf16.xpose.msra.mxu0 0
      %1258 = vmatprep.subr.bf16.mxu0 0
      %1259 = vmatpush1.bf16.xpose.msra.mxu0 0
      %1260 = vmatprep.subr.bf16.mxu0 0
      %1261 = vmatpush1.bf16.xpose.msra.mxu0 0
      %1262 = vmatprep.subr.bf16.mxu0 0
      %1263 = vmatpush1.bf16.xpose.msra.mxu0 0
      %1264 = vmatprep.subr.bf16.mxu0 0
      %1265 = vmatpush1.bf16.xpose.msra.mxu0 0
      %1266 = vmatprep.subr.bf16.mxu0 0
      %1267 = vmatpush1.bf16.xpose.msra.mxu0 0
      %1268 = vmatprep.mubr.bf16.mxu0 0
      %1269 = vmatmul.mubr.bf16.gmra.mrb[0].mxu0 %v1231
      %v1270 = vpop.f32.mrb[0].mxu0
      %v1271 = vadd.f32 0.0, %v1270
      %v1272 = vpop.f32.mrb[0].mxu0
      %v1273 = vpop.f32.mrb[0].mxu0
      %v1274 = vpop.f32.mrb[0].mxu0
      %1275 = vdwg.mxu0
      %v1276 = vmul.f32 %v1271, 0.5
      %v1277 = vadd.f32 %v1276, %v401
      %v1278 = vsel %vm455, %v1277, -inf
      %1279 = vmax.xlane.f32.xlu0 %v1278
      %v1280 = vpop.xlane.xlu0 %1279
      %v1281 = vsub.f32 %v1277, %v1280
      %v1282 = vmul.f32 %v1281, 1.442695
      %v1283 = vpow.pop %v1282
      %v1284 = vsel %vm455, %v1283, 0.0
      %1285 = vadd.xlane.f32.xlu0 %v1284
      %v1286 = vpop.xlane.xlu0 %1285
      %v1287 = vrcp.pop %v1286
      %v1288 = vmul.f32 %v1283, %v1287
      %v1289 = vpack.c.bf16 %v1288, %v1288
      %1290 = vrot.lane.b32.xlu0 %v402, 36
      %v1291 = vpop.permute.xlu0 %1290
      %v1293 = vsel %vm455, %v1289, 0
      %v1296 = vsel %vm473, %v1291, 0
      %1298 = vmatprep.subr.bf16.mxu0 0
      %1299 = vmatpush1.bf16.msra.mxu0 %v1296
      %1300 = vmatprep.subr.bf16.mxu0 0
      %1301 = vmatpush1.bf16.msra.mxu0 0
      %1302 = vmatprep.subr.bf16.mxu0 0
      %1303 = vmatpush1.bf16.msra.mxu0 0
      %1304 = vmatprep.subr.bf16.mxu0 0
      %1305 = vmatpush1.bf16.msra.mxu0 0
      %1306 = vmatprep.subr.bf16.mxu0 0
      %1307 = vmatpush1.bf16.msra.mxu0 0
      %1308 = vmatprep.subr.bf16.mxu0 0
      %1309 = vmatpush1.bf16.msra.mxu0 0
      %1310 = vmatprep.subr.bf16.mxu0 0
      %1311 = vmatpush1.bf16.msra.mxu0 0
      %1312 = vmatprep.subr.bf16.mxu0 0
      %1313 = vmatpush1.bf16.msra.mxu0 0
      %1314 = vmatprep.subr.bf16.mxu0 0
      %1315 = vmatpush1.bf16.msra.mxu0 0
      %1316 = vmatprep.subr.bf16.mxu0 0
      %1317 = vmatpush1.bf16.msra.mxu0 0
      %1318 = vmatprep.subr.bf16.mxu0 0
      %1319 = vmatpush1.bf16.msra.mxu0 0
      %1320 = vmatprep.subr.bf16.mxu0 0
      %1321 = vmatpush1.bf16.msra.mxu0 0
      %1322 = vmatprep.subr.bf16.mxu0 0
      %1323 = vmatpush1.bf16.msra.mxu0 0
      %1324 = vmatprep.subr.bf16.mxu0 0
      %1325 = vmatpush1.bf16.msra.mxu0 0
      %1326 = vmatprep.subr.bf16.mxu0 0
      %1327 = vmatpush1.bf16.msra.mxu0 0
      %1328 = vmatprep.subr.bf16.mxu0 0
      %1329 = vmatpush1.bf16.msra.mxu0 0
      %1330 = vmatprep.mubr.bf16.mxu0 0
      %1331 = vmatmul.mubr.bf16.gmra.mrb[0].mxu0 %v1293
      %v1332 = vpop.f32.mrb[0].mxu0
      %v1333 = vadd.f32 0.0, %v1332
      %v1334 = vpop.f32.mrb[0].mxu0
      %v1335 = vpop.f32.mrb[0].mxu0
      %v1336 = vpop.f32.mrb[0].mxu0
      %1337 = vdwg.mxu0
      %1339 = vrot.lane.b32.xlu0 %v1333, 28
      %v1340 = vpop.permute.xlu0 %1339
      %vm1342 = vcmask 261344
      %1343 = vst.msk [vmem:[#allocation2] sm:$0xff] %vm1342, %v1340
      %v1344 = vld [vmem:[#allocation2] sm:$0xff]
      %v1345 = vpack.c.bf16 %v1344, %v1344
      %v1346 = vld [vmem:[%s6] sm:$0xf]
      %v1347 = vld [vmem:[%s6 + $0x4] sm:$0xf]
      %v1348 = vld [vmem:[%s6 + $0x8] sm:$0xf]
      %v1349 = vld [vmem:[%s6 + $0xc] sm:$0xf]
      %v1350 = vld [vmem:[%s7] sm:$0x1]
      %v1352 = vlaneseq
      %v1353 = vshrl.u32 %v1352, 7
      %v1354 = vsub.s32 0, %v1353
      %v1355 = vrot.slane %v1350, %v1354
      %v1361 = vunpack.c.l.b16 %v1346
      %v1362 = vunpack.c.l.b16 %v1347
      %v1363 = vunpack.c.l.b16 %v1348
      %v1364 = vunpack.c.l.b16 %v1349
      %v1365 = vpack.c.b16 %v1362, %v1361
      %v1366 = vpack.c.b16 %v1364, %v1363
      %v1370 = vsel %vm305, %v1345, 0
      %1372 = vmatprep.subr.bf16.mxu0 0
      %1373 = vmatpush1.bf16.msra.mxu0 %v1365
      %1374 = vmatprep.subr.bf16.mxu0 0
      %1375 = vmatpush1.bf16.msra.mxu0 %v1366
      %1376 = vmatprep.subr.bf16.mxu0 0
      %1377 = vmatpush1.bf16.msra.mxu0 0
      %1378 = vmatprep.subr.bf16.mxu0 0
      %1379 = vmatpush1.bf16.msra.mxu0 0
      %1380 = vmatprep.subr.bf16.mxu0 0
      %1381 = vmatpush1.bf16.msra.mxu0 0
      %1382 = vmatprep.subr.bf16.mxu0 0
      %1383 = vmatpush1.bf16.msra.mxu0 0
      %1384 = vmatprep.subr.bf16.mxu0 0
      %1385 = vmatpush1.bf16.msra.mxu0 0
      %1386 = vmatprep.subr.bf16.mxu0 0
      %1387 = vmatpush1.bf16.msra.mxu0 0
      %1388 = vmatprep.subr.bf16.mxu0 0
      %1389 = vmatpush1.bf16.msra.mxu0 0
      %1390 = vmatprep.subr.bf16.mxu0 0
      %1391 = vmatpush1.bf16.msra.mxu0 0
      %1392 = vmatprep.subr.bf16.mxu0 0
      %1393 = vmatpush1.bf16.msra.mxu0 0
      %1394 = vmatprep.subr.bf16.mxu0 0
      %1395 = vmatpush1.bf16.msra.mxu0 0
      %1396 = vmatprep.subr.bf16.mxu0 0
      %1397 = vmatpush1.bf16.msra.mxu0 0
      %1398 = vmatprep.subr.bf16.mxu0 0
      %1399 = vmatpush1.bf16.msra.mxu0 0
      %1400 = vmatprep.subr.bf16.mxu0 0
      %1401 = vmatpush1.bf16.msra.mxu0 0
      %1402 = vmatprep.subr.bf16.mxu0 0
      %1403 = vmatpush1.bf16.msra.mxu0 0
      %1404 = vmatprep.mubr.bf16.mxu0 0
      %1405 = vmatmul.mubr.bf16.gmra.mrb[0].mxu0 %v1370
      %v1406 = vpop.f32.mrb[0].mxu0
      %v1407 = vadd.f32 %v1355, %v1406
      %v1408 = vpop.f32.mrb[0].mxu0
      %v1409 = vpop.f32.mrb[0].mxu0
      %v1410 = vpop.f32.mrb[0].mxu0
      %1411 = vdwg.mxu0
      %v1412 = vadd.f32 %v1407, %v302
      %1413 = vst.msk [vmem:[%s300] sm:$0xff] %vm305, %v1412
      %p1414 = scmp.lt.s32.totalorder %s19, 1
      %s1415 = scalar_select %p1414, %s19, 1
      %s1416 = smul.addr %s1415, 8
      %s1417 = scalar_lea.vmem %s8, %s1416
      // Predicated region
      $region53: #{decoder_forward.7} parent=51 // pred_check
        %p1418 = pneg %p210
      $region54: #{decoder_forward.7} parent=51 // pred_check_branch
        %1420 = sbr.rel (%p1418) target = $region56
      $region55: #{decoder_forward.7} parent=51 // pred_region
        _
      $region56: #{decoder_forward.7} parent=51 // pred_fallthru
        _
    $region52: #{decoder_forward.7} parent=5 // pred_fallthru
      _
    %p1421 = scmp.le.s32.totalorder 2, %s14
    // Predicated region
    $region57: #{decoder_forward.7} parent=5 // pred_check
      %p1422 = pneg %p1421
    $region58: #{decoder_forward.7} parent=5 // pred_check_branch
      %1424 = sbr.rel (%p1422) target = $region60
    $region59: #{decoder_forward.7} parent=5 // pred_region
      %s1425 = ssub.s32 %s14, 2
      // Predicated region
      $region61: #{decoder_forward.7} parent=59 // pred_check
        %p1426 = pneg %p216
      $region62: #{decoder_forward.7} parent=59 // pred_check_branch
        %1428 = sbr.rel (%p1426) target = $region64
      $region63: #{decoder_forward.7} parent=59 // pred_region
        %p1429 = scmp.lt.s32.totalorder %s20, 1
        %s1430 = scalar_select %p1429, %s20, 1
        %s1431 = smul.addr %s1430, 8
        %s1432 = scalar_lea.vmem %s8, %s1431
      $region64: #{decoder_forward.7} parent=59 // pred_fallthru
        _
    $region60: #{decoder_forward.7} parent=5 // pred_fallthru
      _
  $region6: #{decoder_forward.7} parent=0 // loop_footer
    %s18 = sadd.s32 1, %s14
  $region7: #{decoder_forward.7} parent=0 // loop_footer_branch
    %13 = sbr.rel target = $region3
  $region8: #{decoder_forward.7} parent=0 // loop_exit
    _

// kernel: decoder_forward.8
$region0: #{decoder_forward.8}
  #allocation0 [shape = 'u32[]', space=smem, size = 0x4, offset = 0x4, fixed_abs, tag = 'smem constant byte address 0x4 - core index']
  #allocation1 [shape = 'u32[144,128]{1,0:T(1,128)}', space=vmem, size = 0x12000, scoped, tag = 'internal scratch']
  #allocation2 [shape = 'f32[8,32]{1,0:T(8,128)}', space=vmem, size = 0x1000, scoped, tag = 'scratch operand']
  %s0 = inlined_call_operand.vmem [shape: f32[2,8,32], index: 0, kind: input, shape index: {}, may-alias: {0,14}]
  %s1 = inlined_call_operand.vmem [shape: f32[2,8,32], index: 1, kind: input, shape index: {}]
  %s2 = inlined_call_operand.vmem [shape: f32[2,8,32], index: 2, kind: input, shape index: {}]
  %s3 = inlined_call_operand.vmem [shape: f32[8,8], index: 3, kind: input, shape index: {}]
  %s4 = inlined_call_operand.vmem [shape: f32[1,32], index: 4, kind: input, shape index: {}]
  %s5 = inlined_call_operand.vmem [shape: f32[1,32], index: 5, kind: input, shape index: {}]
  %s6 = inlined_call_operand.vmem [shape: bf16[32,32], index: 6, kind: input, shape index: {}]
  %s7 = inlined_call_operand.vmem [shape: f32[1,32], index: 7, kind: input, shape index: {}]
  %s8 = inlined_call_operand.vmem [shape: bf16[32,32], index: 8, kind: input, shape index: {}]
  %s9 = inlined_call_operand.vmem [shape: f32[1,32], index: 9, kind: input, shape index: {}]
  %s10 = inlined_call_operand.vmem [shape: bf16[32,32], index: 10, kind: input, shape index: {}]
  %s11 = inlined_call_operand.vmem [shape: f32[1,32], index: 11, kind: input, shape index: {}]
  %s12 = inlined_call_operand.vmem [shape: bf16[32,32], index: 12, kind: input, shape index: {}]
  %s13 = inlined_call_operand.vmem [shape: f32[1,32], index: 13, kind: input, shape index: {}]
  %s14 = inlined_call_operand.vmem [shape: f32[2,8,32], index: 14, kind: output, shape index: {}, may-alias: {0,14}]
  %s15 = sld [smem:[#allocation0]]
  $region89: #{decoder_forward.8} parent=0
    _
  %s17 = ssub.s32 1, %s15
  %s18 = scalar_select 0, %s17, %s15
  loop: start=0, step=1, limit=4
  $region2: #{decoder_forward.8} parent=0 // loop_pre_header
    _
  $region3: #{decoder_forward.8} parent=0 // loop_header
    %s20 = sphi 0, %s24
    %p21 = scmp.ge.s32.totalorder %s20, 4
    %s30 = sphi 0, %s32
    %s33 = sphi 0, %s30
    %s34 = sphi 0, %s33
    %s50 = sphi 0, %s34
    %s56 = sphi 0, %s58
    %s59 = sphi 0, %s56
    %s60 = sphi 0, %s59
    %s76 = sphi 0, %s60
    %s82 = sphi 0, %s84
    %s85 = sphi 0, %s82
    %s86 = sphi 0, %s85
    %s102 = sphi 0, %s86
    %s106 = sphi 0, %s106
    %s108 = sphi 0, %s106
    %s109 = sphi 0, %s108
    %s123 = sphi 0, %s109
    %s127 = sphi 0, %s127
    %s129 = sphi 0, %s127
    %s130 = sphi 0, %s129
    %s144 = sphi 0, %s130
    %s148 = sphi 0, %s148
    %s150 = sphi 0, %s148
    %s151 = sphi 0, %s150
    %s165 = sphi 0, %s151
    %s169 = sphi 0, %s169
    %s171 = sphi 0, %s169
    %s172 = sphi 0, %s171
    %s186 = sphi 0, %s172
    %s190 = sphi 0, %s190
    %s192 = sphi 0, %s190
    %s193 = sphi 0, %s192
    %s207 = sphi 0, %s193
    %s211 = sphi 0, %s211
    %s213 = sphi 0, %s211
    %s214 = sphi 0, %s213
    %s228 = sphi 0, %s214
    %s232 = sphi 0, %s232
    %s234 = sphi 0, %s232
    %s235 = sphi 0, %s234
    %s249 = sphi 0, %s235
    %s253 = sphi 0, %s253
    %s255 = sphi 0, %s253
    %s256 = sphi 0, %s255
    %s270 = sphi 0, %s256
    %s274 = sphi 0, %s274
    %s276 = sphi 0, %s274
    %s277 = sphi 0, %s276
    %s291 = sphi 0, %s277
    %s295 = sphi 0, %s295
    %s297 = sphi 0, %s295
    %s298 = sphi 0, %s297
    %s312 = sphi 0, %s298
    %s316 = sphi 0, %s316
    %s318 = sphi 0, %s316
    %s319 = sphi 0, %s318
    %s333 = sphi 0, %s319
    %s339 = sphi 0, %s341
    %s342 = sphi 0, %s339
    %s343 = sphi 0, %s342
    %s359 = sphi 0, %s343
  $region4: #{decoder_forward.8} parent=0 // loop_header_branch
    %23 = sbr.rel (%p21) target = $region8
  $region5: #{decoder_forward.8} parent=0 // loop_body
    %s25 = ssub.s32 %s20, 1
    %s26 = ssub.s32 %s20, 2
    %s27 = sadd.s32 %s20, 1
    %s28 = ssub.s32 %s20, %s27
    %p29 = scmp.eq.s32.totalorder %s28, 0
    %s31 = sadd.s32 %s30, 1
    %s32 = scalar_select %p29, %s30, %s31
    %p35 = pneg %p29
    %p36 = scmp.eq.s32.totalorder %s20, 1
    %p37 = por %p35, %p36
    %p38 = scmp.ne.s32.totalorder %s30, %s33
    %p39 = scmp.eq.s32.totalorder %s20, 0
    %p40 = por %p38, %p39
    %p41 = scmp.ne.s32.totalorder %s30, %s33
    %p42 = scmp.eq.s32.totalorder %s25, 1
    %p43 = por %p41, %p42
    %p44 = scmp.ne.s32.totalorder %s33, %s34
    %p45 = scmp.eq.s32.totalorder %s25, 0
    %p46 = por %p44, %p45
    %p47 = scmp.ne.s32.totalorder %s33, %s34
    %p48 = scmp.eq.s32.totalorder %s26, 1
    %p49 = por %p47, %p48
    %p51 = scmp.ne.s32.totalorder %s34, %s50
    %p52 = scmp.eq.s32.totalorder %s26, 0
    %p53 = por %p51, %p52
    %s54 = ssub.s32 %s20, %s27
    %p55 = scmp.eq.s32.totalorder %s54, 0
    %s57 = sadd.s32 %s56, 1
    %s58 = scalar_select %p55, %s56, %s57
    %p61 = pneg %p55
    %p62 = scmp.eq.s32.totalorder %s20, 1
    %p63 = por %p61, %p62
    %p64 = scmp.ne.s32.totalorder %s56, %s59
    %p65 = scmp.eq.s32.totalorder %s20, 0
    %p66 = por %p64, %p65
    %p67 = scmp.ne.s32.totalorder %s56, %s59
    %p68 = scmp.eq.s32.totalorder %s25, 1
    %p69 = por %p67, %p68
    %p70 = scmp.ne.s32.totalorder %s59, %s60
    %p71 = scmp.eq.s32.totalorder %s25, 0
    %p72 = por %p70, %p71
    %p73 = scmp.ne.s32.totalorder %s59, %s60
    %p74 = scmp.eq.s32.totalorder %s26, 1
    %p75 = por %p73, %p74
    %p77 = scmp.ne.s32.totalorder %s60, %s76
    %p78 = scmp.eq.s32.totalorder %s26, 0
    %p79 = por %p77, %p78
    %s80 = ssub.s32 %s20, %s27
    %p81 = scmp.eq.s32.totalorder %s80, 0
    %s83 = sadd.s32 %s82, 1
    %s84 = scalar_select %p81, %s82, %s83
    %p87 = pneg %p81
    %p88 = scmp.eq.s32.totalorder %s20, 1
    %p89 = por %p87, %p88
    %p90 = scmp.ne.s32.totalorder %s82, %s85
    %p91 = scmp.eq.s32.totalorder %s20, 0
    %p92 = por %p90, %p91
    %p93 = scmp.ne.s32.totalorder %s82, %s85
    %p94 = scmp.eq.s32.totalorder %s25, 1
    %p95 = por %p93, %p94
    %p96 = scmp.ne.s32.totalorder %s85, %s86
    %p97 = scmp.eq.s32.totalorder %s25, 0
    %p98 = por %p96, %p97
    %p99 = scmp.ne.s32.totalorder %s85, %s86
    %p100 = scmp.eq.s32.totalorder %s26, 1
    %p101 = por %p99, %p100
    %p103 = scmp.ne.s32.totalorder %s86, %s102
    %p104 = scmp.eq.s32.totalorder %s26, 0
    %p105 = por %p103, %p104
    %s107 = sadd.s32 %s106, 1
    %p110 = scmp.eq.s32.totalorder %s20, 1
    %p111 = scmp.ne.s32.totalorder %s106, %s108
    %p112 = scmp.eq.s32.totalorder %s20, 0
    %p113 = por %p111, %p112
    %p114 = scmp.ne.s32.totalorder %s106, %s108
    %p115 = scmp.eq.s32.totalorder %s25, 1
    %p116 = por %p114, %p115
    %p117 = scmp.ne.s32.totalorder %s108, %s109
    %p118 = scmp.eq.s32.totalorder %s25, 0
    %p119 = por %p117, %p118
    %p120 = scmp.ne.s32.totalorder %s108, %s109
    %p121 = scmp.eq.s32.totalorder %s26, 1
    %p122 = por %p120, %p121
    %p124 = scmp.ne.s32.totalorder %s109, %s123
    %p125 = scmp.eq.s32.totalorder %s26, 0
    %p126 = por %p124, %p125
    %s128 = sadd.s32 %s127, 1
    %p131 = scmp.eq.s32.totalorder %s20, 1
    %p132 = scmp.ne.s32.totalorder %s127, %s129
    %p133 = scmp.eq.s32.totalorder %s20, 0
    %p134 = por %p132, %p133
    %p135 = scmp.ne.s32.totalorder %s127, %s129
    %p136 = scmp.eq.s32.totalorder %s25, 1
    %p137 = por %p135, %p136
    %p138 = scmp.ne.s32.totalorder %s129, %s130
    %p139 = scmp.eq.s32.totalorder %s25, 0
    %p140 = por %p138, %p139
    %p141 = scmp.ne.s32.totalorder %s129, %s130
    %p142 = scmp.eq.s32.totalorder %s26, 1
    %p143 = por %p141, %p142
    %p145 = scmp.ne.s32.totalorder %s130, %s144
    %p146 = scmp.eq.s32.totalorder %s26, 0
    %p147 = por %p145, %p146
    %s149 = sadd.s32 %s148, 1
    %p152 = scmp.eq.s32.totalorder %s20, 1
    %p153 = scmp.ne.s32.totalorder %s148, %s150
    %p154 = scmp.eq.s32.totalorder %s20, 0
    %p155 = por %p153, %p154
    %p156 = scmp.ne.s32.totalorder %s148, %s150
    %p157 = scmp.eq.s32.totalorder %s25, 1
    %p158 = por %p156, %p157
    %p159 = scmp.ne.s32.totalorder %s150, %s151
    %p160 = scmp.eq.s32.totalorder %s25, 0
    %p161 = por %p159, %p160
    %p162 = scmp.ne.s32.totalorder %s150, %s151
    %p163 = scmp.eq.s32.totalorder %s26, 1
    %p164 = por %p162, %p163
    %p166 = scmp.ne.s32.totalorder %s151, %s165
    %p167 = scmp.eq.s32.totalorder %s26, 0
    %p168 = por %p166, %p167
    %s170 = sadd.s32 %s169, 1
    %p173 = scmp.eq.s32.totalorder %s20, 1
    %p174 = scmp.ne.s32.totalorder %s169, %s171
    %p175 = scmp.eq.s32.totalorder %s20, 0
    %p176 = por %p174, %p175
    %p177 = scmp.ne.s32.totalorder %s169, %s171
    %p178 = scmp.eq.s32.totalorder %s25, 1
    %p179 = por %p177, %p178
    %p180 = scmp.ne.s32.totalorder %s171, %s172
    %p181 = scmp.eq.s32.totalorder %s25, 0
    %p182 = por %p180, %p181
    %p183 = scmp.ne.s32.totalorder %s171, %s172
    %p184 = scmp.eq.s32.totalorder %s26, 1
    %p185 = por %p183, %p184
    %p187 = scmp.ne.s32.totalorder %s172, %s186
    %p188 = scmp.eq.s32.totalorder %s26, 0
    %p189 = por %p187, %p188
    %s191 = sadd.s32 %s190, 1
    %p194 = scmp.eq.s32.totalorder %s20, 1
    %p195 = scmp.ne.s32.totalorder %s190, %s192
    %p196 = scmp.eq.s32.totalorder %s20, 0
    %p197 = por %p195, %p196
    %p198 = scmp.ne.s32.totalorder %s190, %s192
    %p199 = scmp.eq.s32.totalorder %s25, 1
    %p200 = por %p198, %p199
    %p201 = scmp.ne.s32.totalorder %s192, %s193
    %p202 = scmp.eq.s32.totalorder %s25, 0
    %p203 = por %p201, %p202
    %p204 = scmp.ne.s32.totalorder %s192, %s193
    %p205 = scmp.eq.s32.totalorder %s26, 1
    %p206 = por %p204, %p205
    %p208 = scmp.ne.s32.totalorder %s193, %s207
    %p209 = scmp.eq.s32.totalorder %s26, 0
    %p210 = por %p208, %p209
    %s212 = sadd.s32 %s211, 1
    %p215 = scmp.eq.s32.totalorder %s20, 1
    %p216 = scmp.ne.s32.totalorder %s211, %s213
    %p217 = scmp.eq.s32.totalorder %s20, 0
    %p218 = por %p216, %p217
    %p219 = scmp.ne.s32.totalorder %s211, %s213
    %p220 = scmp.eq.s32.totalorder %s25, 1
    %p221 = por %p219, %p220
    %p222 = scmp.ne.s32.totalorder %s213, %s214
    %p223 = scmp.eq.s32.totalorder %s25, 0
    %p224 = por %p222, %p223
    %p225 = scmp.ne.s32.totalorder %s213, %s214
    %p226 = scmp.eq.s32.totalorder %s26, 1
    %p227 = por %p225, %p226
    %p229 = scmp.ne.s32.totalorder %s214, %s228
    %p230 = scmp.eq.s32.totalorder %s26, 0
    %p231 = por %p229, %p230
    %s233 = sadd.s32 %s232, 1
    %p236 = scmp.eq.s32.totalorder %s20, 1
    %p237 = scmp.ne.s32.totalorder %s232, %s234
    %p238 = scmp.eq.s32.totalorder %s20, 0
    %p239 = por %p237, %p238
    %p240 = scmp.ne.s32.totalorder %s232, %s234
    %p241 = scmp.eq.s32.totalorder %s25, 1
    %p242 = por %p240, %p241
    %p243 = scmp.ne.s32.totalorder %s234, %s235
    %p244 = scmp.eq.s32.totalorder %s25, 0
    %p245 = por %p243, %p244
    %p246 = scmp.ne.s32.totalorder %s234, %s235
    %p247 = scmp.eq.s32.totalorder %s26, 1
    %p248 = por %p246, %p247
    %p250 = scmp.ne.s32.totalorder %s235, %s249
    %p251 = scmp.eq.s32.totalorder %s26, 0
    %p252 = por %p250, %p251
    %s254 = sadd.s32 %s253, 1
    %p257 = scmp.eq.s32.totalorder %s20, 1
    %p258 = scmp.ne.s32.totalorder %s253, %s255
    %p259 = scmp.eq.s32.totalorder %s20, 0
    %p260 = por %p258, %p259
    %p261 = scmp.ne.s32.totalorder %s253, %s255
    %p262 = scmp.eq.s32.totalorder %s25, 1
    %p263 = por %p261, %p262
    %p264 = scmp.ne.s32.totalorder %s255, %s256
    %p265 = scmp.eq.s32.totalorder %s25, 0
    %p266 = por %p264, %p265
    %p267 = scmp.ne.s32.totalorder %s255, %s256
    %p268 = scmp.eq.s32.totalorder %s26, 1
    %p269 = por %p267, %p268
    %p271 = scmp.ne.s32.totalorder %s256, %s270
    %p272 = scmp.eq.s32.totalorder %s26, 0
    %p273 = por %p271, %p272
    %s275 = sadd.s32 %s274, 1
    %p278 = scmp.eq.s32.totalorder %s20, 1
    %p279 = scmp.ne.s32.totalorder %s274, %s276
    %p280 = scmp.eq.s32.totalorder %s20, 0
    %p281 = por %p279, %p280
    %p282 = scmp.ne.s32.totalorder %s274, %s276
    %p283 = scmp.eq.s32.totalorder %s25, 1
    %p284 = por %p282, %p283
    %p285 = scmp.ne.s32.totalorder %s276, %s277
    %p286 = scmp.eq.s32.totalorder %s25, 0
    %p287 = por %p285, %p286
    %p288 = scmp.ne.s32.totalorder %s276, %s277
    %p289 = scmp.eq.s32.totalorder %s26, 1
    %p290 = por %p288, %p289
    %p292 = scmp.ne.s32.totalorder %s277, %s291
    %p293 = scmp.eq.s32.totalorder %s26, 0
    %p294 = por %p292, %p293
    %s296 = sadd.s32 %s295, 1
    %p299 = scmp.eq.s32.totalorder %s20, 1
    %p300 = scmp.ne.s32.totalorder %s295, %s297
    %p301 = scmp.eq.s32.totalorder %s20, 0
    %p302 = por %p300, %p301
    %p303 = scmp.ne.s32.totalorder %s295, %s297
    %p304 = scmp.eq.s32.totalorder %s25, 1
    %p305 = por %p303, %p304
    %p306 = scmp.ne.s32.totalorder %s297, %s298
    %p307 = scmp.eq.s32.totalorder %s25, 0
    %p308 = por %p306, %p307
    %p309 = scmp.ne.s32.totalorder %s297, %s298
    %p310 = scmp.eq.s32.totalorder %s26, 1
    %p311 = por %p309, %p310
    %p313 = scmp.ne.s32.totalorder %s298, %s312
    %p314 = scmp.eq.s32.totalorder %s26, 0
    %p315 = por %p313, %p314
    %s317 = sadd.s32 %s316, 1
    %p320 = scmp.eq.s32.totalorder %s20, 1
    %p321 = scmp.ne.s32.totalorder %s316, %s318
    %p322 = scmp.eq.s32.totalorder %s20, 0
    %p323 = por %p321, %p322
    %p324 = scmp.ne.s32.totalorder %s316, %s318
    %p325 = scmp.eq.s32.totalorder %s25, 1
    %p326 = por %p324, %p325
    %p327 = scmp.ne.s32.totalorder %s318, %s319
    %p328 = scmp.eq.s32.totalorder %s25, 0
    %p329 = por %p327, %p328
    %p330 = scmp.ne.s32.totalorder %s318, %s319
    %p331 = scmp.eq.s32.totalorder %s26, 1
    %p332 = por %p330, %p331
    %p334 = scmp.ne.s32.totalorder %s319, %s333
    %p335 = scmp.eq.s32.totalorder %s26, 0
    %p336 = por %p334, %p335
    %s337 = ssub.s32 %s20, %s27
    %p338 = scmp.eq.s32.totalorder %s337, 0
    %s340 = sadd.s32 %s339, 1
    %s341 = scalar_select %p338, %s339, %s340
    %p344 = pneg %p338
    %p345 = scmp.eq.s32.totalorder %s20, 1
    %p346 = por %p344, %p345
    %p347 = scmp.ne.s32.totalorder %s339, %s342
    %p348 = scmp.eq.s32.totalorder %s20, 0
    %p349 = por %p347, %p348
    %p350 = scmp.ne.s32.totalorder %s339, %s342
    %p351 = scmp.eq.s32.totalorder %s25, 1
    %p352 = por %p350, %p351
    %p353 = scmp.ne.s32.totalorder %s342, %s343
    %p354 = scmp.eq.s32.totalorder %s25, 0
    %p355 = por %p353, %p354
    %p356 = scmp.ne.s32.totalorder %s342, %s343
    %p357 = scmp.eq.s32.totalorder %s26, 1
    %p358 = por %p356, %p357
    %p360 = scmp.ne.s32.totalorder %s343, %s359
    %p361 = scmp.eq.s32.totalorder %s26, 0
    %p362 = por %p360, %p361
    %p363 = scmp.le.s32.totalorder 1, %s20
    %p364 = scmp.lt.s32.totalorder %s20, 3
    %p365 = pnand %p363, %p364
    %p366 = pneg %p365
    // Predicated region
    $region9: #{decoder_forward.8} parent=5 // pred_check
      _
    $region10: #{decoder_forward.8} parent=5 // pred_check_branch
      %368 = sbr.rel (%p365) target = $region12
    $region11: #{decoder_forward.8} parent=5 // pred_region
      %s369 = ssub.s32 %s20, 1
      // Predicated region
      $region13: #{decoder_forward.8} parent=11 // pred_check
        %p370 = pneg %p119
      $region14: #{decoder_forward.8} parent=11 // pred_check_branch
        %372 = sbr.rel (%p370) target = $region16
      $region15: #{decoder_forward.8} parent=11 // pred_region
        _
      $region16: #{decoder_forward.8} parent=11 // pred_fallthru
        _
      // Predicated region
      $region17: #{decoder_forward.8} parent=11 // pred_check
        %p373 = pneg %p140
      $region18: #{decoder_forward.8} parent=11 // pred_check_branch
        %375 = sbr.rel (%p373) target = $region20
      $region19: #{decoder_forward.8} parent=11 // pred_region
        _
      $region20: #{decoder_forward.8} parent=11 // pred_fallthru
        _
      // Predicated region
      $region21: #{decoder_forward.8} parent=11 // pred_check
        %p376 = pneg %p161
      $region22: #{decoder_forward.8} parent=11 // pred_check_branch
        %378 = sbr.rel (%p376) target = $region24
      $region23: #{decoder_forward.8} parent=11 // pred_region
        _
      $region24: #{decoder_forward.8} parent=11 // pred_fallthru
        _
      // Predicated region
      $region25: #{decoder_forward.8} parent=11 // pred_check
        %p379 = pneg %p182
      $region26: #{decoder_forward.8} parent=11 // pred_check_branch
        %381 = sbr.rel (%p379) target = $region28
      $region27: #{decoder_forward.8} parent=11 // pred_region
        _
      $region28: #{decoder_forward.8} parent=11 // pred_fallthru
        _
      // Predicated region
      $region29: #{decoder_forward.8} parent=11 // pred_check
        %p382 = pneg %p203
      $region30: #{decoder_forward.8} parent=11 // pred_check_branch
        %384 = sbr.rel (%p382) target = $region32
      $region31: #{decoder_forward.8} parent=11 // pred_region
        _
      $region32: #{decoder_forward.8} parent=11 // pred_fallthru
        _
      // Predicated region
      $region33: #{decoder_forward.8} parent=11 // pred_check
        %p385 = pneg %p224
      $region34: #{decoder_forward.8} parent=11 // pred_check_branch
        %387 = sbr.rel (%p385) target = $region36
      $region35: #{decoder_forward.8} parent=11 // pred_region
        _
      $region36: #{decoder_forward.8} parent=11 // pred_fallthru
        _
      // Predicated region
      $region37: #{decoder_forward.8} parent=11 // pred_check
        %p388 = pneg %p245
      $region38: #{decoder_forward.8} parent=11 // pred_check_branch
        %390 = sbr.rel (%p388) target = $region40
      $region39: #{decoder_forward.8} parent=11 // pred_region
        _
      $region40: #{decoder_forward.8} parent=11 // pred_fallthru
        _
      // Predicated region
      $region41: #{decoder_forward.8} parent=11 // pred_check
        %p391 = pneg %p266
      $region42: #{decoder_forward.8} parent=11 // pred_check_branch
        %393 = sbr.rel (%p391) target = $region44
      $region43: #{decoder_forward.8} parent=11 // pred_region
        _
      $region44: #{decoder_forward.8} parent=11 // pred_fallthru
        _
      // Predicated region
      $region45: #{decoder_forward.8} parent=11 // pred_check
        %p394 = pneg %p287
      $region46: #{decoder_forward.8} parent=11 // pred_check_branch
        %396 = sbr.rel (%p394) target = $region48
      $region47: #{decoder_forward.8} parent=11 // pred_region
        _
      $region48: #{decoder_forward.8} parent=11 // pred_fallthru
        _
      // Predicated region
      $region49: #{decoder_forward.8} parent=11 // pred_check
        %p397 = pneg %p308
      $region50: #{decoder_forward.8} parent=11 // pred_check_branch
        %399 = sbr.rel (%p397) target = $region52
      $region51: #{decoder_forward.8} parent=11 // pred_region
        _
      $region52: #{decoder_forward.8} parent=11 // pred_fallthru
        _
      // Predicated region
      $region53: #{decoder_forward.8} parent=11 // pred_check
        %p400 = pneg %p329
      $region54: #{decoder_forward.8} parent=11 // pred_check_branch
        %402 = sbr.rel (%p400) target = $region56
      $region55: #{decoder_forward.8} parent=11 // pred_region
        _
      $region56: #{decoder_forward.8} parent=11 // pred_fallthru
        _
    $region12: #{decoder_forward.8} parent=5 // pred_fallthru
      _
    %p403 = scmp.lt.s32.totalorder %s20, 2
    // Predicated region
    $region57: #{decoder_forward.8} parent=5 // pred_check
      %p404 = pneg %p403
    $region58: #{decoder_forward.8} parent=5 // pred_check_branch
      %406 = sbr.rel (%p404) target = $region60
    $region59: #{decoder_forward.8} parent=5 // pred_region
      // Predicated region
      $region61: #{decoder_forward.8} parent=59 // pred_check
        %p407 = pneg %p40
      $region62: #{decoder_forward.8} parent=59 // pred_check_branch
        %409 = sbr.rel (%p407) target = $region64
      $region63: #{decoder_forward.8} parent=59 // pred_region
        %p410 = scmp.lt.s32.totalorder %s20, 1
        %s411 = scalar_select %p410, %s20, 1
        %s412 = smul.addr %s411, 8
        %s413 = scalar_lea.vmem %s0, %s412
      $region64: #{decoder_forward.8} parent=59 // pred_fallthru
        _
      // Predicated region
      $region65: #{decoder_forward.8} parent=59 // pred_check
        %p414 = pneg %p66
      $region66: #{decoder_forward.8} parent=59 // pred_check_branch
        %416 = sbr.rel (%p414) target = $region68
      $region67: #{decoder_forward.8} parent=59 // pred_region
        %p417 = scmp.lt.s32.totalorder %s20, 1
        %s418 = scalar_select %p417, %s20, 1
        %s419 = smul.addr %s418, 8
        %s420 = scalar_lea.vmem %s1, %s419
      $region68: #{decoder_forward.8} parent=59 // pred_fallthru
        _
      // Predicated region
      $region69: #{decoder_forward.8} parent=59 // pred_check
        %p421 = pneg %p92
      $region70: #{decoder_forward.8} parent=59 // pred_check_branch
        %423 = sbr.rel (%p421) target = $region72
      $region71: #{decoder_forward.8} parent=59 // pred_region
        %p424 = scmp.lt.s32.totalorder %s20, 1
        %s425 = scalar_select %p424, %s20, 1
        %s426 = smul.addr %s425, 8
        %s427 = scalar_lea.vmem %s2, %s426
      $region72: #{decoder_forward.8} parent=59 // pred_fallthru
        _
    $region60: #{decoder_forward.8} parent=5 // pred_fallthru
      _
    %p428 = scmp.le.s32.totalorder 1, %s20
    %p429 = scmp.lt.s32.totalorder %s20, 3
    %p430 = pnand %p428, %p429
    %p431 = pneg %p430
    // Predicated region
    $region73: #{decoder_forward.8} parent=5 // pred_check
      _
    $region74: #{decoder_forward.8} parent=5 // pred_check_branch
      %433 = sbr.rel (%p430) target = $region76
    $region75: #{decoder_forward.8} parent=5 // pred_region
      %s434 = ssub.s32 %s20, 1
      %p435 = scmp.lt.s32.totalorder %s25, 1
      %s436 = scalar_select %p435, %s25, 1
      %s437 = smul.addr %s436, 8
      %s438 = scalar_lea.vmem %s0, %s437
      %p439 = pneg %p46
      %p440 = pneg %p43
      %p441 = scmp.lt.s32.totalorder %s25, 1
      %s442 = scalar_select %p441, %s25, 1
      %s443 = smul.addr %s442, 8
      %s444 = scalar_lea.vmem %s1, %s443
      %p445 = pneg %p72
      %p446 = pneg %p69
      %p447 = scmp.lt.s32.totalorder %s25, 1
      %s448 = scalar_select %p447, %s25, 1
      %s449 = smul.addr %s448, 8
      %s450 = scalar_lea.vmem %s2, %s449
      %p451 = pneg %p98
      %p452 = pneg %p95
      %p453 = pneg %p119
      %p454 = pneg %p116
      %p455 = pneg %p140
      %p456 = pneg %p137
      %p457 = pneg %p161
      %p458 = pneg %p158
      %p459 = pneg %p182
      %p460 = pneg %p179
      %p461 = pneg %p203
      %p462 = pneg %p200
      %p463 = pneg %p224
      %p464 = pneg %p221
      %p465 = pneg %p245
      %p466 = pneg %p242
      %p467 = pneg %p266
      %p468 = pneg %p263
      %p469 = pneg %p287
      %p470 = pneg %p284
      %p471 = pneg %p308
      %p472 = pneg %p305
      %p473 = pneg %p329
      %p474 = pneg %p326
      %p475 = pneg %p355
      %p476 = pneg %p352
      %p477 = scmp.lt.s32.totalorder %s25, 1
      %s478 = scalar_select %p477, %s25, 1
      %s479 = smul.addr %s478, 8
      %s480 = scalar_lea.vmem %s14, %s479
      %p481 = scmp.lt.s32.totalorder %s25, 1
      %s482 = scalar_select %p481, %s25, 1
      %s483 = smul.addr %s482, 8
      %s484 = scalar_lea.vmem %s0, %s483
      %p485 = scmp.lt.s32.totalorder %s25, 1
      %s486 = scalar_select %p485, %s25, 1
      %s487 = smul.addr %s486, 8
      %s488 = scalar_lea.vmem %s1, %s487
      %p489 = scmp.lt.s32.totalorder %s25, 1
      %s490 = scalar_select %p489, %s25, 1
      %s491 = smul.addr %s490, 8
      %s492 = scalar_lea.vmem %s2, %s491
      %p493 = scmp.lt.s32.totalorder %s25, 1
      %s494 = scalar_select %p493, %s25, 1
      %s495 = smul.addr %s494, 8
      %s496 = scalar_lea.vmem %s14, %s495
      %v498 = vld [vmem:[%s484] sm:$0xff]
      %v499 = vld [vmem:[%s4] sm:$0x1]
      %v500 = vld [vmem:[%s5] sm:$0x1]
      %vm501 = vcmask 261120
      %v502 = vsel %vm501, %v498, 0.0
      %503 = vadd.xlane.f32.xlu0 %v502
      %v504 = vpop.xlane.xlu0 %503
      %v505 = vrcp.pop 32.0
      %v506 = vmul.f32 %v504, %v505
      %v507 = vsub.f32 %v498, %v506
      %v508 = vmul.f32 %v507, %v507
      %v509 = vsel %vm501, %v508, 0.0
      %510 = vadd.xlane.f32.xlu0 %v509
      %v511 = vpop.xlane.xlu0 %510
      %v512 = vmul.f32 %v511, %v505
      %v513 = vadd.f32 %v512, 1e-06
      %v514 = vrsqrt.pop %v513
      %v515 = vmul.f32 %v507, %v514
      %v517 = vlaneseq
      %v518 = vshrl.u32 %v517, 7
      %v519 = vsub.s32 0, %v518
      %v520 = vrot.slane %v499, %v519
      %v522 = vmul.f32 %v515, %v520
      %v524 = vlaneseq
      %v525 = vshrl.u32 %v524, 7
      %v526 = vsub.s32 0, %v525
      %v527 = vrot.slane %v500, %v526
      %v529 = vadd.f32 %v522, %v527
      %v530 = vpack.c.bf16 %v529, %v529
      %v531 = vld [vmem:[%s6] sm:$0xf]
      %v532 = vld [vmem:[%s6 + $0x4] sm:$0xf]
      %v533 = vld [vmem:[%s6 + $0x8] sm:$0xf]
      %v534 = vld [vmem:[%s6 + $0xc] sm:$0xf]
      %v535 = vld [vmem:[%s7] sm:$0x1]
      %v537 = vlaneseq
      %v538 = vshrl.u32 %v537, 7
      %v539 = vsub.s32 0, %v538
      %v540 = vrot.slane %v535, %v539
      %v546 = vunpack.c.l.b16 %v531
      %v547 = vunpack.c.l.b16 %v532
      %v548 = vunpack.c.l.b16 %v533
      %v549 = vunpack.c.l.b16 %v534
      %v550 = vpack.c.b16 %v547, %v546
      %v551 = vpack.c.b16 %v549, %v548
      %v555 = vsel %vm501, %v530, 0
      %557 = vmatprep.subr.bf16.mxu0 0
      %558 = vmatpush1.bf16.msra.mxu0 %v550
      %559 = vmatprep.subr.bf16.mxu0 0
      %560 = vmatpush1.bf16.msra.mxu0 %v551
      %561 = vmatprep.subr.bf16.mxu0 0
      %562 = vmatpush1.bf16.msra.mxu0 0
      %563 = vmatprep.subr.bf16.mxu0 0
      %564 = vmatpush1.bf16.msra.mxu0 0
      %565 = vmatprep.subr.bf16.mxu0 0
      %566 = vmatpush1.bf16.msra.mxu0 0
      %567 = vmatprep.subr.bf16.mxu0 0
      %568 = vmatpush1.bf16.msra.mxu0 0
      %569 = vmatprep.subr.bf16.mxu0 0
      %570 = vmatpush1.bf16.msra.mxu0 0
      %571 = vmatprep.subr.bf16.mxu0 0
      %572 = vmatpush1.bf16.msra.mxu0 0
      %573 = vmatprep.subr.bf16.mxu0 0
      %574 = vmatpush1.bf16.msra.mxu0 0
      %575 = vmatprep.subr.bf16.mxu0 0
      %576 = vmatpush1.bf16.msra.mxu0 0
      %577 = vmatprep.subr.bf16.mxu0 0
      %578 = vmatpush1.bf16.msra.mxu0 0
      %579 = vmatprep.subr.bf16.mxu0 0
      %580 = vmatpush1.bf16.msra.mxu0 0
      %581 = vmatprep.subr.bf16.mxu0 0
      %582 = vmatpush1.bf16.msra.mxu0 0
      %583 = vmatprep.subr.bf16.mxu0 0
      %584 = vmatpush1.bf16.msra.mxu0 0
      %585 = vmatprep.subr.bf16.mxu0 0
      %586 = vmatpush1.bf16.msra.mxu0 0
      %587 = vmatprep.subr.bf16.mxu0 0
      %588 = vmatpush1.bf16.msra.mxu0 0
      %589 = vmatprep.mubr.bf16.mxu0 0
      %590 = vmatmul.mubr.bf16.gmra.mrb[0].mxu0 %v555
      %v591 = vpop.f32.mrb[0].mxu0
      %v592 = vadd.f32 %v540, %v591
      %v593 = vpop.f32.mrb[0].mxu0
      %v594 = vpop.f32.mrb[0].mxu0
      %v595 = vpop.f32.mrb[0].mxu0
      %596 = vdwg.mxu0
      %v597 = vld [vmem:[%s488] sm:$0xff]
      %v598 = vpack.c.bf16 %v597, %v597
      %v599 = vld [vmem:[%s8] sm:$0xf]
      %v600 = vld [vmem:[%s8 + $0x4] sm:$0xf]
      %v601 = vld [vmem:[%s8 + $0x8] sm:$0xf]
      %v602 = vld [vmem:[%s8 + $0xc] sm:$0xf]
      %v603 = vld [vmem:[%s9] sm:$0x1]
      %v605 = vlaneseq
      %v606 = vshrl.u32 %v605, 7
      %v607 = vsub.s32 0, %v606
      %v608 = vrot.slane %v603, %v607
      %v614 = vunpack.c.l.b16 %v599
      %v615 = vunpack.c.l.b16 %v600
      %v616 = vunpack.c.l.b16 %v601
      %v617 = vunpack.c.l.b16 %v602
      %v618 = vpack.c.b16 %v615, %v614
      %v619 = vpack.c.b16 %v617, %v616
      %v623 = vsel %vm501, %v598, 0
      %625 = vmatprep.subr.bf16.mxu0 0
      %626 = vmatpush1.bf16.msra.mxu0 %v618
      %627 = vmatprep.subr.bf16.mxu0 0
      %628 = vmatpush1.bf16.msra.mxu0 %v619
      %629 = vmatprep.subr.bf16.mxu0 0
      %630 = vmatpush1.bf16.msra.mxu0 0
      %631 = vmatprep.subr.bf16.mxu0 0
      %632 = vmatpush1.bf16.msra.mxu0 0
      %633 = vmatprep.subr.bf16.mxu0 0
      %634 = vmatpush1.bf16.msra.mxu0 0
      %635 = vmatprep.subr.bf16.mxu0 0
      %636 = vmatpush1.bf16.msra.mxu0 0
      %637 = vmatprep.subr.bf16.mxu0 0
      %638 = vmatpush1.bf16.msra.mxu0 0
      %639 = vmatprep.subr.bf16.mxu0 0
      %640 = vmatpush1.bf16.msra.mxu0 0
      %641 = vmatprep.subr.bf16.mxu0 0
      %642 = vmatpush1.bf16.msra.mxu0 0
      %643 = vmatprep.subr.bf16.mxu0 0
      %644 = vmatpush1.bf16.msra.mxu0 0
      %645 = vmatprep.subr.bf16.mxu0 0
      %646 = vmatpush1.bf16.msra.mxu0 0
      %647 = vmatprep.subr.bf16.mxu0 0
      %648 = vmatpush1.bf16.msra.mxu0 0
      %649 = vmatprep.subr.bf16.mxu0 0
      %650 = vmatpush1.bf16.msra.mxu0 0
      %651 = vmatprep.subr.bf16.mxu0 0
      %652 = vmatpush1.bf16.msra.mxu0 0
      %653 = vmatprep.subr.bf16.mxu0 0
      %654 = vmatpush1.bf16.msra.mxu0 0
      %655 = vmatprep.subr.bf16.mxu0 0
      %656 = vmatpush1.bf16.msra.mxu0 0
      %657 = vmatprep.mubr.bf16.mxu0 0
      %658 = vmatmul.mubr.bf16.gmra.mrb[0].mxu0 %v623
      %v659 = vpop.f32.mrb[0].mxu0
      %v660 = vadd.f32 %v608, %v659
      %v661 = vpop.f32.mrb[0].mxu0
      %v662 = vpop.f32.mrb[0].mxu0
      %v663 = vpop.f32.mrb[0].mxu0
      %664 = vdwg.mxu0
      %v665 = vld [vmem:[%s492] sm:$0xff]
      %v666 = vpack.c.bf16 %v665, %v665
      %v667 = vld [vmem:[%s10] sm:$0xf]
      %v668 = vld [vmem:[%s10 + $0x4] sm:$0xf]
      %v669 = vld [vmem:[%s10 + $0x8] sm:$0xf]
      %v670 = vld [vmem:[%s10 + $0xc] sm:$0xf]
      %v671 = vld [vmem:[%s11] sm:$0x1]
      %v673 = vlaneseq
      %v674 = vshrl.u32 %v673, 7
      %v675 = vsub.s32 0, %v674
      %v676 = vrot.slane %v671, %v675
      %v682 = vunpack.c.l.b16 %v667
      %v683 = vunpack.c.l.b16 %v668
      %v684 = vunpack.c.l.b16 %v669
      %v685 = vunpack.c.l.b16 %v670
      %v686 = vpack.c.b16 %v683, %v682
      %v687 = vpack.c.b16 %v685, %v684
      %v691 = vsel %vm501, %v666, 0
      %693 = vmatprep.subr.bf16.mxu0 0
      %694 = vmatpush1.bf16.msra.mxu0 %v686
      %695 = vmatprep.subr.bf16.mxu0 0
      %696 = vmatpush1.bf16.msra.mxu0 %v687
      %697 = vmatprep.subr.bf16.mxu0 0
      %698 = vmatpush1.bf16.msra.mxu0 0
      %699 = vmatprep.subr.bf16.mxu0 0
      %700 = vmatpush1.bf16.msra.mxu0 0
      %701 = vmatprep.subr.bf16.mxu0 0
      %702 = vmatpush1.bf16.msra.mxu0 0
      %703 = vmatprep.subr.bf16.mxu0 0
      %704 = vmatpush1.bf16.msra.mxu0 0
      %705 = vmatprep.subr.bf16.mxu0 0
      %706 = vmatpush1.bf16.msra.mxu0 0
      %707 = vmatprep.subr.bf16.mxu0 0
      %708 = vmatpush1.bf16.msra.mxu0 0
      %709 = vmatprep.subr.bf16.mxu0 0
      %710 = vmatpush1.bf16.msra.mxu0 0
      %711 = vmatprep.subr.bf16.mxu0 0
      %712 = vmatpush1.bf16.msra.mxu0 0
      %713 = vmatprep.subr.bf16.mxu0 0
      %714 = vmatpush1.bf16.msra.mxu0 0
      %715 = vmatprep.subr.bf16.mxu0 0
      %716 = vmatpush1.bf16.msra.mxu0 0
      %717 = vmatprep.subr.bf16.mxu0 0
      %718 = vmatpush1.bf16.msra.mxu0 0
      %719 = vmatprep.subr.bf16.mxu0 0
      %720 = vmatpush1.bf16.msra.mxu0 0
      %721 = vmatprep.subr.bf16.mxu0 0
      %722 = vmatpush1.bf16.msra.mxu0 0
      %723 = vmatprep.subr.bf16.mxu0 0
      %724 = vmatpush1.bf16.msra.mxu0 0
      %725 = vmatprep.mubr.bf16.mxu0 0
      %726 = vmatmul.mubr.bf16.gmra.mrb[0].mxu0 %v691
      %v727 = vpop.f32.mrb[0].mxu0
      %v728 = vadd.f32 %v676, %v727
      %v729 = vpop.f32.mrb[0].mxu0
      %v730 = vpop.f32.mrb[0].mxu0
      %v731 = vpop.f32.mrb[0].mxu0
      %732 = vdwg.mxu0
      %v733 = vld [vmem:[%s3] sm:$0xff]
      %v734 = vpack.c.bf16 %v592, %v592
      %v735 = vpack.c.bf16 %v660, %v660
      %v736 = vpack.c.bf16 %v728, %v728
      %vm737 = vcmask 31744
      %v739 = vsel %vm737, %v734, 0
      %v742 = vsel %vm737, %v735, 0
      %744 = vmatprep.subr.bf16.mxu0 0
      %745 = vmatpush1.bf16.xpose.msra.mxu0 %v742
      %746 = vmatprep.subr.bf16.mxu0 0
      %747 = vmatpush1.bf16.xpose.msra.mxu0 0
      %748 = vmatprep.subr.bf16.mxu0 0
      %749 = vmatpush1.bf16.xpose.msra.mxu0 0
      %750 = vmatprep.subr.bf16.mxu0 0
      %751 = vmatpush1.bf16.xpose.msra.mxu0 0
      %752 = vmatprep.subr.bf16.mxu0 0
      %753 = vmatpush1.bf16.xpose.msra.mxu0 0
      %754 = vmatprep.subr.bf16.mxu0 0
      %755 = vmatpush1.bf16.xpose.msra.mxu0 0
      %756 = vmatprep.subr.bf16.mxu0 0
      %757 = vmatpush1.bf16.xpose.msra.mxu0 0
      %758 = vmatprep.subr.bf16.mxu0 0
      %759 = vmatpush1.bf16.xpose.msra.mxu0 0
      %760 = vmatprep.subr.bf16.mxu0 0
      %761 = vmatpush1.bf16.xpose.msra.mxu0 0
      %762 = vmatprep.subr.bf16.mxu0 0
      %763 = vmatpush1.bf16.xpose.msra.mxu0 0
      %764 = vmatprep.subr.bf16.mxu0 0
      %765 = vmatpush1.bf16.xpose.msra.mxu0 0
      %766 = vmatprep.subr.bf16.mxu0 0
      %767 = vmatpush1.bf16.xpose.msra.mxu0 0
      %768 = vmatprep.subr.bf16.mxu0 0
      %769 = vmatpush1.bf16.xpose.msra.mxu0 0
      %770 = vmatprep.subr.bf16.mxu0 0
      %771 = vmatpush1.bf16.xpose.msra.mxu0 0
      %772 = vmatprep.subr.bf16.mxu0 0
      %773 = vmatpush1.bf16.xpose.msra.mxu0 0
      %774 = vmatprep.subr.bf16.mxu0 0
      %775 = vmatpush1.bf16.xpose.msra.mxu0 0
      %776 = vmatprep.mubr.bf16.mxu0 0
      %777 = vmatmul.mubr.bf16.gmra.mrb[0].mxu0 %v739
      %v778 = vpop.f32.mrb[0].mxu0
      %v779 = vadd.f32 0.0, %v778
      %v780 = vpop.f32.mrb[0].mxu0
      %v781 = vpop.f32.mrb[0].mxu0
      %v782 = vpop.f32.mrb[0].mxu0
      %783 = vdwg.mxu0
      %v784 = vmul.f32 %v779, 0.5
      %v785 = vadd.f32 %v784, %v733
      %vm786 = vcmask 64512
      %v787 = vsel %vm786, %v785, -inf
      %788 = vmax.xlane.f32.xlu0 %v787
      %v789 = vpop.xlane.xlu0 %788
      %v790 = vsub.f32 %v785, %v789
      %v791 = vmul.f32 %v790, 1.442695
      %v792 = vpow.pop %v791
      %v793 = vsel %vm786, %v792, 0.0
      %794 = vadd.xlane.f32.xlu0 %v793
      %v795 = vpop.xlane.xlu0 %794
      %v796 = vrcp.pop %v795
      %v797 = vmul.f32 %v792, %v796
      %v798 = vpack.c.bf16 %v797, %v797
      %v800 = vsel %vm786, %v798, 0
      %vm802 = vcmask 1043456
      %v804 = vsel %vm802, %v736, 0
      %806 = vmatprep.subr.bf16.mxu0 0
      %807 = vmatpush1.bf16.msra.mxu0 %v804
      %808 = vmatprep.subr.bf16.mxu0 0
      %809 = vmatpush1.bf16.msra.mxu0 0
      %810 = vmatprep.subr.bf16.mxu0 0
      %811 = vmatpush1.bf16.msra.mxu0 0
      %812 = vmatprep.subr.bf16.mxu0 0
      %813 = vmatpush1.bf16.msra.mxu0 0
      %814 = vmatprep.subr.bf16.mxu0 0
      %815 = vmatpush1.bf16.msra.mxu0 0
      %816 = vmatprep.subr.bf16.mxu0 0
      %817 = vmatpush1.bf16.msra.mxu0 0
      %818 = vmatprep.subr.bf16.mxu0 0
      %819 = vmatpush1.bf16.msra.mxu0 0
      %820 = vmatprep.subr.bf16.mxu0 0
      %821 = vmatpush1.bf16.msra.mxu0 0
      %822 = vmatprep.subr.bf16.mxu0 0
      %823 = vmatpush1.bf16.msra.mxu0 0
      %824 = vmatprep.subr.bf16.mxu0 0
      %825 = vmatpush1.bf16.msra.mxu0 0
      %826 = vmatprep.subr.bf16.mxu0 0
      %827 = vmatpush1.bf16.msra.mxu0 0
      %828 = vmatprep.subr.bf16.mxu0 0
      %829 = vmatpush1.bf16.msra.mxu0 0
      %830 = vmatprep.subr.bf16.mxu0 0
      %831 = vmatpush1.bf16.msra.mxu0 0
      %832 = vmatprep.subr.bf16.mxu0 0
      %833 = vmatpush1.bf16.msra.mxu0 0
      %834 = vmatprep.subr.bf16.mxu0 0
      %835 = vmatpush1.bf16.msra.mxu0 0
      %836 = vmatprep.subr.bf16.mxu0 0
      %837 = vmatpush1.bf16.msra.mxu0 0
      %838 = vmatprep.mubr.bf16.mxu0 0
      %839 = vmatmul.mubr.bf16.gmra.mrb[0].mxu0 %v800
      %v840 = vpop.f32.mrb[0].mxu0
      %v841 = vadd.f32 0.0, %v840
      %v842 = vpop.f32.mrb[0].mxu0
      %v843 = vpop.f32.mrb[0].mxu0
      %v844 = vpop.f32.mrb[0].mxu0
      %845 = vdwg.mxu0
      %846 = vst.msk [vmem:[#allocation2] sm:$0xff] %vm737, %v841
      %848 = vrot.lane.b32.xlu0 %v734, 124
      %v849 = vpop.permute.xlu0 %848
      %851 = vrot.lane.b32.xlu0 %v735, 124
      %v852 = vpop.permute.xlu0 %851
      %v854 = vsel %vm737, %v849, 0
      %v857 = vsel %vm737, %v852, 0
      %859 = vmatprep.subr.bf16.mxu0 0
      %860 = vmatpush1.bf16.xpose.msra.mxu0 %v857
      %861 = vmatprep.subr.bf16.mxu0 0
      %862 = vmatpush1.bf16.xpose.msra.mxu0 0
      %863 = vmatprep.subr.bf16.mxu0 0
      %864 = vmatpush1.bf16.xpose.msra.mxu0 0
      %865 = vmatprep.subr.bf16.mxu0 0
      %866 = vmatpush1.bf16.xpose.msra.mxu0 0
      %867 = vmatprep.subr.bf16.mxu0 0
      %868 = vmatpush1.bf16.xpose.msra.mxu0 0
      %869 = vmatprep.subr.bf16.mxu0 0
      %870 = vmatpush1.bf16.xpose.msra.mxu0 0
      %871 = vmatprep.subr.bf16.mxu0 0
      %872 = vmatpush1.bf16.xpose.msra.mxu0 0
      %873 = vmatprep.subr.bf16.mxu0 0
      %874 = vmatpush1.bf16.xpose.msra.mxu0 0
      %875 = vmatprep.subr.bf16.mxu0 0
      %876 = vmatpush1.bf16.xpose.msra.mxu0 0
      %877 = vmatprep.subr.bf16.mxu0 0
      %878 = vmatpush1.bf16.xpose.msra.mxu0 0
      %879 = vmatprep.subr.bf16.mxu0 0
      %880 = vmatpush1.bf16.xpose.msra.mxu0 0
      %881 = vmatprep.subr.bf16.mxu0 0
      %882 = vmatpush1.bf16.xpose.msra.mxu0 0
      %883 = vmatprep.subr.bf16.mxu0 0
      %884 = vmatpush1.bf16.xpose.msra.mxu0 0
      %885 = vmatprep.subr.bf16.mxu0 0
      %886 = vmatpush1.bf16.xpose.msra.mxu0 0
      %887 = vmatprep.subr.bf16.mxu0 0
      %888 = vmatpush1.bf16.xpose.msra.mxu0 0
      %889 = vmatprep.subr.bf16.mxu0 0
      %890 = vmatpush1.bf16.xpose.msra.mxu0 0
      %891 = vmatprep.mubr.bf16.mxu0 0
      %892 = vmatmul.mubr.bf16.gmra.mrb[0].mxu0 %v854
      %v893 = vpop.f32.mrb[0].mxu0
      %v894 = vadd.f32 0.0, %v893
      %v895 = vpop.f32.mrb[0].mxu0
      %v896 = vpop.f32.mrb[0].mxu0
      %v897 = vpop.f32.mrb[0].mxu0
      %898 = vdwg.mxu0
      %v899 = vmul.f32 %v894, 0.5
      %v900 = vadd.f32 %v899, %v733
      %v901 = vsel %vm786, %v900, -inf
      %902 = vmax.xlane.f32.xlu0 %v901
      %v903 = vpop.xlane.xlu0 %902
      %v904 = vsub.f32 %v900, %v903
      %v905 = vmul.f32 %v904, 1.442695
      %v906 = vpow.pop %v905
      %v907 = vsel %vm786, %v906, 0.0
      %908 = vadd.xlane.f32.xlu0 %v907
      %v909 = vpop.xlane.xlu0 %908
      %v910 = vrcp.pop %v909
      %v911 = vmul.f32 %v906, %v910
      %v912 = vpack.c.bf16 %v911, %v911
      %914 = vrot.lane.b32.xlu0 %v736, 124
      %v915 = vpop.permute.xlu0 %914
      %v917 = vsel %vm786, %v912, 0
      %v920 = vsel %vm802, %v915, 0
      %922 = vmatprep.subr.bf16.mxu0 0
      %923 = vmatpush1.bf16.msra.mxu0 %v920
      %924 = vmatprep.subr.bf16.mxu0 0
      %925 = vmatpush1.bf16.msra.mxu0 0
      %926 = vmatprep.subr.bf16.mxu0 0
      %927 = vmatpush1.bf16.msra.mxu0 0
      %928 = vmatprep.subr.bf16.mxu0 0
      %929 = vmatpush1.bf16.msra.mxu0 0
      %930 = vmatprep.subr.bf16.mxu0 0
      %931 = vmatpush1.bf16.msra.mxu0 0
      %932 = vmatprep.subr.bf16.mxu0 0
      %933 = vmatpush1.bf16.msra.mxu0 0
      %934 = vmatprep.subr.bf16.mxu0 0
      %935 = vmatpush1.bf16.msra.mxu0 0
      %936 = vmatprep.subr.bf16.mxu0 0
      %937 = vmatpush1.bf16.msra.mxu0 0
      %938 = vmatprep.subr.bf16.mxu0 0
      %939 = vmatpush1.bf16.msra.mxu0 0
      %940 = vmatprep.subr.bf16.mxu0 0
      %941 = vmatpush1.bf16.msra.mxu0 0
      %942 = vmatprep.subr.bf16.mxu0 0
      %943 = vmatpush1.bf16.msra.mxu0 0
      %944 = vmatprep.subr.bf16.mxu0 0
      %945 = vmatpush1.bf16.msra.mxu0 0
      %946 = vmatprep.subr.bf16.mxu0 0
      %947 = vmatpush1.bf16.msra.mxu0 0
      %948 = vmatprep.subr.bf16.mxu0 0
      %949 = vmatpush1.bf16.msra.mxu0 0
      %950 = vmatprep.subr.bf16.mxu0 0
      %951 = vmatpush1.bf16.msra.mxu0 0
      %952 = vmatprep.subr.bf16.mxu0 0
      %953 = vmatpush1.bf16.msra.mxu0 0
      %954 = vmatprep.mubr.bf16.mxu0 0
      %955 = vmatmul.mubr.bf16.gmra.mrb[0].mxu0 %v917
      %v956 = vpop.f32.mrb[0].mxu0
      %v957 = vadd.f32 0.0, %v956
      %v958 = vpop.f32.mrb[0].mxu0
      %v959 = vpop.f32.mrb[0].mxu0
      %v960 = vpop.f32.mrb[0].mxu0
      %961 = vdwg.mxu0
      %963 = vrot.lane.b32.xlu0 %v957, 4
      %v964 = vpop.permute.xlu0 %963
      %vm966 = vcmask 64544
      %967 = vst.msk [vmem:[#allocation2] sm:$0xff] %vm966, %v964
      %968 = vrot.lane.b32.xlu0 %v734, 120
      %v969 = vpop.permute.xlu0 %968
      %970 = vrot.lane.b32.xlu0 %v735, 120
      %v971 = vpop.permute.xlu0 %970
      %v973 = vsel %vm737, %v969, 0
      %v976 = vsel %vm737, %v971, 0
      %978 = vmatprep.subr.bf16.mxu0 0
      %979 = vmatpush1.bf16.xpose.msra.mxu0 %v976
      %980 = vmatprep.subr.bf16.mxu0 0
      %981 = vmatpush1.bf16.xpose.msra.mxu0 0
      %982 = vmatprep.subr.bf16.mxu0 0
      %983 = vmatpush1.bf16.xpose.msra.mxu0 0
      %984 = vmatprep.subr.bf16.mxu0 0
      %985 = vmatpush1.bf16.xpose.msra.mxu0 0
      %986 = vmatprep.subr.bf16.mxu0 0
      %987 = vmatpush1.bf16.xpose.msra.mxu0 0
      %988 = vmatprep.subr.bf16.mxu0 0
      %989 = vmatpush1.bf16.xpose.msra.mxu0 0
      %990 = vmatprep.subr.bf16.mxu0 0
      %991 = vmatpush1.bf16.xpose.msra.mxu0 0
      %992 = vmatprep.subr.bf16.mxu0 0
      %993 = vmatpush1.bf16.xpose.msra.mxu0 0
      %994 = vmatprep.subr.bf16.mxu0 0
      %995 = vmatpush1.bf16.xpose.msra.mxu0 0
      %996 = vmatprep.subr.bf16.mxu0 0
      %997 = vmatpush1.bf16.xpose.msra.mxu0 0
      %998 = vmatprep.subr.bf16.mxu0 0
      %999 = vmatpush1.bf16.xpose.msra.mxu0 0
      %1000 = vmatprep.subr.bf16.mxu0 0
      %1001 = vmatpush1.bf16.xpose.msra.mxu0 0
      %1002 = vmatprep.subr.bf16.mxu0 0
      %1003 = vmatpush1.bf16.xpose.msra.mxu0 0
      %1004 = vmatprep.subr.bf16.mxu0 0
      %1005 = vmatpush1.bf16.xpose.msra.mxu0 0
      %1006 = vmatprep.subr.bf16.mxu0 0
      %1007 = vmatpush1.bf16.xpose.msra.mxu0 0
      %1008 = vmatprep.subr.bf16.mxu0 0
      %1009 = vmatpush1.bf16.xpose.msra.mxu0 0
      %1010 = vmatprep.mubr.bf16.mxu0 0
      %1011 = vmatmul.mubr.bf16.gmra.mrb[0].mxu0 %v973
      %v1012 = vpop.f32.mrb[0].mxu0
      %v1013 = vadd.f32 0.0, %v1012
      %v1014 = vpop.f32.mrb[0].mxu0
      %v1015 = vpop.f32.mrb[0].mxu0
      %v1016 = vpop.f32.mrb[0].mxu0
      %1017 = vdwg.mxu0
      %v1018 = vmul.f32 %v1013, 0.5
      %v1019 = vadd.f32 %v1018, %v733
      %v1020 = vsel %vm786, %v1019, -inf
      %1021 = vmax.xlane.f32.xlu0 %v1020
      %v1022 = vpop.xlane.xlu0 %1021
      %v1023 = vsub.f32 %v1019, %v1022
      %v1024 = vmul.f32 %v1023, 1.442695
      %v1025 = vpow.pop %v1024
      %v1026 = vsel %vm786, %v1025, 0.0
      %1027 = vadd.xlane.f32.xlu0 %v1026
      %v1028 = vpop.xlane.xlu0 %1027
      %v1029 = vrcp.pop %v1028
      %v1030 = vmul.f32 %v1025, %v1029
      %v1031 = vpack.c.bf16 %v1030, %v1030
      %1032 = vrot.lane.b32.xlu0 %v736, 120
      %v1033 = vpop.permute.xlu0 %1032
      %v1035 = vsel %vm786, %v1031, 0
      %v1038 = vsel %vm802, %v1033, 0
      %1040 = vmatprep.subr.bf16.mxu0 0
      %1041 = vmatpush1.bf16.msra.mxu0 %v1038
      %1042 = vmatprep.subr.bf16.mxu0 0
      %1043 = vmatpush1.bf16.msra.mxu0 0
      %1044 = vmatprep.subr.bf16.mxu0 0
      %1045 = vmatpush1.bf16.msra.mxu0 0
      %1046 = vmatprep.subr.bf16.mxu0 0
      %1047 = vmatpush1.bf16.msra.mxu0 0
      %1048 = vmatprep.subr.bf16.mxu0 0
      %1049 = vmatpush1.bf16.msra.mxu0 0
      %1050 = vmatprep.subr.bf16.mxu0 0
      %1051 = vmatpush1.bf16.msra.mxu0 0
      %1052 = vmatprep.subr.bf16.mxu0 0
      %1053 = vmatpush1.bf16.msra.mxu0 0
      %1054 = vmatprep.subr.bf16.mxu0 0
      %1055 = vmatpush1.bf16.msra.mxu0 0
      %1056 = vmatprep.subr.bf16.mxu0 0
      %1057 = vmatpush1.bf16.msra.mxu0 0
      %1058 = vmatprep.subr.bf16.mxu0 0
      %1059 = vmatpush1.bf16.msra.mxu0 0
      %1060 = vmatprep.subr.bf16.mxu0 0
      %1061 = vmatpush1.bf16.msra.mxu0 0
      %1062 = vmatprep.subr.bf16.mxu0 0
      %1063 = vmatpush1.bf16.msra.mxu0 0
      %1064 = vmatprep.subr.bf16.mxu0 0
      %1065 = vmatpush1.bf16.msra.mxu0 0
      %1066 = vmatprep.subr.bf16.mxu0 0
      %1067 = vmatpush1.bf16.msra.mxu0 0
      %1068 = vmatprep.subr.bf16.mxu0 0
      %1069 = vmatpush1.bf16.msra.mxu0 0
      %1070 = vmatprep.subr.bf16.mxu0 0
      %1071 = vmatpush1.bf16.msra.mxu0 0
      %1072 = vmatprep.mubr.bf16.mxu0 0
      %1073 = vmatmul.mubr.bf16.gmra.mrb[0].mxu0 %v1035
      %v1074 = vpop.f32.mrb[0].mxu0
      %v1075 = vadd.f32 0.0, %v1074
      %v1076 = vpop.f32.mrb[0].mxu0
      %v1077 = vpop.f32.mrb[0].mxu0
      %v1078 = vpop.f32.mrb[0].mxu0
      %1079 = vdwg.mxu0
      %1081 = vrot.lane.b32.xlu0 %v1075, 8
      %v1082 = vpop.permute.xlu0 %1081
      %vm1084 = vcmask 97344
      %1085 = vst.msk [vmem:[#allocation2] sm:$0xff] %vm1084, %v1082
      %1086 = vrot.lane.b32.xlu0 %v734, 116
      %v1087 = vpop.permute.xlu0 %1086
      %1088 = vrot.lane.b32.xlu0 %v735, 116
      %v1089 = vpop.permute.xlu0 %1088
      %v1091 = vsel %vm737, %v1087, 0
      %v1094 = vsel %vm737, %v1089, 0
      %1096 = vmatprep.subr.bf16.mxu0 0
      %1097 = vmatpush1.bf16.xpose.msra.mxu0 %v1094
      %1098 = vmatprep.subr.bf16.mxu0 0
      %1099 = vmatpush1.bf16.xpose.msra.mxu0 0
      %1100 = vmatprep.subr.bf16.mxu0 0
      %1101 = vmatpush1.bf16.xpose.msra.mxu0 0
      %1102 = vmatprep.subr.bf16.mxu0 0
      %1103 = vmatpush1.bf16.xpose.msra.mxu0 0
      %1104 = vmatprep.subr.bf16.mxu0 0
      %1105 = vmatpush1.bf16.xpose.msra.mxu0 0
      %1106 = vmatprep.subr.bf16.mxu0 0
      %1107 = vmatpush1.bf16.xpose.msra.mxu0 0
      %1108 = vmatprep.subr.bf16.mxu0 0
      %1109 = vmatpush1.bf16.xpose.msra.mxu0 0
      %1110 = vmatprep.subr.bf16.mxu0 0
      %1111 = vmatpush1.bf16.xpose.msra.mxu0 0
      %1112 = vmatprep.subr.bf16.mxu0 0
      %1113 = vmatpush1.bf16.xpose.msra.mxu0 0
      %1114 = vmatprep.subr.bf16.mxu0 0
      %1115 = vmatpush1.bf16.xpose.msra.mxu0 0
      %1116 = vmatprep.subr.bf16.mxu0 0
      %1117 = vmatpush1.bf16.xpose.msra.mxu0 0
      %1118 = vmatprep.subr.bf16.mxu0 0
      %1119 = vmatpush1.bf16.xpose.msra.mxu0 0
      %1120 = vmatprep.subr.bf16.mxu0 0
      %1121 = vmatpush1.bf16.xpose.msra.mxu0 0
      %1122 = vmatprep.subr.bf16.mxu0 0
      %1123 = vmatpush1.bf16.xpose.msra.mxu0 0
      %1124 = vmatprep.subr.bf16.mxu0 0
      %1125 = vmatpush1.bf16.xpose.msra.mxu0 0
      %1126 = vmatprep.subr.bf16.mxu0 0
      %1127 = vmatpush1.bf16.xpose.msra.mxu0 0
      %1128 = vmatprep.mubr.bf16.mxu0 0
      %1129 = vmatmul.mubr.bf16.gmra.mrb[0].mxu0 %v1091
      %v1130 = vpop.f32.mrb[0].mxu0
      %v1131 = vadd.f32 0.0, %v1130
      %v1132 = vpop.f32.mrb[0].mxu0
      %v1133 = vpop.f32.mrb[0].mxu0
      %v1134 = vpop.f32.mrb[0].mxu0
      %1135 = vdwg.mxu0
      %v1136 = vmul.f32 %v1131, 0.5
      %v1137 = vadd.f32 %v1136, %v733
      %v1138 = vsel %vm786, %v1137, -inf
      %1139 = vmax.xlane.f32.xlu0 %v1138
      %v1140 = vpop.xlane.xlu0 %1139
      %v1141 = vsub.f32 %v1137, %v1140
      %v1142 = vmul.f32 %v1141, 1.442695
      %v1143 = vpow.pop %v1142
      %v1144 = vsel %vm786, %v1143, 0.0
      %1145 = vadd.xlane.f32.xlu0 %v1144
      %v1146 = vpop.xlane.xlu0 %1145
      %v1147 = vrcp.pop %v1146
      %v1148 = vmul.f32 %v1143, %v1147
      %v1149 = vpack.c.bf16 %v1148, %v1148
      %1150 = vrot.lane.b32.xlu0 %v736, 116
      %v1151 = vpop.permute.xlu0 %1150
      %v1153 = vsel %vm786, %v1149, 0
      %v1156 = vsel %vm802, %v1151, 0
      %1158 = vmatprep.subr.bf16.mxu0 0
      %1159 = vmatpush1.bf16.msra.mxu0 %v1156
      %1160 = vmatprep.subr.bf16.mxu0 0
      %1161 = vmatpush1.bf16.msra.mxu0 0
      %1162 = vmatprep.subr.bf16.mxu0 0
      %1163 = vmatpush1.bf16.msra.mxu0 0
      %1164 = vmatprep.subr.bf16.mxu0 0
      %1165 = vmatpush1.bf16.msra.mxu0 0
      %1166 = vmatprep.subr.bf16.mxu0 0
      %1167 = vmatpush1.bf16.msra.mxu0 0
      %1168 = vmatprep.subr.bf16.mxu0 0
      %1169 = vmatpush1.bf16.msra.mxu0 0
      %1170 = vmatprep.subr.bf16.mxu0 0
      %1171 = vmatpush1.bf16.msra.mxu0 0
      %1172 = vmatprep.subr.bf16.mxu0 0
      %1173 = vmatpush1.bf16.msra.mxu0 0
      %1174 = vmatprep.subr.bf16.mxu0 0
      %1175 = vmatpush1.bf16.msra.mxu0 0
      %1176 = vmatprep.subr.bf16.mxu0 0
      %1177 = vmatpush1.bf16.msra.mxu0 0
      %1178 = vmatprep.subr.bf16.mxu0 0
      %1179 = vmatpush1.bf16.msra.mxu0 0
      %1180 = vmatprep.subr.bf16.mxu0 0
      %1181 = vmatpush1.bf16.msra.mxu0 0
      %1182 = vmatprep.subr.bf16.mxu0 0
      %1183 = vmatpush1.bf16.msra.mxu0 0
      %1184 = vmatprep.subr.bf16.mxu0 0
      %1185 = vmatpush1.bf16.msra.mxu0 0
      %1186 = vmatprep.subr.bf16.mxu0 0
      %1187 = vmatpush1.bf16.msra.mxu0 0
      %1188 = vmatprep.subr.bf16.mxu0 0
      %1189 = vmatpush1.bf16.msra.mxu0 0
      %1190 = vmatprep.mubr.bf16.mxu0 0
      %1191 = vmatmul.mubr.bf16.gmra.mrb[0].mxu0 %v1153
      %v1192 = vpop.f32.mrb[0].mxu0
      %v1193 = vadd.f32 0.0, %v1192
      %v1194 = vpop.f32.mrb[0].mxu0
      %v1195 = vpop.f32.mrb[0].mxu0
      %v1196 = vpop.f32.mrb[0].mxu0
      %1197 = vdwg.mxu0
      %1199 = vrot.lane.b32.xlu0 %v1193, 12
      %v1200 = vpop.permute.xlu0 %1199
      %vm1202 = vcmask 130144
      %1203 = vst.msk [vmem:[#allocation2] sm:$0xff] %vm1202, %v1200
      %1204 = vrot.lane.b32.xlu0 %v734, 112
      %v1205 = vpop.permute.xlu0 %1204
      %1206 = vrot.lane.b32.xlu0 %v735, 112
      %v1207 = vpop.permute.xlu0 %1206
      %v1209 = vsel %vm737, %v1205, 0
      %v1212 = vsel %vm737, %v1207, 0
      %1214 = vmatprep.subr.bf16.mxu0 0
      %1215 = vmatpush1.bf16.xpose.msra.mxu0 %v1212
      %1216 = vmatprep.subr.bf16.mxu0 0
      %1217 = vmatpush1.bf16.xpose.msra.mxu0 0
      %1218 = vmatprep.subr.bf16.mxu0 0
      %1219 = vmatpush1.bf16.xpose.msra.mxu0 0
      %1220 = vmatprep.subr.bf16.mxu0 0
      %1221 = vmatpush1.bf16.xpose.msra.mxu0 0
      %1222 = vmatprep.subr.bf16.mxu0 0
      %1223 = vmatpush1.bf16.xpose.msra.mxu0 0
      %1224 = vmatprep.subr.bf16.mxu0 0
      %1225 = vmatpush1.bf16.xpose.msra.mxu0 0
      %1226 = vmatprep.subr.bf16.mxu0 0
      %1227 = vmatpush1.bf16.xpose.msra.mxu0 0
      %1228 = vmatprep.subr.bf16.mxu0 0
      %1229 = vmatpush1.bf16.xpose.msra.mxu0 0
      %1230 = vmatprep.subr.bf16.mxu0 0
      %1231 = vmatpush1.bf16.xpose.msra.mxu0 0
      %1232 = vmatprep.subr.bf16.mxu0 0
      %1233 = vmatpush1.bf16.xpose.msra.mxu0 0
      %1234 = vmatprep.subr.bf16.mxu0 0
      %1235 = vmatpush1.bf16.xpose.msra.mxu0 0
      %1236 = vmatprep.subr.bf16.mxu0 0
      %1237 = vmatpush1.bf16.xpose.msra.mxu0 0
      %1238 = vmatprep.subr.bf16.mxu0 0
      %1239 = vmatpush1.bf16.xpose.msra.mxu0 0
      %1240 = vmatprep.subr.bf16.mxu0 0
      %1241 = vmatpush1.bf16.xpose.msra.mxu0 0
      %1242 = vmatprep.subr.bf16.mxu0 0
      %1243 = vmatpush1.bf16.xpose.msra.mxu0 0
      %1244 = vmatprep.subr.bf16.mxu0 0
      %1245 = vmatpush1.bf16.xpose.msra.mxu0 0
      %1246 = vmatprep.mubr.bf16.mxu0 0
      %1247 = vmatmul.mubr.bf16.gmra.mrb[0].mxu0 %v1209
      %v1248 = vpop.f32.mrb[0].mxu0
      %v1249 = vadd.f32 0.0, %v1248
      %v1250 = vpop.f32.mrb[0].mxu0
      %v1251 = vpop.f32.mrb[0].mxu0
      %v1252 = vpop.f32.mrb[0].mxu0
      %1253 = vdwg.mxu0
      %v1254 = vmul.f32 %v1249, 0.5
      %v1255 = vadd.f32 %v1254, %v733
      %v1256 = vsel %vm786, %v1255, -inf
      %1257 = vmax.xlane.f32.xlu0 %v1256
      %v1258 = vpop.xlane.xlu0 %1257
      %v1259 = vsub.f32 %v1255, %v1258
      %v1260 = vmul.f32 %v1259, 1.442695
      %v1261 = vpow.pop %v1260
      %v1262 = vsel %vm786, %v1261, 0.0
      %1263 = vadd.xlane.f32.xlu0 %v1262
      %v1264 = vpop.xlane.xlu0 %1263
      %v1265 = vrcp.pop %v1264
      %v1266 = vmul.f32 %v1261, %v1265
      %v1267 = vpack.c.bf16 %v1266, %v1266
      %1268 = vrot.lane.b32.xlu0 %v736, 112
      %v1269 = vpop.permute.xlu0 %1268
      %v1271 = vsel %vm786, %v1267, 0
      %v1274 = vsel %vm802, %v1269, 0
      %1276 = vmatprep.subr.bf16.mxu0 0
      %1277 = vmatpush1.bf16.msra.mxu0 %v1274
      %1278 = vmatprep.subr.bf16.mxu0 0
      %1279 = vmatpush1.bf16.msra.mxu0 0
      %1280 = vmatprep.subr.bf16.mxu0 0
      %1281 = vmatpush1.bf16.msra.mxu0 0
      %1282 = vmatprep.subr.bf16.mxu0 0
      %1283 = vmatpush1.bf16.msra.mxu0 0
      %1284 = vmatprep.subr.bf16.mxu0 0
      %1285 = vmatpush1.bf16.msra.mxu0 0
      %1286 = vmatprep.subr.bf16.mxu0 0
      %1287 = vmatpush1.bf16.msra.mxu0 0
      %1288 = vmatprep.subr.bf16.mxu0 0
      %1289 = vmatpush1.bf16.msra.mxu0 0
      %1290 = vmatprep.subr.bf16.mxu0 0
      %1291 = vmatpush1.bf16.msra.mxu0 0
      %1292 = vmatprep.subr.bf16.mxu0 0
      %1293 = vmatpush1.bf16.msra.mxu0 0
      %1294 = vmatprep.subr.bf16.mxu0 0
      %1295 = vmatpush1.bf16.msra.mxu0 0
      %1296 = vmatprep.subr.bf16.mxu0 0
      %1297 = vmatpush1.bf16.msra.mxu0 0
      %1298 = vmatprep.subr.bf16.mxu0 0
      %1299 = vmatpush1.bf16.msra.mxu0 0
      %1300 = vmatprep.subr.bf16.mxu0 0
      %1301 = vmatpush1.bf16.msra.mxu0 0
      %1302 = vmatprep.subr.bf16.mxu0 0
      %1303 = vmatpush1.bf16.msra.mxu0 0
      %1304 = vmatprep.subr.bf16.mxu0 0
      %1305 = vmatpush1.bf16.msra.mxu0 0
      %1306 = vmatprep.subr.bf16.mxu0 0
      %1307 = vmatpush1.bf16.msra.mxu0 0
      %1308 = vmatprep.mubr.bf16.mxu0 0
      %1309 = vmatmul.mubr.bf16.gmra.mrb[0].mxu0 %v1271
      %v1310 = vpop.f32.mrb[0].mxu0
      %v1311 = vadd.f32 0.0, %v1310
      %v1312 = vpop.f32.mrb[0].mxu0
      %v1313 = vpop.f32.mrb[0].mxu0
      %v1314 = vpop.f32.mrb[0].mxu0
      %1315 = vdwg.mxu0
      %1317 = vrot.lane.b32.xlu0 %v1311, 16
      %v1318 = vpop.permute.xlu0 %1317
      %vm1320 = vcmask 162944
      %1321 = vst.msk [vmem:[#allocation2] sm:$0xff] %vm1320, %v1318
      %1322 = vrot.lane.b32.xlu0 %v734, 108
      %v1323 = vpop.permute.xlu0 %1322
      %1324 = vrot.lane.b32.xlu0 %v735, 108
      %v1325 = vpop.permute.xlu0 %1324
      %v1327 = vsel %vm737, %v1323, 0
      %v1330 = vsel %vm737, %v1325, 0
      %1332 = vmatprep.subr.bf16.mxu0 0
      %1333 = vmatpush1.bf16.xpose.msra.mxu0 %v1330
      %1334 = vmatprep.subr.bf16.mxu0 0
      %1335 = vmatpush1.bf16.xpose.msra.mxu0 0
      %1336 = vmatprep.subr.bf16.mxu0 0
      %1337 = vmatpush1.bf16.xpose.msra.mxu0 0
      %1338 = vmatprep.subr.bf16.mxu0 0
      %1339 = vmatpush1.bf16.xpose.msra.mxu0 0
      %1340 = vmatprep.subr.bf16.mxu0 0
      %1341 = vmatpush1.bf16.xpose.msra.mxu0 0
      %1342 = vmatprep.subr.bf16.mxu0 0
      %1343 = vmatpush1.bf16.xpose.msra.mxu0 0
      %1344 = vmatprep.subr.bf16.mxu0 0
      %1345 = vmatpush1.bf16.xpose.msra.mxu0 0
      %1346 = vmatprep.subr.bf16.mxu0 0
      %1347 = vmatpush1.bf16.xpose.msra.mxu0 0
      %1348 = vmatprep.subr.bf16.mxu0 0
      %1349 = vmatpush1.bf16.xpose.msra.mxu0 0
      %1350 = vmatprep.subr.bf16.mxu0 0
      %1351 = vmatpush1.bf16.xpose.msra.mxu0 0
      %1352 = vmatprep.subr.bf16.mxu0 0
      %1353 = vmatpush1.bf16.xpose.msra.mxu0 0
      %1354 = vmatprep.subr.bf16.mxu0 0
      %1355 = vmatpush1.bf16.xpose.msra.mxu0 0
      %1356 = vmatprep.subr.bf16.mxu0 0
      %1357 = vmatpush1.bf16.xpose.msra.mxu0 0
      %1358 = vmatprep.subr.bf16.mxu0 0
      %1359 = vmatpush1.bf16.xpose.msra.mxu0 0
      %1360 = vmatprep.subr.bf16.mxu0 0
      %1361 = vmatpush1.bf16.xpose.msra.mxu0 0
      %1362 = vmatprep.subr.bf16.mxu0 0
      %1363 = vmatpush1.bf16.xpose.msra.mxu0 0
      %1364 = vmatprep.mubr.bf16.mxu0 0
      %1365 = vmatmul.mubr.bf16.gmra.mrb[0].mxu0 %v1327
      %v1366 = vpop.f32.mrb[0].mxu0
      %v1367 = vadd.f32 0.0, %v1366
      %v1368 = vpop.f32.mrb[0].mxu0
      %v1369 = vpop.f32.mrb[0].mxu0
      %v1370 = vpop.f32.mrb[0].mxu0
      %1371 = vdwg.mxu0
      %v1372 = vmul.f32 %v1367, 0.5
      %v1373 = vadd.f32 %v1372, %v733
      %v1374 = vsel %vm786, %v1373, -inf
      %1375 = vmax.xlane.f32.xlu0 %v1374
      %v1376 = vpop.xlane.xlu0 %1375
      %v1377 = vsub.f32 %v1373, %v1376
      %v1378 = vmul.f32 %v1377, 1.442695
      %v1379 = vpow.pop %v1378
      %v1380 = vsel %vm786, %v1379, 0.0
      %1381 = vadd.xlane.f32.xlu0 %v1380
      %v1382 = vpop.xlane.xlu0 %1381
      %v1383 = vrcp.pop %v1382
      %v1384 = vmul.f32 %v1379, %v1383
      %v1385 = vpack.c.bf16 %v1384, %v1384
      %1386 = vrot.lane.b32.xlu0 %v736, 108
      %v1387 = vpop.permute.xlu0 %1386
      %v1389 = vsel %vm786, %v1385, 0
      %v1392 = vsel %vm802, %v1387, 0
      %1394 = vmatprep.subr.bf16.mxu0 0
      %1395 = vmatpush1.bf16.msra.mxu0 %v1392
      %1396 = vmatprep.subr.bf16.mxu0 0
      %1397 = vmatpush1.bf16.msra.mxu0 0
      %1398 = vmatprep.subr.bf16.mxu0 0
      %1399 = vmatpush1.bf16.msra.mxu0 0
      %1400 = vmatprep.subr.bf16.mxu0 0
      %1401 = vmatpush1.bf16.msra.mxu0 0
      %1402 = vmatprep.subr.bf16.mxu0 0
      %1403 = vmatpush1.bf16.msra.mxu0 0
      %1404 = vmatprep.subr.bf16.mxu0 0
      %1405 = vmatpush1.bf16.msra.mxu0 0
      %1406 = vmatprep.subr.bf16.mxu0 0
      %1407 = vmatpush1.bf16.msra.mxu0 0
      %1408 = vmatprep.subr.bf16.mxu0 0
      %1409 = vmatpush1.bf16.msra.mxu0 0
      %1410 = vmatprep.subr.bf16.mxu0 0
      %1411 = vmatpush1.bf16.msra.mxu0 0
      %1412 = vmatprep.subr.bf16.mxu0 0
      %1413 = vmatpush1.bf16.msra.mxu0 0
      %1414 = vmatprep.subr.bf16.mxu0 0
      %1415 = vmatpush1.bf16.msra.mxu0 0
      %1416 = vmatprep.subr.bf16.mxu0 0
      %1417 = vmatpush1.bf16.msra.mxu0 0
      %1418 = vmatprep.subr.bf16.mxu0 0
      %1419 = vmatpush1.bf16.msra.mxu0 0
      %1420 = vmatprep.subr.bf16.mxu0 0
      %1421 = vmatpush1.bf16.msra.mxu0 0
      %1422 = vmatprep.subr.bf16.mxu0 0
      %1423 = vmatpush1.bf16.msra.mxu0 0
      %1424 = vmatprep.subr.bf16.mxu0 0
      %1425 = vmatpush1.bf16.msra.mxu0 0
      %1426 = vmatprep.mubr.bf16.mxu0 0
      %1427 = vmatmul.mubr.bf16.gmra.mrb[0].mxu0 %v1389
      %v1428 = vpop.f32.mrb[0].mxu0
      %v1429 = vadd.f32 0.0, %v1428
      %v1430 = vpop.f32.mrb[0].mxu0
      %v1431 = vpop.f32.mrb[0].mxu0
      %v1432 = vpop.f32.mrb[0].mxu0
      %1433 = vdwg.mxu0
      %1435 = vrot.lane.b32.xlu0 %v1429, 20
      %v1436 = vpop.permute.xlu0 %1435
      %vm1438 = vcmask 195744
      %1439 = vst.msk [vmem:[#allocation2] sm:$0xff] %vm1438, %v1436
      %1440 = vrot.lane.b32.xlu0 %v734, 104
      %v1441 = vpop.permute.xlu0 %1440
      %1442 = vrot.lane.b32.xlu0 %v735, 104
      %v1443 = vpop.permute.xlu0 %1442
      %v1445 = vsel %vm737, %v1441, 0
      %v1448 = vsel %vm737, %v1443, 0
      %1450 = vmatprep.subr.bf16.mxu0 0
      %1451 = vmatpush1.bf16.xpose.msra.mxu0 %v1448
      %1452 = vmatprep.subr.bf16.mxu0 0
      %1453 = vmatpush1.bf16.xpose.msra.mxu0 0
      %1454 = vmatprep.subr.bf16.mxu0 0
      %1455 = vmatpush1.bf16.xpose.msra.mxu0 0
      %1456 = vmatprep.subr.bf16.mxu0 0
      %1457 = vmatpush1.bf16.xpose.msra.mxu0 0
      %1458 = vmatprep.subr.bf16.mxu0 0
      %1459 = vmatpush1.bf16.xpose.msra.mxu0 0
      %1460 = vmatprep.subr.bf16.mxu0 0
      %1461 = vmatpush1.bf16.xpose.msra.mxu0 0
      %1462 = vmatprep.subr.bf16.mxu0 0
      %1463 = vmatpush1.bf16.xpose.msra.mxu0 0
      %1464 = vmatprep.subr.bf16.mxu0 0
      %1465 = vmatpush1.bf16.xpose.msra.mxu0 0
      %1466 = vmatprep.subr.bf16.mxu0 0
      %1467 = vmatpush1.bf16.xpose.msra.mxu0 0
      %1468 = vmatprep.subr.bf16.mxu0 0
      %1469 = vmatpush1.bf16.xpose.msra.mxu0 0
      %1470 = vmatprep.subr.bf16.mxu0 0
      %1471 = vmatpush1.bf16.xpose.msra.mxu0 0
      %1472 = vmatprep.subr.bf16.mxu0 0
      %1473 = vmatpush1.bf16.xpose.msra.mxu0 0
      %1474 = vmatprep.subr.bf16.mxu0 0
      %1475 = vmatpush1.bf16.xpose.msra.mxu0 0
      %1476 = vmatprep.subr.bf16.mxu0 0
      %1477 = vmatpush1.bf16.xpose.msra.mxu0 0
      %1478 = vmatprep.subr.bf16.mxu0 0
      %1479 = vmatpush1.bf16.xpose.msra.mxu0 0
      %1480 = vmatprep.subr.bf16.mxu0 0
      %1481 = vmatpush1.bf16.xpose.msra.mxu0 0
      %1482 = vmatprep.mubr.bf16.mxu0 0
      %1483 = vmatmul.mubr.bf16.gmra.mrb[0].mxu0 %v1445
      %v1484 = vpop.f32.mrb[0].mxu0
      %v1485 = vadd.f32 0.0, %v1484
      %v1486 = vpop.f32.mrb[0].mxu0
      %v1487 = vpop.f32.mrb[0].mxu0
      %v1488 = vpop.f32.mrb[0].mxu0
      %1489 = vdwg.mxu0
      %v1490 = vmul.f32 %v1485, 0.5
      %v1491 = vadd.f32 %v1490, %v733
      %v1492 = vsel %vm786, %v1491, -inf
      %1493 = vmax.xlane.f32.xlu0 %v1492
      %v1494 = vpop.xlane.xlu0 %1493
      %v1495 = vsub.f32 %v1491, %v1494
      %v1496 = vmul.f32 %v1495, 1.442695
      %v1497 = vpow.pop %v1496
      %v1498 = vsel %vm786, %v1497, 0.0
      %1499 = vadd.xlane.f32.xlu0 %v1498
      %v1500 = vpop.xlane.xlu0 %1499
      %v1501 = vrcp.pop %v1500
      %v1502 = vmul.f32 %v1497, %v1501
      %v1503 = vpack.c.bf16 %v1502, %v1502
      %1504 = vrot.lane.b32.xlu0 %v736, 104
      %v1505 = vpop.permute.xlu0 %1504
      %v1507 = vsel %vm786, %v1503, 0
      %v1510 = vsel %vm802, %v1505, 0
      %1512 = vmatprep.subr.bf16.mxu0 0
      %1513 = vmatpush1.bf16.msra.mxu0 %v1510
      %1514 = vmatprep.subr.bf16.mxu0 0
      %1515 = vmatpush1.bf16.msra.mxu0 0
      %1516 = vmatprep.subr.bf16.mxu0 0
      %1517 = vmatpush1.bf16.msra.mxu0 0
      %1518 = vmatprep.subr.bf16.mxu0 0
      %1519 = vmatpush1.bf16.msra.mxu0 0
      %1520 = vmatprep.subr.bf16.mxu0 0
      %1521 = vmatpush1.bf16.msra.mxu0 0
      %1522 = vmatprep.subr.bf16.mxu0 0
      %1523 = vmatpush1.bf16.msra.mxu0 0
      %1524 = vmatprep.subr.bf16.mxu0 0
      %1525 = vmatpush1.bf16.msra.mxu0 0
      %1526 = vmatprep.subr.bf16.mxu0 0
      %1527 = vmatpush1.bf16.msra.mxu0 0
      %1528 = vmatprep.subr.bf16.mxu0 0
      %1529 = vmatpush1.bf16.msra.mxu0 0
      %1530 = vmatprep.subr.bf16.mxu0 0
      %1531 = vmatpush1.bf16.msra.mxu0 0
      %1532 = vmatprep.subr.bf16.mxu0 0
      %1533 = vmatpush1.bf16.msra.mxu0 0
      %1534 = vmatprep.subr.bf16.mxu0 0
      %1535 = vmatpush1.bf16.msra.mxu0 0
      %1536 = vmatprep.subr.bf16.mxu0 0
      %1537 = vmatpush1.bf16.msra.mxu0 0
      %1538 = vmatprep.subr.bf16.mxu0 0
      %1539 = vmatpush1.bf16.msra.mxu0 0
      %1540 = vmatprep.subr.bf16.mxu0 0
      %1541 = vmatpush1.bf16.msra.mxu0 0
      %1542 = vmatprep.subr.bf16.mxu0 0
      %1543 = vmatpush1.bf16.msra.mxu0 0
      %1544 = vmatprep.mubr.bf16.mxu0 0
      %1545 = vmatmul.mubr.bf16.gmra.mrb[0].mxu0 %v1507
      %v1546 = vpop.f32.mrb[0].mxu0
      %v1547 = vadd.f32 0.0, %v1546
      %v1548 = vpop.f32.mrb[0].mxu0
      %v1549 = vpop.f32.mrb[0].mxu0
      %v1550 = vpop.f32.mrb[0].mxu0
      %1551 = vdwg.mxu0
      %1553 = vrot.lane.b32.xlu0 %v1547, 24
      %v1554 = vpop.permute.xlu0 %1553
      %vm1556 = vcmask 228544
      %1557 = vst.msk [vmem:[#allocation2] sm:$0xff] %vm1556, %v1554
      %1558 = vrot.lane.b32.xlu0 %v734, 100
      %v1559 = vpop.permute.xlu0 %1558
      %1560 = vrot.lane.b32.xlu0 %v735, 100
      %v1561 = vpop.permute.xlu0 %1560
      %v1563 = vsel %vm737, %v1559, 0
      %v1566 = vsel %vm737, %v1561, 0
      %1568 = vmatprep.subr.bf16.mxu0 0
      %1569 = vmatpush1.bf16.xpose.msra.mxu0 %v1566
      %1570 = vmatprep.subr.bf16.mxu0 0
      %1571 = vmatpush1.bf16.xpose.msra.mxu0 0
      %1572 = vmatprep.subr.bf16.mxu0 0
      %1573 = vmatpush1.bf16.xpose.msra.mxu0 0
      %1574 = vmatprep.subr.bf16.mxu0 0
      %1575 = vmatpush1.bf16.xpose.msra.mxu0 0
      %1576 = vmatprep.subr.bf16.mxu0 0
      %1577 = vmatpush1.bf16.xpose.msra.mxu0 0
      %1578 = vmatprep.subr.bf16.mxu0 0
      %1579 = vmatpush1.bf16.xpose.msra.mxu0 0
      %1580 = vmatprep.subr.bf16.mxu0 0
      %1581 = vmatpush1.bf16.xpose.msra.mxu0 0
      %1582 = vmatprep.subr.bf16.mxu0 0
      %1583 = vmatpush1.bf16.xpose.msra.mxu0 0
      %1584 = vmatprep.subr.bf16.mxu0 0
      %1585 = vmatpush1.bf16.xpose.msra.mxu0 0
      %1586 = vmatprep.subr.bf16.mxu0 0
      %1587 = vmatpush1.bf16.xpose.msra.mxu0 0
      %1588 = vmatprep.subr.bf16.mxu0 0
      %1589 = vmatpush1.bf16.xpose.msra.mxu0 0
      %1590 = vmatprep.subr.bf16.mxu0 0
      %1591 = vmatpush1.bf16.xpose.msra.mxu0 0
      %1592 = vmatprep.subr.bf16.mxu0 0
      %1593 = vmatpush1.bf16.xpose.msra.mxu0 0
      %1594 = vmatprep.subr.bf16.mxu0 0
      %1595 = vmatpush1.bf16.xpose.msra.mxu0 0
      %1596 = vmatprep.subr.bf16.mxu0 0
      %1597 = vmatpush1.bf16.xpose.msra.mxu0 0
      %1598 = vmatprep.subr.bf16.mxu0 0
      %1599 = vmatpush1.bf16.xpose.msra.mxu0 0
      %1600 = vmatprep.mubr.bf16.mxu0 0
      %1601 = vmatmul.mubr.bf16.gmra.mrb[0].mxu0 %v1563
      %v1602 = vpop.f32.mrb[0].mxu0
      %v1603 = vadd.f32 0.0, %v1602
      %v1604 = vpop.f32.mrb[0].mxu0
      %v1605 = vpop.f32.mrb[0].mxu0
      %v1606 = vpop.f32.mrb[0].mxu0
      %1607 = vdwg.mxu0
      %v1608 = vmul.f32 %v1603, 0.5
      %v1609 = vadd.f32 %v1608, %v733
      %v1610 = vsel %vm786, %v1609, -inf
      %1611 = vmax.xlane.f32.xlu0 %v1610
      %v1612 = vpop.xlane.xlu0 %1611
      %v1613 = vsub.f32 %v1609, %v1612
      %v1614 = vmul.f32 %v1613, 1.442695
      %v1615 = vpow.pop %v1614
      %v1616 = vsel %vm786, %v1615, 0.0
      %1617 = vadd.xlane.f32.xlu0 %v1616
      %v1618 = vpop.xlane.xlu0 %1617
      %v1619 = vrcp.pop %v1618
      %v1620 = vmul.f32 %v1615, %v1619
      %v1621 = vpack.c.bf16 %v1620, %v1620
      %1622 = vrot.lane.b32.xlu0 %v736, 100
      %v1623 = vpop.permute.xlu0 %1622
      %v1625 = vsel %vm786, %v1621, 0
      %v1628 = vsel %vm802, %v1623, 0
      %1630 = vmatprep.subr.bf16.mxu0 0
      %1631 = vmatpush1.bf16.msra.mxu0 %v1628
      %1632 = vmatprep.subr.bf16.mxu0 0
      %1633 = vmatpush1.bf16.msra.mxu0 0
      %1634 = vmatprep.subr.bf16.mxu0 0
      %1635 = vmatpush1.bf16.msra.mxu0 0
      %1636 = vmatprep.subr.bf16.mxu0 0
      %1637 = vmatpush1.bf16.msra.mxu0 0
      %1638 = vmatprep.subr.bf16.mxu0 0
      %1639 = vmatpush1.bf16.msra.mxu0 0
      %1640 = vmatprep.subr.bf16.mxu0 0
      %1641 = vmatpush1.bf16.msra.mxu0 0
      %1642 = vmatprep.subr.bf16.mxu0 0
      %1643 = vmatpush1.bf16.msra.mxu0 0
      %1644 = vmatprep.subr.bf16.mxu0 0
      %1645 = vmatpush1.bf16.msra.mxu0 0
      %1646 = vmatprep.subr.bf16.mxu0 0
      %1647 = vmatpush1.bf16.msra.mxu0 0
      %1648 = vmatprep.subr.bf16.mxu0 0
      %1649 = vmatpush1.bf16.msra.mxu0 0
      %1650 = vmatprep.subr.bf16.mxu0 0
      %1651 = vmatpush1.bf16.msra.mxu0 0
      %1652 = vmatprep.subr.bf16.mxu0 0
      %1653 = vmatpush1.bf16.msra.mxu0 0
      %1654 = vmatprep.subr.bf16.mxu0 0
      %1655 = vmatpush1.bf16.msra.mxu0 0
      %1656 = vmatprep.subr.bf16.mxu0 0
      %1657 = vmatpush1.bf16.msra.mxu0 0
      %1658 = vmatprep.subr.bf16.mxu0 0
      %1659 = vmatpush1.bf16.msra.mxu0 0
      %1660 = vmatprep.subr.bf16.mxu0 0
      %1661 = vmatpush1.bf16.msra.mxu0 0
      %1662 = vmatprep.mubr.bf16.mxu0 0
      %1663 = vmatmul.mubr.bf16.gmra.mrb[0].mxu0 %v1625
      %v1664 = vpop.f32.mrb[0].mxu0
      %v1665 = vadd.f32 0.0, %v1664
      %v1666 = vpop.f32.mrb[0].mxu0
      %v1667 = vpop.f32.mrb[0].mxu0
      %v1668 = vpop.f32.mrb[0].mxu0
      %1669 = vdwg.mxu0
      %1671 = vrot.lane.b32.xlu0 %v1665, 28
      %v1672 = vpop.permute.xlu0 %1671
      %vm1674 = vcmask 261344
      %1675 = vst.msk [vmem:[#allocation2] sm:$0xff] %vm1674, %v1672
      %v1676 = vld [vmem:[#allocation2] sm:$0xff]
      %v1677 = vpack.c.bf16 %v1676, %v1676
      %v1678 = vld [vmem:[%s12] sm:$0xf]
      %v1679 = vld [vmem:[%s12 + $0x4] sm:$0xf]
      %v1680 = vld [vmem:[%s12 + $0x8] sm:$0xf]
      %v1681 = vld [vmem:[%s12 + $0xc] sm:$0xf]
      %v1682 = vld [vmem:[%s13] sm:$0x1]
      %v1684 = vlaneseq
      %v1685 = vshrl.u32 %v1684, 7
      %v1686 = vsub.s32 0, %v1685
      %v1687 = vrot.slane %v1682, %v1686
      %v1693 = vunpack.c.l.b16 %v1678
      %v1694 = vunpack.c.l.b16 %v1679
      %v1695 = vunpack.c.l.b16 %v1680
      %v1696 = vunpack.c.l.b16 %v1681
      %v1697 = vpack.c.b16 %v1694, %v1693
      %v1698 = vpack.c.b16 %v1696, %v1695
      %v1702 = vsel %vm501, %v1677, 0
      %1704 = vmatprep.subr.bf16.mxu0 0
      %1705 = vmatpush1.bf16.msra.mxu0 %v1697
      %1706 = vmatprep.subr.bf16.mxu0 0
      %1707 = vmatpush1.bf16.msra.mxu0 %v1698
      %1708 = vmatprep.subr.bf16.mxu0 0
      %1709 = vmatpush1.bf16.msra.mxu0 0
      %1710 = vmatprep.subr.bf16.mxu0 0
      %1711 = vmatpush1.bf16.msra.mxu0 0
      %1712 = vmatprep.subr.bf16.mxu0 0
      %1713 = vmatpush1.bf16.msra.mxu0 0
      %1714 = vmatprep.subr.bf16.mxu0 0
      %1715 = vmatpush1.bf16.msra.mxu0 0
      %1716 = vmatprep.subr.bf16.mxu0 0
      %1717 = vmatpush1.bf16.msra.mxu0 0
      %1718 = vmatprep.subr.bf16.mxu0 0
      %1719 = vmatpush1.bf16.msra.mxu0 0
      %1720 = vmatprep.subr.bf16.mxu0 0
      %1721 = vmatpush1.bf16.msra.mxu0 0
      %1722 = vmatprep.subr.bf16.mxu0 0
      %1723 = vmatpush1.bf16.msra.mxu0 0
      %1724 = vmatprep.subr.bf16.mxu0 0
      %1725 = vmatpush1.bf16.msra.mxu0 0
      %1726 = vmatprep.subr.bf16.mxu0 0
      %1727 = vmatpush1.bf16.msra.mxu0 0
      %1728 = vmatprep.subr.bf16.mxu0 0
      %1729 = vmatpush1.bf16.msra.mxu0 0
      %1730 = vmatprep.subr.bf16.mxu0 0
      %1731 = vmatpush1.bf16.msra.mxu0 0
      %1732 = vmatprep.subr.bf16.mxu0 0
      %1733 = vmatpush1.bf16.msra.mxu0 0
      %1734 = vmatprep.subr.bf16.mxu0 0
      %1735 = vmatpush1.bf16.msra.mxu0 0
      %1736 = vmatprep.mubr.bf16.mxu0 0
      %1737 = vmatmul.mubr.bf16.gmra.mrb[0].mxu0 %v1702
      %v1738 = vpop.f32.mrb[0].mxu0
      %v1739 = vadd.f32 %v1687, %v1738
      %v1740 = vpop.f32.mrb[0].mxu0
      %v1741 = vpop.f32.mrb[0].mxu0
      %v1742 = vpop.f32.mrb[0].mxu0
      %1743 = vdwg.mxu0
      %v1744 = vadd.f32 %v1739, %v498
      %1745 = vst.msk [vmem:[%s496] sm:$0xff] %vm501, %v1744
      %p1746 = scmp.lt.s32.totalorder %s25, 1
      %s1747 = scalar_select %p1746, %s25, 1
      %s1748 = smul.addr %s1747, 8
      %s1749 = scalar_lea.vmem %s14, %s1748
      // Predicated region
      $region77: #{decoder_forward.8} parent=75 // pred_check
        %p1750 = pneg %p352
      $region78: #{decoder_forward.8} parent=75 // pred_check_branch
        %1752 = sbr.rel (%p1750) target = $region80
      $region79: #{decoder_forward.8} parent=75 // pred_region
        _
      $region80: #{decoder_forward.8} parent=75 // pred_fallthru
        _
    $region76: #{decoder_forward.8} parent=5 // pred_fallthru
      _
    %p1753 = scmp.le.s32.totalorder 2, %s20
    // Predicated region
    $region81: #{decoder_forward.8} parent=5 // pred_check
      %p1754 = pneg %p1753
    $region82: #{decoder_forward.8} parent=5 // pred_check_branch
      %1756 = sbr.rel (%p1754) target = $region84
    $region83: #{decoder_forward.8} parent=5 // pred_region
      %s1757 = ssub.s32 %s20, 2
      // Predicated region
      $region85: #{decoder_forward.8} parent=83 // pred_check
        %p1758 = pneg %p358
      $region86: #{decoder_forward.8} parent=83 // pred_check_branch
        %1760 = sbr.rel (%p1758) target = $region88
      $region87: #{decoder_forward.8} parent=83 // pred_region
        %p1761 = scmp.lt.s32.totalorder %s26, 1
        %s1762 = scalar_select %p1761, %s26, 1
        %s1763 = smul.addr %s1762, 8
        %s1764 = scalar_lea.vmem %s14, %s1763
      $region88: #{decoder_forward.8} parent=83 // pred_fallthru
        _
    $region84: #{decoder_forward.8} parent=5 // pred_fallthru
      _
  $region6: #{decoder_forward.8} parent=0 // loop_footer
    %s24 = sadd.s32 1, %s20
  $region7: #{decoder_forward.8} parent=0 // loop_footer_branch
    %19 = sbr.rel target = $region3
  $region8: #{decoder_forward.8} parent=0 // loop_exit
    _

</llo_original>
